<compile_context>
chip_gen: v7x
topology: tpu7x:2x2x1
jax: 0.10.0
libtpu: 0.0.40
codegen_flags: <defaults>
</compile_context>

<pallas_src>
import functools
import math

import numpy as np
import jax
import jax.numpy as jnp
from jax import lax
from jax.experimental import pallas as pl
from jax.experimental.pallas import tpu as pltpu


# -----------------------------------------------------------------------------
# Positional encoding (exact port of the PyTorch helper, computed on host).
# -----------------------------------------------------------------------------
def positionalencoding2d(d_model, height, width):
    if d_model % 4 != 0:
        raise ValueError(
            "Cannot use sin/cos positional encoding with odd dimension "
            "(got dim={:d})".format(d_model))
    pe = np.zeros((d_model, height, width), dtype=np.float32)
    dh = d_model // 2
    div_term = np.exp(
        np.arange(0.0, dh, 2, dtype=np.float32) * -(math.log(10000.0) / dh))
    pos_w = np.arange(0.0, width, dtype=np.float32)[:, None]
    pos_h = np.arange(0.0, height, dtype=np.float32)[:, None]
    pe[0:dh:2, :, :] = np.repeat(np.sin(pos_w * div_term).T[:, None, :], height, axis=1)
    pe[1:dh:2, :, :] = np.repeat(np.cos(pos_w * div_term).T[:, None, :], height, axis=1)
    pe[dh::2, :, :] = np.repeat(np.sin(pos_h * div_term).T[:, :, None], width, axis=2)
    pe[dh + 1::2, :, :] = np.repeat(np.cos(pos_h * div_term).T[:, :, None], width, axis=2)
    return jnp.asarray(pe)


# -----------------------------------------------------------------------------
# im2col glue (turns the 'same'-padded Conv2d into a matmul).
# patch index ordering = c * k*k + di * k + dj, matching conv_weight.reshape(out, C*k*k).
# NOTE(v5e): im2col inflates the HBM stream by k^2; bf16 patches halve that.  A
# fully in-kernel k*k shifted-matmul formulation would remove it entirely.
# -----------------------------------------------------------------------------
def im2col(x, k):
    B, C, H, W = x.shape
    pad = k // 2
    xp = jnp.pad(x, ((0, 0), (0, 0), (pad, pad), (pad, pad)))
    cols = []
    for di in range(k):
        for dj in range(k):
            cols.append(xp[:, :, di:di + H, dj:dj + W])          # (B, C, H, W)
    patches = jnp.stack(cols, axis=2)                            # (B, C, k*k, H, W)
    patches = patches.reshape(B, C * k * k, H * W)               # (B, C*k*k, HW)
    return patches.transpose(0, 2, 1)                            # (B, HW, C*k*k)


# -----------------------------------------------------------------------------
# Pallas kernel: one (batch element, query-row tile) per grid step.
# -----------------------------------------------------------------------------
def convformer_kernel(patches_ref, xflat_ref, wkqv_ref, bkqv_ref, wp_ref, bp_ref,
                      lnw_ref, lnb_ref, w1_ref, b1_ref, w2_ref, b2_ref,
                      out_ref,
                      k_scr, q_scr, v_scr, s_scr,
                      *, nheads, kqv, tq):
    NK = nheads * kqv
    t = pl.program_id(1)

    # ---- Once per batch element: fused K|Q|V conv-as-matmul (bf16 in, f32 acc). ----
    @pl.when(t == 0)
    def _():
        patches = patches_ref[0]                                  # (HW, Ckk) bf16
        kqv_all = jnp.dot(patches, wkqv_ref[...],
                          preferred_element_type=jnp.float32) + bkqv_ref[...]
        k_scr[...] = kqv_all[:, 0:NK]          # K already carries the 1/HW scale
        q_scr[...] = kqv_all[:, NK:2 * NK]
        v_scr[...] = kqv_all[:, 2 * NK:3 * NK]

    # ---- This query-row tile (rows of the attention score matrix). ----
    row0 = pl.multiple_of(t * tq, tq)
    k_t = k_scr[pl.ds(row0, tq), :].astype(jnp.bfloat16)          # (tq, NK)
    q_f = q_scr[...].astype(jnp.bfloat16)                         # (HW, NK)
    v_f = v_scr[...].astype(jnp.bfloat16)                         # (HW, NK)

    nt_dims = (((1,), (1,)), ((), ()))                            # A @ B^T on the MXU
    for h in range(nheads):
        s_scr[h] = lax.dot_general(k_t[:, h * kqv:(h + 1) * kqv],
                                   q_f[:, h * kqv:(h + 1) * kqv],
                                   nt_dims, preferred_element_type=jnp.float32)

    # nn.Softmax2d on (B, nheads, HW, HW) == softmax over the *head* axis.
    m = s_scr[0]
    for h in range(1, nheads):
        m = jnp.maximum(m, s_scr[h])
    denom = jnp.zeros_like(m)
    for h in range(nheads):
        e = jnp.exp(s_scr[h] - m)
        s_scr[h] = e                           # overwrite scores in place with exp()
        denom = denom + e
    inv = pl.reciprocal(denom, approx=True)

    # att = softmax @ V per head, concatenated head-major -> single projection matmul.
    att = jnp.concatenate(
        [jnp.dot((s_scr[h] * inv).astype(jnp.bfloat16),
                 v_f[:, h * kqv:(h + 1) * kqv],
                 preferred_element_type=jnp.float32)
         for h in range(nheads)], axis=-1)                        # (tq, NK)
    attproj = jnp.dot(att.astype(jnp.bfloat16), wp_ref[...],
                      preferred_element_type=jnp.float32) + bp_ref[...]

    def layer_norm(z):
        # fused single-pass stats (f32): var = E[z^2] - mu^2
        inv_c = 1.0 / z.shape[-1]
        mu = jnp.sum(z, axis=-1, keepdims=True) * inv_c
        ms = jnp.sum(z * z, axis=-1, keepdims=True) * inv_c
        var = ms - mu * mu
        return (z - mu) * lax.rsqrt(var + 1e-5) * lnw_ref[...] + lnb_ref[...]

    addn = layer_norm(xflat_ref[0] + attproj)                     # (tq, C)
    # Feed-forward kept in f32: C is tiny (no MXU benefit) and it preserves accuracy.
    ff = jnp.dot(addn, w1_ref[...], preferred_element_type=jnp.float32) + b1_ref[...]
    ff = jnp.where(ff > 0, ff, 0.1 * ff)                          # LeakyReLU(0.1)
    ff = jnp.dot(ff, w2_ref[...], preferred_element_type=jnp.float32) + b2_ref[...]
    y = layer_norm(ff + addn)                                     # (tq, C)

    # Lane-dense store: emit the (C, tq) transpose so the spatial axis sits on the
    # 128-lane dim.  The transpose is an MXU contraction with the identity (exact,
    # avoids relying on XLU transpose lowering for a skinny (tq, C<8) tile).
    ri = lax.broadcasted_iota(jnp.int32, (tq, tq), 0)
    ci = lax.broadcasted_iota(jnp.int32, (tq, tq), 1)
    eye = (ri == ci).astype(jnp.float32)
    y_t = lax.dot_general(y, eye, (((0,), (0,)), ((), ())),
                          preferred_element_type=jnp.float32)     # (C, tq)
    out_ref[0] = y_t.astype(out_ref.dtype)


# -----------------------------------------------------------------------------
# Parameter initialization (deterministic, synthetic; PyTorch-layout equivalents).
# -----------------------------------------------------------------------------
def init_params(key, inchans, kqvchans, kernsize, nheads):
    Ckk = inchans * kernsize * kernsize
    ks = jax.random.split(key, 14)
    s_conv = 1.0 / math.sqrt(Ckk)
    s_proj = 1.0 / math.sqrt(nheads * kqvchans)
    s_ff = 1.0 / math.sqrt(inchans)

    def rnd(k, shape, s):
        return jax.random.normal(k, shape, jnp.float32) * s

    # Conv2d weights (out, in, k, k) reshaped into matmul form (nheads, C*k*k, kqv).
    def conv_w(k):
        w = rnd(k, (nheads, kqvchans, inchans, kernsize, kernsize), s_conv)
        return w.reshape(nheads, kqvchans, Ckk).transpose(0, 2, 1)

    params = dict(
        kw=conv_w(ks[0]), kb=rnd(ks[1], (nheads, 1, kqvchans), s_conv),
        qw=conv_w(ks[2]), qb=rnd(ks[3], (nheads, 1, kqvchans), s_conv),
        vw=conv_w(ks[4]), vb=rnd(ks[5], (nheads, 1, kqvchans), s_conv),
        # projheads Linear weight^T; row index = c*nheads + h (kqv-major flatten).
        wp_flat=rnd(ks[6], (nheads * kqvchans, inchans), s_proj),
        bp=rnd(ks[7], (1, inchans), s_proj),
        lnw=1.0 + rnd(ks[8], (1, inchans), 0.1), lnb=rnd(ks[9], (1, inchans), 0.1),
        w1=rnd(ks[10], (inchans, inchans), s_ff), b1=rnd(ks[11], (1, inchans), s_ff),
        w2=rnd(ks[12], (inchans, inchans), s_ff), b2=rnd(ks[13], (1, inchans), s_ff),
    )
    return params


# -----------------------------------------------------------------------------
# Wrapper around pallas_call.
# -----------------------------------------------------------------------------
def convformer_forward(x, params, kernsize, *, tq=None):
    B, C, H, W = x.shape
    HW = H * W
    pe = positionalencoding2d(C, H, W)
    x_pe = x + pe[None]
    xflat = x_pe.reshape(B, C, HW).transpose(0, 2, 1)             # (B, HW, C)  f32
    patches = im2col(x_pe, kernsize).astype(jnp.bfloat16)         # (B, HW, Ckk) bf16

    nheads, Ckk, kqv = params["kw"].shape
    NK = nheads * kqv

    # Fuse K|Q|V into one wide weight with head-major columns; fold 1/HW into K.
    def cols(w):                                 # (nh, Ckk, kqv) -> (Ckk, nh*kqv)
        return jnp.transpose(w, (1, 0, 2)).reshape(Ckk, NK)

    def bias(b):                                 # (nh, 1, kqv)  -> (1, nh*kqv)
        return b.reshape(1, NK)

    wkqv = jnp.concatenate(
        [cols(params["kw"]) / HW, cols(params["qw"]), cols(params["vw"])],
        axis=1).astype(jnp.bfloat16)                              # (Ckk, 3*NK) bf16
    bkqv = jnp.concatenate(
        [bias(params["kb"]) / HW, bias(params["qb"]), bias(params["vb"])],
        axis=1)                                                   # (1, 3*NK)  f32

    # Reorder projheads weight so a head-major concat of att matches the PyTorch
    # (kqv-major, head-minor) flatten ordering.
    wp = params["wp_flat"].reshape(kqv, nheads, C).transpose(1, 0, 2)
    wp = wp.reshape(NK, C).astype(jnp.bfloat16)

    if tq is None:
        tq = 128 if HW % 128 == 0 else HW   # row tile; re-derive per HW / TPU generation
    assert HW % tq == 0 and tq % 8 == 0
    nt = HW // tq

    kernel = functools.partial(convformer_kernel, nheads=nheads, kqv=kqv, tq=tq)

    def full_spec(arr):
        nd = arr.ndim
        return pl.BlockSpec(arr.shape, lambda b, t, _nd=nd: (0,) * _nd)

    in_arrays = (patches, xflat, wkqv, bkqv, wp, params["bp"],
                 params["lnw"], params["lnb"],
                 params["w1"], params["b1"], params["w2"], params["b2"])
    in_specs = [
        pl.BlockSpec((1, HW, Ckk), lambda b, t: (b, 0, 0)),  # stays resident across row tiles
        pl.BlockSpec((1, tq, C), lambda b, t: (b, t, 0)),
    ] + [full_spec(a) for a in in_arrays[2:]]

    out = pl.pallas_call(
        kernel,
        out_shape=jax.ShapeDtypeStruct((B, C, HW), jnp.float32),
        grid=(B, nt),
        in_specs=in_specs,
        out_specs=pl.BlockSpec((1, C, tq), lambda b, t: (b, 0, t)),
        scratch_shapes=[
            pltpu.VMEM((HW, NK), jnp.float32),            # K (pre-scaled by 1/HW)
            pltpu.VMEM((HW, NK), jnp.float32),            # Q
            pltpu.VMEM((HW, NK), jnp.float32),            # V
            pltpu.VMEM((nheads, tq, HW), jnp.float32),    # scores -> exp() in place
        ],
        compiler_params=pltpu.CompilerParams(
            dimension_semantics=("parallel", "arbitrary"),
            # Toy shapes fit easily; when scaling, re-derive from the row-tile math
            # (64 MiB physical VMEM on v7x vs 128 MiB on v5e/v6e).
            vmem_limit_bytes=32 * 1024 * 1024,
        ),
    )(*in_arrays)

    # Kernel already emits channel-major (B, C, HW): NCHW reshape is free.
    return out.reshape(B, C, H, W)


# -----------------------------------------------------------------------------
# Pure-JAX f32 reference (mirrors the PyTorch forward) for a sanity check.
# -----------------------------------------------------------------------------
def reference_forward(x, params, kernsize):
    B, C, H, W = x.shape
    HW = H * W
    pe = positionalencoding2d(C, H, W)
    x = x + pe[None]
    xflat = x.reshape(B, C, HW).transpose(0, 2, 1)
    patches = im2col(x, kernsize)
    nheads = params["kw"].shape[0]

    def conv_heads(wn, bn):
        return jnp.stack(
            [jnp.einsum("bpc,ck->bpk", patches, params[wn][h]) + params[bn][h]
             for h in range(nheads)], axis=1)                     # (B, nh, HW, kqv)

    ks_ = conv_heads("kw", "kb")
    qs_ = conv_heads("qw", "qb")
    vs_ = conv_heads("vw", "vb")
    kqt = jnp.einsum("bhpk,bhqk->bhpq", ks_, qs_) / HW            # (B, nh, HW, HW)
    sm = jax.nn.softmax(kqt, axis=1)                              # Softmax2d over heads
    att = jnp.einsum("bhpq,bhqk->bhpk", sm, vs_)                  # (B, nh, HW, kqv)
    att = att.transpose(0, 2, 3, 1).reshape(B, HW, -1)            # kqv-major, head-minor
    attproj = att @ params["wp_flat"] + params["bp"][0]

    def ln(z):
        mu = z.mean(-1, keepdims=True)
        var = ((z - mu) ** 2).mean(-1, keepdims=True)
        return (z - mu) / jnp.sqrt(var + 1e-5) * params["lnw"][0] + params["lnb"][0]

    addn = ln(xflat + attproj)
    f = addn @ params["w1"] + params["b1"][0]
    f = jnp.where(f > 0, f, 0.1 * f)
    f = f @ params["w2"] + params["b2"][0]
    out = ln(f + addn)
    return out.transpose(0, 2, 1).reshape(B, C, H, W)


if __name__ == "__main__":
    B, inchans, H, W = 2, 4, 16, 16
    kqvchans, kernsize, nheads = 8, 3, 2

    key = jax.random.PRNGKey(0)
    kx, kp = jax.random.split(key)
    x = jax.random.normal(kx, (B, inchans, H, W), jnp.float32)
    params = init_params(kp, inchans, kqvchans, kernsize, nheads)

    out = jax.block_until_ready(convformer_forward(x, params, kernsize))
    assert out.shape == (B, inchans, H, W)

    ref = jax.block_until_ready(reference_forward(x, params, kernsize))
    # bf16 matmuls (f32 accumulate) + approx reciprocal in the softmax -> slightly
    # looser tolerance than a pure-f32 comparison.
    np.testing.assert_allclose(np.asarray(out), np.asarray(ref), rtol=5e-2, atol=5e-2)

    print("KERNEL_OK")
</pallas_src>

<mosaic_0001>
module attributes {stable_mosaic.version = 11 : i64} {
  func.func @convformer_kernel(%arg0: i32, %arg1: i32, %arg2: memref<1x256x36xbf16, #tpu.memory_space<vmem>>, %arg3: memref<1x128x4xf32, #tpu.memory_space<vmem>>, %arg4: memref<36x48xbf16, #tpu.memory_space<vmem>>, %arg5: memref<1x48xf32, #tpu.memory_space<vmem>>, %arg6: memref<16x4xbf16, #tpu.memory_space<vmem>>, %arg7: memref<1x4xf32, #tpu.memory_space<vmem>>, %arg8: memref<1x4xf32, #tpu.memory_space<vmem>>, %arg9: memref<1x4xf32, #tpu.memory_space<vmem>>, %arg10: memref<4x4xf32, #tpu.memory_space<vmem>>, %arg11: memref<1x4xf32, #tpu.memory_space<vmem>>, %arg12: memref<4x4xf32, #tpu.memory_space<vmem>>, %arg13: memref<1x4xf32, #tpu.memory_space<vmem>>, %arg14: memref<1x4x128xf32, #tpu.memory_space<vmem>>, %arg15: memref<256x16xf32, #tpu.memory_space<vmem>>, %arg16: memref<256x16xf32, #tpu.memory_space<vmem>>, %arg17: memref<256x16xf32, #tpu.memory_space<vmem>>, %arg18: memref<2x128x256xf32, #tpu.memory_space<vmem>>) attributes {dimension_semantics = [#tpu.dimension_semantics<parallel>, #tpu.dimension_semantics<arbitrary>], iteration_bounds = array<i64: 2, 2>, scalar_prefetch = 0 : i64, scratch_operands = 4 : i64, tpu.core_type = #tpu.core_type<tc>, window_params = [{transform_indices = @transform_0, window_bounds = array<i64: 1, 256, 36>}, {transform_indices = @transform_1, window_bounds = array<i64: 1, 128, 4>}, {pipeline_mode = #tpu.pipeline_mode<synchronous>, transform_indices = @transform_2, window_bounds = array<i64: 36, 48>}, {pipeline_mode = #tpu.pipeline_mode<synchronous>, transform_indices = @transform_3, window_bounds = array<i64: 1, 48>}, {pipeline_mode = #tpu.pipeline_mode<synchronous>, transform_indices = @transform_4, window_bounds = array<i64: 16, 4>}, {pipeline_mode = #tpu.pipeline_mode<synchronous>, transform_indices = @transform_5, window_bounds = array<i64: 1, 4>}, {pipeline_mode = #tpu.pipeline_mode<synchronous>, transform_indices = @transform_6, window_bounds = array<i64: 1, 4>}, {pipeline_mode = #tpu.pipeline_mode<synchronous>, transform_indices = @transform_7, window_bounds = array<i64: 1, 4>}, {pipeline_mode = #tpu.pipeline_mode<synchronous>, transform_indices = @transform_8, window_bounds = array<i64: 4, 4>}, {pipeline_mode = #tpu.pipeline_mode<synchronous>, transform_indices = @transform_9, window_bounds = array<i64: 1, 4>}, {pipeline_mode = #tpu.pipeline_mode<synchronous>, transform_indices = @transform_10, window_bounds = array<i64: 4, 4>}, {pipeline_mode = #tpu.pipeline_mode<synchronous>, transform_indices = @transform_11, window_bounds = array<i64: 1, 4>}, {transform_indices = @transform_12, window_bounds = array<i64: 1, 4, 128>}]} {
    %c0_i32 = arith.constant 0 : i32
    %0 = arith.cmpi eq, %arg1, %c0_i32 : i32
    %1 = arith.extui %0 : i1 to i32
    %c0_i32_0 = arith.constant 0 : i32
    %2 = arith.cmpi ne, %1, %c0_i32_0 : i32
    scf.if %2 {
      %c0_80 = arith.constant 0 : index
      %c0_81 = arith.constant 0 : index
      %c0_82 = arith.constant 0 : index
      %142 = vector.load %arg2[%c0_80, %c0_81, %c0_82] : memref<1x256x36xbf16, #tpu.memory_space<vmem>>, vector<1x256x36xbf16>
      %143 = vector.shape_cast %142 : vector<1x256x36xbf16> to vector<256x36xbf16>
      %c0_83 = arith.constant 0 : index
      %c0_84 = arith.constant 0 : index
      %144 = vector.load %arg4[%c0_83, %c0_84] : memref<36x48xbf16, #tpu.memory_space<vmem>>, vector<36x48xbf16>
      %cst_85 = arith.constant dense<0.000000e+00> : vector<256x48xf32>
      %145 = tpu.matmul %143, %144, %cst_85 {dimension_numbers = #tpu.dot_dimension_numbers<[1], [0], [0], [1], [0, 0, 1, 1], [], []>} : vector<256x36xbf16>, vector<36x48xbf16>, vector<256x48xf32> -> vector<256x48xf32>
      %c0_86 = arith.constant 0 : index
      %c0_87 = arith.constant 0 : index
      %146 = vector.load %arg5[%c0_86, %c0_87] : memref<1x48xf32, #tpu.memory_space<vmem>>, vector<1x48xf32>
      %147 = vector.broadcast %146 : vector<1x48xf32> to vector<256x48xf32>
      %148 = arith.addf %145, %147 : vector<256x48xf32>
      %149 = vector.extract_strided_slice %148 {offsets = [0, 0], sizes = [256, 16], strides = [1, 1]} : vector<256x48xf32> to vector<256x16xf32>
      %c0_88 = arith.constant 0 : index
      %c0_89 = arith.constant 0 : index
      %150 = vector.load %arg15[%c0_88, %c0_89] : memref<256x16xf32, #tpu.memory_space<vmem>>, vector<256x16xf32>
      tpu.vector_store %arg15[%c0_88, %c0_89], %149 {strides = array<i32>} : memref<256x16xf32, #tpu.memory_space<vmem>>, vector<256x16xf32>,
      %151 = vector.extract_strided_slice %148 {offsets = [0, 16], sizes = [256, 16], strides = [1, 1]} : vector<256x48xf32> to vector<256x16xf32>
      %c0_90 = arith.constant 0 : index
      %c0_91 = arith.constant 0 : index
      %152 = vector.load %arg16[%c0_90, %c0_91] : memref<256x16xf32, #tpu.memory_space<vmem>>, vector<256x16xf32>
      tpu.vector_store %arg16[%c0_90, %c0_91], %151 {strides = array<i32>} : memref<256x16xf32, #tpu.memory_space<vmem>>, vector<256x16xf32>,
      %153 = vector.extract_strided_slice %148 {offsets = [0, 32], sizes = [256, 16], strides = [1, 1]} : vector<256x48xf32> to vector<256x16xf32>
      %c0_92 = arith.constant 0 : index
      %c0_93 = arith.constant 0 : index
      %154 = vector.load %arg17[%c0_92, %c0_93] : memref<256x16xf32, #tpu.memory_space<vmem>>, vector<256x16xf32>
      tpu.vector_store %arg17[%c0_92, %c0_93], %153 {strides = array<i32>} : memref<256x16xf32, #tpu.memory_space<vmem>>, vector<256x16xf32>,
    } else {
    }
    %c128_i32 = arith.constant 128 : i32
    %3 = arith.muli %arg1, %c128_i32 : i32
    %4 = tpu.assume_multiple %3, 128 : i32
    %5 = arith.index_cast %4 : i32 to index
    %c0 = arith.constant 0 : index
    %6 = vector.load %arg15[%5, %c0] : memref<256x16xf32, #tpu.memory_space<vmem>>, vector<128x16xf32>
    %7 = arith.truncf %6 : vector<128x16xf32> to vector<128x16xbf16>
    %c0_1 = arith.constant 0 : index
    %c0_2 = arith.constant 0 : index
    %8 = vector.load %arg16[%c0_1, %c0_2] : memref<256x16xf32, #tpu.memory_space<vmem>>, vector<256x16xf32>
    %9 = arith.truncf %8 : vector<256x16xf32> to vector<256x16xbf16>
    %c0_3 = arith.constant 0 : index
    %c0_4 = arith.constant 0 : index
    %10 = vector.load %arg17[%c0_3, %c0_4] : memref<256x16xf32, #tpu.memory_space<vmem>>, vector<256x16xf32>
    %11 = arith.truncf %10 : vector<256x16xf32> to vector<256x16xbf16>
    %12 = vector.extract_strided_slice %7 {offsets = [0, 0], sizes = [128, 8], strides = [1, 1]} : vector<128x16xbf16> to vector<128x8xbf16>
    %13 = vector.extract_strided_slice %9 {offsets = [0, 0], sizes = [256, 8], strides = [1, 1]} : vector<256x16xbf16> to vector<256x8xbf16>
    %cst = arith.constant dense<0.000000e+00> : vector<128x256xf32>
    %14 = tpu.matmul %12, %13, %cst {dimension_numbers = #tpu.dot_dimension_numbers<[1], [1], [0], [0], [0, 0, 1, 0], [], []>} : vector<128x8xbf16>, vector<256x8xbf16>, vector<128x256xf32> -> vector<128x256xf32>
    %c0_5 = arith.constant 0 : index
    %c0_6 = arith.constant 0 : index
    %c0_7 = arith.constant 0 : index
    %15 = vector.load %arg18[%c0_5, %c0_6, %c0_7] : memref<2x128x256xf32, #tpu.memory_space<vmem>>, vector<1x128x256xf32>
    %16 = vector.shape_cast %15 : vector<1x128x256xf32> to vector<128x256xf32>
    %17 = vector.shape_cast %14 : vector<128x256xf32> to vector<1x128x256xf32>
    tpu.vector_store %arg18[%c0_5, %c0_6, %c0_7], %17 {strides = array<i32>} : memref<2x128x256xf32, #tpu.memory_space<vmem>>, vector<1x128x256xf32>,
    %18 = vector.extract_strided_slice %7 {offsets = [0, 8], sizes = [128, 8], strides = [1, 1]} : vector<128x16xbf16> to vector<128x8xbf16>
    %19 = vector.extract_strided_slice %9 {offsets = [0, 8], sizes = [256, 8], strides = [1, 1]} : vector<256x16xbf16> to vector<256x8xbf16>
    %cst_8 = arith.constant dense<0.000000e+00> : vector<128x256xf32>
    %20 = tpu.matmul %18, %19, %cst_8 {dimension_numbers = #tpu.dot_dimension_numbers<[1], [1], [0], [0], [0, 0, 1, 0], [], []>} : vector<128x8xbf16>, vector<256x8xbf16>, vector<128x256xf32> -> vector<128x256xf32>
    %c1 = arith.constant 1 : index
    %c0_9 = arith.constant 0 : index
    %c0_10 = arith.constant 0 : index
    %21 = vector.load %arg18[%c1, %c0_9, %c0_10] : memref<2x128x256xf32, #tpu.memory_space<vmem>>, vector<1x128x256xf32>
    %22 = vector.shape_cast %21 : vector<1x128x256xf32> to vector<128x256xf32>
    %23 = vector.shape_cast %20 : vector<128x256xf32> to vector<1x128x256xf32>
    tpu.vector_store %arg18[%c1, %c0_9, %c0_10], %23 {strides = array<i32>} : memref<2x128x256xf32, #tpu.memory_space<vmem>>, vector<1x128x256xf32>,
    %c0_11 = arith.constant 0 : index
    %c0_12 = arith.constant 0 : index
    %c0_13 = arith.constant 0 : index
    %24 = vector.load %arg18[%c0_11, %c0_12, %c0_13] : memref<2x128x256xf32, #tpu.memory_space<vmem>>, vector<1x128x256xf32>
    %25 = vector.shape_cast %24 : vector<1x128x256xf32> to vector<128x256xf32>
    %c1_14 = arith.constant 1 : index
    %c0_15 = arith.constant 0 : index
    %c0_16 = arith.constant 0 : index
    %26 = vector.load %arg18[%c1_14, %c0_15, %c0_16] : memref<2x128x256xf32, #tpu.memory_space<vmem>>, vector<1x128x256xf32>
    %27 = vector.shape_cast %26 : vector<1x128x256xf32> to vector<128x256xf32>
    %28 = arith.maximumf %25, %27 : vector<128x256xf32>
    %cst_17 = arith.constant 0.000000e+00 : f32
    %29 = vector.broadcast %cst_17 : f32 to vector<128x256xf32>
    %c0_18 = arith.constant 0 : index
    %c0_19 = arith.constant 0 : index
    %c0_20 = arith.constant 0 : index
    %30 = vector.load %arg18[%c0_18, %c0_19, %c0_20] : memref<2x128x256xf32, #tpu.memory_space<vmem>>, vector<1x128x256xf32>
    %31 = vector.shape_cast %30 : vector<1x128x256xf32> to vector<128x256xf32>
    %32 = arith.subf %31, %28 : vector<128x256xf32>
    %33 = math.exp %32 : vector<128x256xf32>
    %c0_21 = arith.constant 0 : index
    %c0_22 = arith.constant 0 : index
    %c0_23 = arith.constant 0 : index
    %34 = vector.load %arg18[%c0_21, %c0_22, %c0_23] : memref<2x128x256xf32, #tpu.memory_space<vmem>>, vector<1x128x256xf32>
    %35 = vector.shape_cast %34 : vector<1x128x256xf32> to vector<128x256xf32>
    %36 = vector.shape_cast %33 : vector<128x256xf32> to vector<1x128x256xf32>
    tpu.vector_store %arg18[%c0_21, %c0_22, %c0_23], %36 {strides = array<i32>} : memref<2x128x256xf32, #tpu.memory_space<vmem>>, vector<1x128x256xf32>,
    %37 = arith.addf %29, %33 : vector<128x256xf32>
    %c1_24 = arith.constant 1 : index
    %c0_25 = arith.constant 0 : index
    %c0_26 = arith.constant 0 : index
    %38 = vector.load %arg18[%c1_24, %c0_25, %c0_26] : memref<2x128x256xf32, #tpu.memory_space<vmem>>, vector<1x128x256xf32>
    %39 = vector.shape_cast %38 : vector<1x128x256xf32> to vector<128x256xf32>
    %40 = arith.subf %39, %28 : vector<128x256xf32>
    %41 = math.exp %40 : vector<128x256xf32>
    %c1_27 = arith.constant 1 : index
    %c0_28 = arith.constant 0 : index
    %c0_29 = arith.constant 0 : index
    %42 = vector.load %arg18[%c1_27, %c0_28, %c0_29] : memref<2x128x256xf32, #tpu.memory_space<vmem>>, vector<1x128x256xf32>
    %43 = vector.shape_cast %42 : vector<1x128x256xf32> to vector<128x256xf32>
    %44 = vector.shape_cast %41 : vector<128x256xf32> to vector<1x128x256xf32>
    tpu.vector_store %arg18[%c1_27, %c0_28, %c0_29], %44 {strides = array<i32>} : memref<2x128x256xf32, #tpu.memory_space<vmem>>, vector<1x128x256xf32>,
    %45 = arith.addf %37, %41 : vector<128x256xf32>
    %46 = tpu.reciprocal %45 {approx = true} : vector<128x256xf32> -> vector<128x256xf32>
    %c0_30 = arith.constant 0 : index
    %c0_31 = arith.constant 0 : index
    %c0_32 = arith.constant 0 : index
    %47 = vector.load %arg18[%c0_30, %c0_31, %c0_32] : memref<2x128x256xf32, #tpu.memory_space<vmem>>, vector<1x128x256xf32>
    %48 = vector.shape_cast %47 : vector<1x128x256xf32> to vector<128x256xf32>
    %49 = arith.mulf %48, %46 : vector<128x256xf32>
    %50 = arith.truncf %49 : vector<128x256xf32> to vector<128x256xbf16>
    %51 = vector.extract_strided_slice %11 {offsets = [0, 0], sizes = [256, 8], strides = [1, 1]} : vector<256x16xbf16> to vector<256x8xbf16>
    %cst_33 = arith.constant dense<0.000000e+00> : vector<128x8xf32>
    %52 = tpu.matmul %50, %51, %cst_33 {dimension_numbers = #tpu.dot_dimension_numbers<[1], [0], [0], [1], [0, 0, 1, 1], [], []>} : vector<128x256xbf16>, vector<256x8xbf16>, vector<128x8xf32> -> vector<128x8xf32>
    %c1_34 = arith.constant 1 : index
    %c0_35 = arith.constant 0 : index
    %c0_36 = arith.constant 0 : index
    %53 = vector.load %arg18[%c1_34, %c0_35, %c0_36] : memref<2x128x256xf32, #tpu.memory_space<vmem>>, vector<1x128x256xf32>
    %54 = vector.shape_cast %53 : vector<1x128x256xf32> to vector<128x256xf32>
    %55 = arith.mulf %54, %46 : vector<128x256xf32>
    %56 = arith.truncf %55 : vector<128x256xf32> to vector<128x256xbf16>
    %57 = vector.extract_strided_slice %11 {offsets = [0, 8], sizes = [256, 8], strides = [1, 1]} : vector<256x16xbf16> to vector<256x8xbf16>
    %cst_37 = arith.constant dense<0.000000e+00> : vector<128x8xf32>
    %58 = tpu.matmul %56, %57, %cst_37 {dimension_numbers = #tpu.dot_dimension_numbers<[1], [0], [0], [1], [0, 0, 1, 1], [], []>} : vector<128x256xbf16>, vector<256x8xbf16>, vector<128x8xf32> -> vector<128x8xf32>
    %59 = tpu.concatenate %52, %58 in 1 : vector<128x8xf32>, vector<128x8xf32> -> vector<128x16xf32>
    %60 = arith.truncf %59 : vector<128x16xf32> to vector<128x16xbf16>
    %c0_38 = arith.constant 0 : index
    %c0_39 = arith.constant 0 : index
    %61 = vector.load %arg6[%c0_38, %c0_39] : memref<16x4xbf16, #tpu.memory_space<vmem>>, vector<16x4xbf16>
    %cst_40 = arith.constant dense<0.000000e+00> : vector<128x4xf32>
    %62 = tpu.matmul %60, %61, %cst_40 {dimension_numbers = #tpu.dot_dimension_numbers<[1], [0], [0], [1], [0, 0, 1, 1], [], []>} : vector<128x16xbf16>, vector<16x4xbf16>, vector<128x4xf32> -> vector<128x4xf32>
    %c0_41 = arith.constant 0 : index
    %c0_42 = arith.constant 0 : index
    %63 = vector.load %arg7[%c0_41, %c0_42] : memref<1x4xf32, #tpu.memory_space<vmem>>, vector<1x4xf32>
    %64 = vector.broadcast %63 : vector<1x4xf32> to vector<128x4xf32>
    %65 = arith.addf %62, %64 : vector<128x4xf32>
    %c0_43 = arith.constant 0 : index
    %c0_44 = arith.constant 0 : index
    %c0_45 = arith.constant 0 : index
    %66 = vector.load %arg3[%c0_43, %c0_44, %c0_45] : memref<1x128x4xf32, #tpu.memory_space<vmem>>, vector<1x128x4xf32>
    %67 = vector.shape_cast %66 : vector<1x128x4xf32> to vector<128x4xf32>
    %68 = arith.addf %67, %65 : vector<128x4xf32>
    %cst_46 = arith.constant dense<0.000000e+00> : vector<128xf32>
    %69 = vector.multi_reduction <add>, %68, %cst_46 [1] : vector<128x4xf32> to vector<128xf32>
    %70 = vector.shape_cast %69 : vector<128xf32> to vector<128x1xf32>
    %cst_47 = arith.constant 2.500000e-01 : f32
    %71 = vector.broadcast %cst_47 : f32 to vector<128x1xf32>
    %72 = arith.mulf %70, %71 : vector<128x1xf32>
    %73 = arith.mulf %68, %68 : vector<128x4xf32>
    %cst_48 = arith.constant dense<0.000000e+00> : vector<128xf32>
    %74 = vector.multi_reduction <add>, %73, %cst_48 [1] : vector<128x4xf32> to vector<128xf32>
    %75 = vector.shape_cast %74 : vector<128xf32> to vector<128x1xf32>
    %cst_49 = arith.constant 2.500000e-01 : f32
    %76 = vector.broadcast %cst_49 : f32 to vector<128x1xf32>
    %77 = arith.mulf %75, %76 : vector<128x1xf32>
    %78 = arith.mulf %72, %72 : vector<128x1xf32>
    %79 = arith.subf %77, %78 : vector<128x1xf32>
    %80 = vector.broadcast %72 : vector<128x1xf32> to vector<128x4xf32>
    %81 = arith.subf %68, %80 : vector<128x4xf32>
    %cst_50 = arith.constant 9.99999974E-6 : f32
    %82 = vector.broadcast %cst_50 : f32 to vector<128x1xf32>
    %83 = arith.addf %79, %82 : vector<128x1xf32>
    %84 = math.rsqrt %83 : vector<128x1xf32>
    %85 = vector.broadcast %84 : vector<128x1xf32> to vector<128x4xf32>
    %86 = arith.mulf %81, %85 : vector<128x4xf32>
    %c0_51 = arith.constant 0 : index
    %c0_52 = arith.constant 0 : index
    %87 = vector.load %arg8[%c0_51, %c0_52] : memref<1x4xf32, #tpu.memory_space<vmem>>, vector<1x4xf32>
    %88 = vector.broadcast %87 : vector<1x4xf32> to vector<128x4xf32>
    %89 = arith.mulf %86, %88 : vector<128x4xf32>
    %c0_53 = arith.constant 0 : index
    %c0_54 = arith.constant 0 : index
    %90 = vector.load %arg9[%c0_53, %c0_54] : memref<1x4xf32, #tpu.memory_space<vmem>>, vector<1x4xf32>
    %91 = vector.broadcast %90 : vector<1x4xf32> to vector<128x4xf32>
    %92 = arith.addf %89, %91 : vector<128x4xf32>
    %c0_55 = arith.constant 0 : index
    %c0_56 = arith.constant 0 : index
    %93 = vector.load %arg10[%c0_55, %c0_56] : memref<4x4xf32, #tpu.memory_space<vmem>>, vector<4x4xf32>
    %cst_57 = arith.constant dense<0.000000e+00> : vector<128x4xf32>
    %94 = tpu.matmul %92, %93, %cst_57 {dimension_numbers = #tpu.dot_dimension_numbers<[1], [0], [0], [1], [0, 0, 1, 1], [], []>} : vector<128x4xf32>, vector<4x4xf32>, vector<128x4xf32> -> vector<128x4xf32>
    %c0_58 = arith.constant 0 : index
    %c0_59 = arith.constant 0 : index
    %95 = vector.load %arg11[%c0_58, %c0_59] : memref<1x4xf32, #tpu.memory_space<vmem>>, vector<1x4xf32>
    %96 = vector.broadcast %95 : vector<1x4xf32> to vector<128x4xf32>
    %97 = arith.addf %94, %96 : vector<128x4xf32>
    %cst_60 = arith.constant 0.000000e+00 : f32
    %98 = vector.broadcast %cst_60 : f32 to vector<128x4xf32>
    %99 = arith.cmpf ogt, %97, %98 : vector<128x4xf32>
    %cst_61 = arith.constant 1.000000e-01 : f32
    %100 = vector.broadcast %cst_61 : f32 to vector<128x4xf32>
    %101 = arith.mulf %100, %97 : vector<128x4xf32>
    %102 = arith.select %99, %97, %101 : vector<128x4xi1>, vector<128x4xf32>
    %c0_62 = arith.constant 0 : index
    %c0_63 = arith.constant 0 : index
    %103 = vector.load %arg12[%c0_62, %c0_63] : memref<4x4xf32, #tpu.memory_space<vmem>>, vector<4x4xf32>
    %cst_64 = arith.constant dense<0.000000e+00> : vector<128x4xf32>
    %104 = tpu.matmul %102, %103, %cst_64 {dimension_numbers = #tpu.dot_dimension_numbers<[1], [0], [0], [1], [0, 0, 1, 1], [], []>} : vector<128x4xf32>, vector<4x4xf32>, vector<128x4xf32> -> vector<128x4xf32>
    %c0_65 = arith.constant 0 : index
    %c0_66 = arith.constant 0 : index
    %105 = vector.load %arg13[%c0_65, %c0_66] : memref<1x4xf32, #tpu.memory_space<vmem>>, vector<1x4xf32>
    %106 = vector.broadcast %105 : vector<1x4xf32> to vector<128x4xf32>
    %107 = arith.addf %104, %106 : vector<128x4xf32>
    %108 = arith.addf %107, %92 : vector<128x4xf32>
    %cst_67 = arith.constant dense<0.000000e+00> : vector<128xf32>
    %109 = vector.multi_reduction <add>, %108, %cst_67 [1] : vector<128x4xf32> to vector<128xf32>
    %110 = vector.shape_cast %109 : vector<128xf32> to vector<128x1xf32>
    %cst_68 = arith.constant 2.500000e-01 : f32
    %111 = vector.broadcast %cst_68 : f32 to vector<128x1xf32>
    %112 = arith.mulf %110, %111 : vector<128x1xf32>
    %113 = arith.mulf %108, %108 : vector<128x4xf32>
    %cst_69 = arith.constant dense<0.000000e+00> : vector<128xf32>
    %114 = vector.multi_reduction <add>, %113, %cst_69 [1] : vector<128x4xf32> to vector<128xf32>
    %115 = vector.shape_cast %114 : vector<128xf32> to vector<128x1xf32>
    %cst_70 = arith.constant 2.500000e-01 : f32
    %116 = vector.broadcast %cst_70 : f32 to vector<128x1xf32>
    %117 = arith.mulf %115, %116 : vector<128x1xf32>
    %118 = arith.mulf %112, %112 : vector<128x1xf32>
    %119 = arith.subf %117, %118 : vector<128x1xf32>
    %120 = vector.broadcast %112 : vector<128x1xf32> to vector<128x4xf32>
    %121 = arith.subf %108, %120 : vector<128x4xf32>
    %cst_71 = arith.constant 9.99999974E-6 : f32
    %122 = vector.broadcast %cst_71 : f32 to vector<128x1xf32>
    %123 = arith.addf %119, %122 : vector<128x1xf32>
    %124 = math.rsqrt %123 : vector<128x1xf32>
    %125 = vector.broadcast %124 : vector<128x1xf32> to vector<128x4xf32>
    %126 = arith.mulf %121, %125 : vector<128x4xf32>
    %c0_72 = arith.constant 0 : index
    %c0_73 = arith.constant 0 : index
    %127 = vector.load %arg8[%c0_72, %c0_73] : memref<1x4xf32, #tpu.memory_space<vmem>>, vector<1x4xf32>
    %128 = vector.broadcast %127 : vector<1x4xf32> to vector<128x4xf32>
    %129 = arith.mulf %126, %128 : vector<128x4xf32>
    %c0_74 = arith.constant 0 : index
    %c0_75 = arith.constant 0 : index
    %130 = vector.load %arg9[%c0_74, %c0_75] : memref<1x4xf32, #tpu.memory_space<vmem>>, vector<1x4xf32>
    %131 = vector.broadcast %130 : vector<1x4xf32> to vector<128x4xf32>
    %132 = arith.addf %129, %131 : vector<128x4xf32>
    %133 = tpu.iota {dimensions = array<i32: 0>} : vector<128x128xi32>
    %134 = tpu.iota {dimensions = array<i32: 1>} : vector<128x128xi32>
    %135 = arith.cmpi eq, %133, %134 : vector<128x128xi32>
    %136 = arith.extui %135 : vector<128x128xi1> to vector<128x128xi32>
    %137 = arith.sitofp %136 : vector<128x128xi32> to vector<128x128xf32>
    %cst_76 = arith.constant dense<0.000000e+00> : vector<4x128xf32>
    %138 = tpu.matmul %132, %137, %cst_76 {dimension_numbers = #tpu.dot_dimension_numbers<[0], [0], [1], [1], [0, 1, 1, 1], [], []>} : vector<128x4xf32>, vector<128x128xf32>, vector<4x128xf32> -> vector<4x128xf32>
    %c0_77 = arith.constant 0 : index
    %c0_78 = arith.constant 0 : index
    %c0_79 = arith.constant 0 : index
    %139 = vector.load %arg14[%c0_77, %c0_78, %c0_79] : memref<1x4x128xf32, #tpu.memory_space<vmem>>, vector<1x4x128xf32>
    %140 = vector.shape_cast %139 : vector<1x4x128xf32> to vector<4x128xf32>
    %141 = vector.shape_cast %138 : vector<4x128xf32> to vector<1x4x128xf32>
    tpu.vector_store %arg14[%c0_77, %c0_78, %c0_79], %141 {strides = array<i32>} : memref<1x4x128xf32, #tpu.memory_space<vmem>>, vector<1x4x128xf32>,
    return
  }
  func.func @transform_0(%arg0: i32, %arg1: i32) -> (i32, i32, i32) {
    %c0_i32 = arith.constant 0 : i32
    %c0_i32_0 = arith.constant 0 : i32
    %c0_i32_1 = arith.constant 0 : i32
    return %arg0, %c0_i32, %c0_i32_0 : i32, i32, i32
  }
  func.func @transform_1(%arg0: i32, %arg1: i32) -> (i32, i32, i32) {
    %c0_i32 = arith.constant 0 : i32
    %c0_i32_0 = arith.constant 0 : i32
    return %arg0, %arg1, %c0_i32 : i32, i32, i32
  }
  func.func @transform_2(%arg0: i32, %arg1: i32) -> (i32, i32) {
    %c0_i32 = arith.constant 0 : i32
    %c0_i32_0 = arith.constant 0 : i32
    %c0_i32_1 = arith.constant 0 : i32
    return %c0_i32, %c0_i32_0 : i32, i32
  }
  func.func @transform_3(%arg0: i32, %arg1: i32) -> (i32, i32) {
    %c0_i32 = arith.constant 0 : i32
    %c0_i32_0 = arith.constant 0 : i32
    %c0_i32_1 = arith.constant 0 : i32
    return %c0_i32, %c0_i32_0 : i32, i32
  }
  func.func @transform_4(%arg0: i32, %arg1: i32) -> (i32, i32) {
    %c0_i32 = arith.constant 0 : i32
    %c0_i32_0 = arith.constant 0 : i32
    %c0_i32_1 = arith.constant 0 : i32
    return %c0_i32, %c0_i32_0 : i32, i32
  }
  func.func @transform_5(%arg0: i32, %arg1: i32) -> (i32, i32) {
    %c0_i32 = arith.constant 0 : i32
    %c0_i32_0 = arith.constant 0 : i32
    %c0_i32_1 = arith.constant 0 : i32
    return %c0_i32, %c0_i32_0 : i32, i32
  }
  func.func @transform_6(%arg0: i32, %arg1: i32) -> (i32, i32) {
    %c0_i32 = arith.constant 0 : i32
    %c0_i32_0 = arith.constant 0 : i32
    %c0_i32_1 = arith.constant 0 : i32
    return %c0_i32, %c0_i32_0 : i32, i32
  }
  func.func @transform_7(%arg0: i32, %arg1: i32) -> (i32, i32) {
    %c0_i32 = arith.constant 0 : i32
    %c0_i32_0 = arith.constant 0 : i32
    %c0_i32_1 = arith.constant 0 : i32
    return %c0_i32, %c0_i32_0 : i32, i32
  }
  func.func @transform_8(%arg0: i32, %arg1: i32) -> (i32, i32) {
    %c0_i32 = arith.constant 0 : i32
    %c0_i32_0 = arith.constant 0 : i32
    %c0_i32_1 = arith.constant 0 : i32
    return %c0_i32, %c0_i32_0 : i32, i32
  }
  func.func @transform_9(%arg0: i32, %arg1: i32) -> (i32, i32) {
    %c0_i32 = arith.constant 0 : i32
    %c0_i32_0 = arith.constant 0 : i32
    %c0_i32_1 = arith.constant 0 : i32
    return %c0_i32, %c0_i32_0 : i32, i32
  }
  func.func @transform_10(%arg0: i32, %arg1: i32) -> (i32, i32) {
    %c0_i32 = arith.constant 0 : i32
    %c0_i32_0 = arith.constant 0 : i32
    %c0_i32_1 = arith.constant 0 : i32
    return %c0_i32, %c0_i32_0 : i32, i32
  }
  func.func @transform_11(%arg0: i32, %arg1: i32) -> (i32, i32) {
    %c0_i32 = arith.constant 0 : i32
    %c0_i32_0 = arith.constant 0 : i32
    %c0_i32_1 = arith.constant 0 : i32
    return %c0_i32, %c0_i32_0 : i32, i32
  }
  func.func @transform_12(%arg0: i32, %arg1: i32) -> (i32, i32, i32) {
    %c0_i32 = arith.constant 0 : i32
    %c0_i32_0 = arith.constant 0 : i32
    return %arg0, %c0_i32, %arg1 : i32, i32, i32
  }
}

</mosaic_0001>

<llo_original>
// kernel: tpu_custom_call.1
$region0: #{tpu_custom_call.1}
  #allocation0 [shape = 'u32[]', space=smem, size = 0x4, offset = 0x4, fixed_abs, tag = 'smem constant byte address 0x4 - core index']
  #allocation1 [shape = 'u32[144,128]{1,0:T(1,128)}', space=vmem, size = 0x12000, scoped, tag = 'internal scratch']
  #allocation2 [shape = 'f32[256,16]{1,0:T(8,128)}', space=vmem, size = 0x20000, scoped, tag = 'scratch operand']
  #allocation3 [shape = 'f32[256,16]{1,0:T(8,128)}', space=vmem, size = 0x20000, scoped, tag = 'scratch operand']
  #allocation4 [shape = 'f32[256,16]{1,0:T(8,128)}', space=vmem, size = 0x20000, scoped, tag = 'scratch operand']
  #allocation5 [shape = 'f32[2,128,256]{2,1,0:T(8,128)}', space=vmem, size = 0x40000, scoped, tag = 'scratch operand']
  %s0 = inlined_call_operand.vmem [shape: bf16[2,256,36], index: 0, kind: input, shape index: {}]
  %s1 = inlined_call_operand.vmem [shape: f32[2,256,4], index: 1, kind: input, shape index: {}]
  %s2 = inlined_call_operand.vmem [shape: bf16[36,48], index: 2, kind: input, shape index: {}]
  %s3 = inlined_call_operand.vmem [shape: f32[1,48], index: 3, kind: input, shape index: {}]
  %s4 = inlined_call_operand.vmem [shape: bf16[16,4], index: 4, kind: input, shape index: {}]
  %s5 = inlined_call_operand.vmem [shape: f32[1,4], index: 5, kind: input, shape index: {}]
  %s6 = inlined_call_operand.vmem [shape: f32[1,4], index: 6, kind: input, shape index: {}]
  %s7 = inlined_call_operand.vmem [shape: f32[1,4], index: 7, kind: input, shape index: {}]
  %s8 = inlined_call_operand.vmem [shape: f32[4,4], index: 8, kind: input, shape index: {}]
  %s9 = inlined_call_operand.vmem [shape: f32[1,4], index: 9, kind: input, shape index: {}]
  %s10 = inlined_call_operand.vmem [shape: f32[4,4], index: 10, kind: input, shape index: {}]
  %s11 = inlined_call_operand.vmem [shape: f32[1,4], index: 11, kind: input, shape index: {}]
  %s12 = inlined_call_operand.hbm [shape: f32[2,4,256], index: 12, kind: output, shape index: {}]
  %s13 = sld [smem:[#allocation0]]
  $region85: #{tpu_custom_call.1} parent=0
    _
  %s15 = ssub.s32 1, %s13
  %s16 = scalar_select 0, %s15, %s13
  $region1: #{tpu_custom_call.1} parent=0
    #allocation6 [shape = 'u8[4096]{0}', space=vmem, size = 0x1000, scoped, tag = 'output window, operand 0']
    #allocation7 [shape = 's32[2]{0}', space=sflag, size = 0x8, scoped, tag = 'scoped memory for tpu_custom_call.1']
    %17 = vsyncpa [#allocation7], 0
    %s18 = scalar_lea.sflag [#allocation7], 1
    %19 = vsyncpa %s18, 0
    loop: start=0, step=1, limit=6
    $region2: #{tpu_custom_call.1} parent=1 // loop_pre_header
      _
    $region3: #{tpu_custom_call.1} parent=1 // loop_header
      %s21 = sphi 0, %s25
      %p22 = scmp.ge.s32.totalorder %s21, 6
      %s28 = sphi 0, %s40
      %s29 = sphi 0, %s36
      %s30 = sphi 0, %s28
      %s31 = sphi 0, %s29
      %s32 = sphi 0, %s30
      %s33 = sphi 0, %s31
      %s43 = sphi 0, %s45
      %s46 = sphi 0, %s43
      %s47 = sphi 0, %s46
      %s63 = sphi 0, %s47
      %s71 = sphi 0, %s73
      %s74 = sphi 0, %s71
      %s75 = sphi 0, %s74
      %s91 = sphi 0, %s75
      %s95 = sphi 0, %s95
      %s97 = sphi 0, %s95
      %s98 = sphi 0, %s97
      %s112 = sphi 0, %s98
      %s116 = sphi 0, %s116
      %s118 = sphi 0, %s116
      %s119 = sphi 0, %s118
      %s133 = sphi 0, %s119
      %s137 = sphi 0, %s137
      %s139 = sphi 0, %s137
      %s140 = sphi 0, %s139
      %s154 = sphi 0, %s140
      %s158 = sphi 0, %s158
      %s160 = sphi 0, %s158
      %s161 = sphi 0, %s160
      %s175 = sphi 0, %s161
      %s179 = sphi 0, %s179
      %s181 = sphi 0, %s179
      %s182 = sphi 0, %s181
      %s196 = sphi 0, %s182
      %s200 = sphi 0, %s200
      %s202 = sphi 0, %s200
      %s203 = sphi 0, %s202
      %s217 = sphi 0, %s203
      %s221 = sphi 0, %s221
      %s223 = sphi 0, %s221
      %s224 = sphi 0, %s223
      %s238 = sphi 0, %s224
      %s242 = sphi 0, %s242
      %s244 = sphi 0, %s242
      %s245 = sphi 0, %s244
      %s259 = sphi 0, %s245
      %s263 = sphi 0, %s263
      %s265 = sphi 0, %s263
      %s266 = sphi 0, %s265
      %s280 = sphi 0, %s266
      %s284 = sphi 0, %s284
      %s286 = sphi 0, %s284
      %s287 = sphi 0, %s286
      %s301 = sphi 0, %s287
      %s309 = sphi 0, %s311
      %s312 = sphi 0, %s309
      %s313 = sphi 0, %s312
      %s329 = sphi 0, %s313
    $region4: #{tpu_custom_call.1} parent=1 // loop_header_branch
      %24 = sbr.rel (%p22) target = $region8
    $region5: #{tpu_custom_call.1} parent=1 // loop_body
      %s26 = ssub.s32 %s21, 1
      %s27 = ssub.s32 %s21, 2
      %s34 = sadd.s32 1, %s29
      %p35 = scmp.ge.s32.totalorder %s34, 2
      %s36 = scalar_select %p35, 0, %s34
      %s37 = sadd.s32 1, %s28
      %s38 = scalar_select %p35, %s37, %s28
      %p39 = scmp.ge.s32.totalorder %s38, 2
      %s40 = scalar_select %p39, 0, %s38
      %s41 = ssub.s32 %s28, %s40
      %p42 = scmp.eq.s32.totalorder %s41, 0
      %s44 = sadd.s32 %s43, 1
      %s45 = scalar_select %p42, %s43, %s44
      %p48 = pneg %p42
      %p49 = scmp.eq.s32.totalorder %s21, 3
      %p50 = por %p48, %p49
      %p51 = scmp.ne.s32.totalorder %s43, %s46
      %p52 = scmp.eq.s32.totalorder %s21, 0
      %p53 = por %p51, %p52
      %p54 = scmp.ne.s32.totalorder %s43, %s46
      %p55 = scmp.eq.s32.totalorder %s26, 3
      %p56 = por %p54, %p55
      %p57 = scmp.ne.s32.totalorder %s46, %s47
      %p58 = scmp.eq.s32.totalorder %s26, 0
      %p59 = por %p57, %p58
      %p60 = scmp.ne.s32.totalorder %s46, %s47
      %p61 = scmp.eq.s32.totalorder %s27, 3
      %p62 = por %p60, %p61
      %p64 = scmp.ne.s32.totalorder %s47, %s63
      %p65 = scmp.eq.s32.totalorder %s27, 0
      %p66 = por %p64, %p65
      %s67 = ssub.s32 %s28, %s40
      %s68 = ssub.s32 %s29, %s36
      %s69 = sor.u32 %s67, %s68
      %p70 = scmp.eq.s32.totalorder %s69, 0
      %s72 = sadd.s32 %s71, 1
      %s73 = scalar_select %p70, %s71, %s72
      %p76 = pneg %p70
      %p77 = scmp.eq.s32.totalorder %s21, 3
      %p78 = por %p76, %p77
      %p79 = scmp.ne.s32.totalorder %s71, %s74
      %p80 = scmp.eq.s32.totalorder %s21, 0
      %p81 = por %p79, %p80
      %p82 = scmp.ne.s32.totalorder %s71, %s74
      %p83 = scmp.eq.s32.totalorder %s26, 3
      %p84 = por %p82, %p83
      %p85 = scmp.ne.s32.totalorder %s74, %s75
      %p86 = scmp.eq.s32.totalorder %s26, 0
      %p87 = por %p85, %p86
      %p88 = scmp.ne.s32.totalorder %s74, %s75
      %p89 = scmp.eq.s32.totalorder %s27, 3
      %p90 = por %p88, %p89
      %p92 = scmp.ne.s32.totalorder %s75, %s91
      %p93 = scmp.eq.s32.totalorder %s27, 0
      %p94 = por %p92, %p93
      %s96 = sadd.s32 %s95, 1
      %p99 = scmp.eq.s32.totalorder %s21, 3
      %p100 = scmp.ne.s32.totalorder %s95, %s97
      %p101 = scmp.eq.s32.totalorder %s21, 0
      %p102 = por %p100, %p101
      %p103 = scmp.ne.s32.totalorder %s95, %s97
      %p104 = scmp.eq.s32.totalorder %s26, 3
      %p105 = por %p103, %p104
      %p106 = scmp.ne.s32.totalorder %s97, %s98
      %p107 = scmp.eq.s32.totalorder %s26, 0
      %p108 = por %p106, %p107
      %p109 = scmp.ne.s32.totalorder %s97, %s98
      %p110 = scmp.eq.s32.totalorder %s27, 3
      %p111 = por %p109, %p110
      %p113 = scmp.ne.s32.totalorder %s98, %s112
      %p114 = scmp.eq.s32.totalorder %s27, 0
      %p115 = por %p113, %p114
      %s117 = sadd.s32 %s116, 1
      %p120 = scmp.eq.s32.totalorder %s21, 3
      %p121 = scmp.ne.s32.totalorder %s116, %s118
      %p122 = scmp.eq.s32.totalorder %s21, 0
      %p123 = por %p121, %p122
      %p124 = scmp.ne.s32.totalorder %s116, %s118
      %p125 = scmp.eq.s32.totalorder %s26, 3
      %p126 = por %p124, %p125
      %p127 = scmp.ne.s32.totalorder %s118, %s119
      %p128 = scmp.eq.s32.totalorder %s26, 0
      %p129 = por %p127, %p128
      %p130 = scmp.ne.s32.totalorder %s118, %s119
      %p131 = scmp.eq.s32.totalorder %s27, 3
      %p132 = por %p130, %p131
      %p134 = scmp.ne.s32.totalorder %s119, %s133
      %p135 = scmp.eq.s32.totalorder %s27, 0
      %p136 = por %p134, %p135
      %s138 = sadd.s32 %s137, 1
      %p141 = scmp.eq.s32.totalorder %s21, 3
      %p142 = scmp.ne.s32.totalorder %s137, %s139
      %p143 = scmp.eq.s32.totalorder %s21, 0
      %p144 = por %p142, %p143
      %p145 = scmp.ne.s32.totalorder %s137, %s139
      %p146 = scmp.eq.s32.totalorder %s26, 3
      %p147 = por %p145, %p146
      %p148 = scmp.ne.s32.totalorder %s139, %s140
      %p149 = scmp.eq.s32.totalorder %s26, 0
      %p150 = por %p148, %p149
      %p151 = scmp.ne.s32.totalorder %s139, %s140
      %p152 = scmp.eq.s32.totalorder %s27, 3
      %p153 = por %p151, %p152
      %p155 = scmp.ne.s32.totalorder %s140, %s154
      %p156 = scmp.eq.s32.totalorder %s27, 0
      %p157 = por %p155, %p156
      %s159 = sadd.s32 %s158, 1
      %p162 = scmp.eq.s32.totalorder %s21, 3
      %p163 = scmp.ne.s32.totalorder %s158, %s160
      %p164 = scmp.eq.s32.totalorder %s21, 0
      %p165 = por %p163, %p164
      %p166 = scmp.ne.s32.totalorder %s158, %s160
      %p167 = scmp.eq.s32.totalorder %s26, 3
      %p168 = por %p166, %p167
      %p169 = scmp.ne.s32.totalorder %s160, %s161
      %p170 = scmp.eq.s32.totalorder %s26, 0
      %p171 = por %p169, %p170
      %p172 = scmp.ne.s32.totalorder %s160, %s161
      %p173 = scmp.eq.s32.totalorder %s27, 3
      %p174 = por %p172, %p173
      %p176 = scmp.ne.s32.totalorder %s161, %s175
      %p177 = scmp.eq.s32.totalorder %s27, 0
      %p178 = por %p176, %p177
      %s180 = sadd.s32 %s179, 1
      %p183 = scmp.eq.s32.totalorder %s21, 3
      %p184 = scmp.ne.s32.totalorder %s179, %s181
      %p185 = scmp.eq.s32.totalorder %s21, 0
      %p186 = por %p184, %p185
      %p187 = scmp.ne.s32.totalorder %s179, %s181
      %p188 = scmp.eq.s32.totalorder %s26, 3
      %p189 = por %p187, %p188
      %p190 = scmp.ne.s32.totalorder %s181, %s182
      %p191 = scmp.eq.s32.totalorder %s26, 0
      %p192 = por %p190, %p191
      %p193 = scmp.ne.s32.totalorder %s181, %s182
      %p194 = scmp.eq.s32.totalorder %s27, 3
      %p195 = por %p193, %p194
      %p197 = scmp.ne.s32.totalorder %s182, %s196
      %p198 = scmp.eq.s32.totalorder %s27, 0
      %p199 = por %p197, %p198
      %s201 = sadd.s32 %s200, 1
      %p204 = scmp.eq.s32.totalorder %s21, 3
      %p205 = scmp.ne.s32.totalorder %s200, %s202
      %p206 = scmp.eq.s32.totalorder %s21, 0
      %p207 = por %p205, %p206
      %p208 = scmp.ne.s32.totalorder %s200, %s202
      %p209 = scmp.eq.s32.totalorder %s26, 3
      %p210 = por %p208, %p209
      %p211 = scmp.ne.s32.totalorder %s202, %s203
      %p212 = scmp.eq.s32.totalorder %s26, 0
      %p213 = por %p211, %p212
      %p214 = scmp.ne.s32.totalorder %s202, %s203
      %p215 = scmp.eq.s32.totalorder %s27, 3
      %p216 = por %p214, %p215
      %p218 = scmp.ne.s32.totalorder %s203, %s217
      %p219 = scmp.eq.s32.totalorder %s27, 0
      %p220 = por %p218, %p219
      %s222 = sadd.s32 %s221, 1
      %p225 = scmp.eq.s32.totalorder %s21, 3
      %p226 = scmp.ne.s32.totalorder %s221, %s223
      %p227 = scmp.eq.s32.totalorder %s21, 0
      %p228 = por %p226, %p227
      %p229 = scmp.ne.s32.totalorder %s221, %s223
      %p230 = scmp.eq.s32.totalorder %s26, 3
      %p231 = por %p229, %p230
      %p232 = scmp.ne.s32.totalorder %s223, %s224
      %p233 = scmp.eq.s32.totalorder %s26, 0
      %p234 = por %p232, %p233
      %p235 = scmp.ne.s32.totalorder %s223, %s224
      %p236 = scmp.eq.s32.totalorder %s27, 3
      %p237 = por %p235, %p236
      %p239 = scmp.ne.s32.totalorder %s224, %s238
      %p240 = scmp.eq.s32.totalorder %s27, 0
      %p241 = por %p239, %p240
      %s243 = sadd.s32 %s242, 1
      %p246 = scmp.eq.s32.totalorder %s21, 3
      %p247 = scmp.ne.s32.totalorder %s242, %s244
      %p248 = scmp.eq.s32.totalorder %s21, 0
      %p249 = por %p247, %p248
      %p250 = scmp.ne.s32.totalorder %s242, %s244
      %p251 = scmp.eq.s32.totalorder %s26, 3
      %p252 = por %p250, %p251
      %p253 = scmp.ne.s32.totalorder %s244, %s245
      %p254 = scmp.eq.s32.totalorder %s26, 0
      %p255 = por %p253, %p254
      %p256 = scmp.ne.s32.totalorder %s244, %s245
      %p257 = scmp.eq.s32.totalorder %s27, 3
      %p258 = por %p256, %p257
      %p260 = scmp.ne.s32.totalorder %s245, %s259
      %p261 = scmp.eq.s32.totalorder %s27, 0
      %p262 = por %p260, %p261
      %s264 = sadd.s32 %s263, 1
      %p267 = scmp.eq.s32.totalorder %s21, 3
      %p268 = scmp.ne.s32.totalorder %s263, %s265
      %p269 = scmp.eq.s32.totalorder %s21, 0
      %p270 = por %p268, %p269
      %p271 = scmp.ne.s32.totalorder %s263, %s265
      %p272 = scmp.eq.s32.totalorder %s26, 3
      %p273 = por %p271, %p272
      %p274 = scmp.ne.s32.totalorder %s265, %s266
      %p275 = scmp.eq.s32.totalorder %s26, 0
      %p276 = por %p274, %p275
      %p277 = scmp.ne.s32.totalorder %s265, %s266
      %p278 = scmp.eq.s32.totalorder %s27, 3
      %p279 = por %p277, %p278
      %p281 = scmp.ne.s32.totalorder %s266, %s280
      %p282 = scmp.eq.s32.totalorder %s27, 0
      %p283 = por %p281, %p282
      %s285 = sadd.s32 %s284, 1
      %p288 = scmp.eq.s32.totalorder %s21, 3
      %p289 = scmp.ne.s32.totalorder %s284, %s286
      %p290 = scmp.eq.s32.totalorder %s21, 0
      %p291 = por %p289, %p290
      %p292 = scmp.ne.s32.totalorder %s284, %s286
      %p293 = scmp.eq.s32.totalorder %s26, 3
      %p294 = por %p292, %p293
      %p295 = scmp.ne.s32.totalorder %s286, %s287
      %p296 = scmp.eq.s32.totalorder %s26, 0
      %p297 = por %p295, %p296
      %p298 = scmp.ne.s32.totalorder %s286, %s287
      %p299 = scmp.eq.s32.totalorder %s27, 3
      %p300 = por %p298, %p299
      %p302 = scmp.ne.s32.totalorder %s287, %s301
      %p303 = scmp.eq.s32.totalorder %s27, 0
      %p304 = por %p302, %p303
      %s305 = ssub.s32 %s28, %s40
      %s306 = ssub.s32 %s29, %s36
      %s307 = sor.u32 %s305, %s306
      %p308 = scmp.eq.s32.totalorder %s307, 0
      %s310 = sadd.s32 %s309, 1
      %s311 = scalar_select %p308, %s309, %s310
      %p314 = pneg %p308
      %p315 = scmp.eq.s32.totalorder %s21, 3
      %p316 = por %p314, %p315
      %p317 = scmp.ne.s32.totalorder %s309, %s312
      %p318 = scmp.eq.s32.totalorder %s21, 0
      %p319 = por %p317, %p318
      %p320 = scmp.ne.s32.totalorder %s309, %s312
      %p321 = scmp.eq.s32.totalorder %s26, 3
      %p322 = por %p320, %p321
      %p323 = scmp.ne.s32.totalorder %s312, %s313
      %p324 = scmp.eq.s32.totalorder %s26, 0
      %p325 = por %p323, %p324
      %p326 = scmp.ne.s32.totalorder %s312, %s313
      %p327 = scmp.eq.s32.totalorder %s27, 3
      %p328 = por %p326, %p327
      %p330 = scmp.ne.s32.totalorder %s313, %s329
      %p331 = scmp.eq.s32.totalorder %s27, 0
      %p332 = por %p330, %p331
      %p333 = scmp.le.s32.totalorder 1, %s21
      %p334 = scmp.lt.s32.totalorder %s21, 5
      %p335 = pnand %p333, %p334
      %p336 = pneg %p335
      // Predicated region
      $region9: #{tpu_custom_call.1} parent=5 // pred_check
        _
      $region10: #{tpu_custom_call.1} parent=5 // pred_check_branch
        %338 = sbr.rel (%p335) target = $region12
      $region11: #{tpu_custom_call.1} parent=5 // pred_region
        %s339 = ssub.s32 %s21, 1
        // Predicated region
        $region13: #{tpu_custom_call.1} parent=11 // pred_check
          %p340 = pneg %p108
        $region14: #{tpu_custom_call.1} parent=11 // pred_check_branch
          %342 = sbr.rel (%p340) target = $region16
        $region15: #{tpu_custom_call.1} parent=11 // pred_region
          _
        $region16: #{tpu_custom_call.1} parent=11 // pred_fallthru
          _
        // Predicated region
        $region17: #{tpu_custom_call.1} parent=11 // pred_check
          %p343 = pneg %p129
        $region18: #{tpu_custom_call.1} parent=11 // pred_check_branch
          %345 = sbr.rel (%p343) target = $region20
        $region19: #{tpu_custom_call.1} parent=11 // pred_region
          _
        $region20: #{tpu_custom_call.1} parent=11 // pred_fallthru
          _
        // Predicated region
        $region21: #{tpu_custom_call.1} parent=11 // pred_check
          %p346 = pneg %p150
        $region22: #{tpu_custom_call.1} parent=11 // pred_check_branch
          %348 = sbr.rel (%p346) target = $region24
        $region23: #{tpu_custom_call.1} parent=11 // pred_region
          _
        $region24: #{tpu_custom_call.1} parent=11 // pred_fallthru
          _
        // Predicated region
        $region25: #{tpu_custom_call.1} parent=11 // pred_check
          %p349 = pneg %p171
        $region26: #{tpu_custom_call.1} parent=11 // pred_check_branch
          %351 = sbr.rel (%p349) target = $region28
        $region27: #{tpu_custom_call.1} parent=11 // pred_region
          _
        $region28: #{tpu_custom_call.1} parent=11 // pred_fallthru
          _
        // Predicated region
        $region29: #{tpu_custom_call.1} parent=11 // pred_check
          %p352 = pneg %p192
        $region30: #{tpu_custom_call.1} parent=11 // pred_check_branch
          %354 = sbr.rel (%p352) target = $region32
        $region31: #{tpu_custom_call.1} parent=11 // pred_region
          _
        $region32: #{tpu_custom_call.1} parent=11 // pred_fallthru
          _
        // Predicated region
        $region33: #{tpu_custom_call.1} parent=11 // pred_check
          %p355 = pneg %p213
        $region34: #{tpu_custom_call.1} parent=11 // pred_check_branch
          %357 = sbr.rel (%p355) target = $region36
        $region35: #{tpu_custom_call.1} parent=11 // pred_region
          _
        $region36: #{tpu_custom_call.1} parent=11 // pred_fallthru
          _
        // Predicated region
        $region37: #{tpu_custom_call.1} parent=11 // pred_check
          %p358 = pneg %p234
        $region38: #{tpu_custom_call.1} parent=11 // pred_check_branch
          %360 = sbr.rel (%p358) target = $region40
        $region39: #{tpu_custom_call.1} parent=11 // pred_region
          _
        $region40: #{tpu_custom_call.1} parent=11 // pred_fallthru
          _
        // Predicated region
        $region41: #{tpu_custom_call.1} parent=11 // pred_check
          %p361 = pneg %p255
        $region42: #{tpu_custom_call.1} parent=11 // pred_check_branch
          %363 = sbr.rel (%p361) target = $region44
        $region43: #{tpu_custom_call.1} parent=11 // pred_region
          _
        $region44: #{tpu_custom_call.1} parent=11 // pred_fallthru
          _
        // Predicated region
        $region45: #{tpu_custom_call.1} parent=11 // pred_check
          %p364 = pneg %p276
        $region46: #{tpu_custom_call.1} parent=11 // pred_check_branch
          %366 = sbr.rel (%p364) target = $region48
        $region47: #{tpu_custom_call.1} parent=11 // pred_region
          _
        $region48: #{tpu_custom_call.1} parent=11 // pred_fallthru
          _
        // Predicated region
        $region49: #{tpu_custom_call.1} parent=11 // pred_check
          %p367 = pneg %p297
        $region50: #{tpu_custom_call.1} parent=11 // pred_check_branch
          %369 = sbr.rel (%p367) target = $region52
        $region51: #{tpu_custom_call.1} parent=11 // pred_region
          _
        $region52: #{tpu_custom_call.1} parent=11 // pred_fallthru
          _
      $region12: #{tpu_custom_call.1} parent=5 // pred_fallthru
        _
      %p370 = scmp.lt.s32.totalorder %s21, 4
      // Predicated region
      $region53: #{tpu_custom_call.1} parent=5 // pred_check
        %p371 = pneg %p370
      $region54: #{tpu_custom_call.1} parent=5 // pred_check_branch
        %373 = sbr.rel (%p371) target = $region56
      $region55: #{tpu_custom_call.1} parent=5 // pred_region
        // Predicated region
        $region57: #{tpu_custom_call.1} parent=55 // pred_check
          %p374 = pneg %p53
        $region58: #{tpu_custom_call.1} parent=55 // pred_check_branch
          %376 = sbr.rel (%p374) target = $region60
        $region59: #{tpu_custom_call.1} parent=55 // pred_region
          %p377 = scmp.lt.s32.totalorder %s28, 1
          %s378 = scalar_select %p377, %s28, 1
          %s379 = smul.addr %s378, 32
          %s380 = smul.addr %s379, 4
          %s381 = scalar_lea.vmem %s0, %s380
        $region60: #{tpu_custom_call.1} parent=55 // pred_fallthru
          _
        // Predicated region
        $region61: #{tpu_custom_call.1} parent=55 // pred_check
          %p382 = pneg %p81
        $region62: #{tpu_custom_call.1} parent=55 // pred_check_branch
          %384 = sbr.rel (%p382) target = $region64
        $region63: #{tpu_custom_call.1} parent=55 // pred_region
          %s385 = smul.u32 16, %s29
          %p386 = scmp.lt.s32.totalorder %s28, 1
          %s387 = scalar_select %p386, %s28, 1
          %p388 = scmp.lt.s32.totalorder %s385, 31
          %s389 = scalar_select %p388, %s385, 31
          %s390 = smul.addr %s387, 32
          %s391 = sadd.s32 %s389, %s390
          %s392 = smul.addr %s391, 8
          %s393 = scalar_lea.vmem %s1, %s392
          %s394 = smul.u32 16, %s29
        $region64: #{tpu_custom_call.1} parent=55 // pred_fallthru
          _
      $region56: #{tpu_custom_call.1} parent=5 // pred_fallthru
        _
      %p395 = scmp.le.s32.totalorder 1, %s21
      %p396 = scmp.lt.s32.totalorder %s21, 5
      %p397 = pnand %p395, %p396
      %p398 = pneg %p397
      // Predicated region
      $region65: #{tpu_custom_call.1} parent=5 // pred_check
        _
      $region66: #{tpu_custom_call.1} parent=5 // pred_check_branch
        %400 = sbr.rel (%p397) target = $region68
      $region67: #{tpu_custom_call.1} parent=5 // pred_region
        %s401 = ssub.s32 %s21, 1
        %p402 = scmp.lt.s32.totalorder %s30, 1
        %s403 = scalar_select %p402, %s30, 1
        %s404 = smul.addr %s403, 32
        %s405 = smul.addr %s404, 4
        %s406 = scalar_lea.vmem %s0, %s405
        %p407 = pneg %p59
        %p408 = pneg %p56
        %s409 = smul.u32 16, %s31
        %p410 = scmp.lt.s32.totalorder %s30, 1
        %s411 = scalar_select %p410, %s30, 1
        %p412 = scmp.lt.s32.totalorder %s409, 31
        %s413 = scalar_select %p412, %s409, 31
        %s414 = smul.addr %s411, 32
        %s415 = sadd.s32 %s413, %s414
        %s416 = smul.addr %s415, 8
        %s417 = scalar_lea.vmem %s1, %s416
        %p418 = pneg %p87
        %p419 = pneg %p84
        %p420 = pneg %p108
        %p421 = pneg %p105
        %p422 = pneg %p129
        %p423 = pneg %p126
        %p424 = pneg %p150
        %p425 = pneg %p147
        %p426 = pneg %p171
        %p427 = pneg %p168
        %p428 = pneg %p192
        %p429 = pneg %p189
        %p430 = pneg %p213
        %p431 = pneg %p210
        %p432 = pneg %p234
        %p433 = pneg %p231
        %p434 = pneg %p255
        %p435 = pneg %p252
        %p436 = pneg %p276
        %p437 = pneg %p273
        %p438 = pneg %p297
        %p439 = pneg %p294
        %p440 = pneg %p325
        %p441 = pneg %p322
        %s442 = sand.u32 %s312, 1
        %s443 = scalar_lea.sflag [#allocation7], %s442
        %s444 = sand.u32 %s312, 1
        %s445 = smul.addr %s444, 4
        %s446 = scalar_lea.vmem [#allocation6], %s445
        %p447 = scmp.lt.s32.totalorder %s30, 1
        %s448 = scalar_select %p447, %s30, 1
        %s449 = smul.addr %s448, 32
        %s450 = smul.addr %s449, 4
        %s451 = scalar_lea.vmem %s0, %s450
        %s452 = smul.u32 16, %s31
        %p453 = scmp.lt.s32.totalorder %s30, 1
        %s454 = scalar_select %p453, %s30, 1
        %p455 = scmp.lt.s32.totalorder %s452, 31
        %s456 = scalar_select %p455, %s452, 31
        %s457 = smul.addr %s454, 32
        %s458 = sadd.s32 %s456, %s457
        %s459 = smul.addr %s458, 8
        %s460 = scalar_lea.vmem %s1, %s459
        %s461 = smul.u32 16, %s31
        %p463 = scmp.eq.s32.totalorder %s31, 0
        // Predicated region
        $region69: #{tpu_custom_call.1} parent=67 // pred_check
          %p464 = pneg %p463
        $region70: #{tpu_custom_call.1} parent=67 // pred_check_branch
          %466 = sbr.rel (%p464) target = $region72
        $region71: #{tpu_custom_call.1} parent=67 // pred_region
          %v467 = vld [vmem:[%s451] sm:$0xf]
          %v468 = vld [vmem:[%s451 + $0x4] sm:$0xf]
          %v469 = vld [vmem:[%s451 + $0x8] sm:$0xf]
          %v470 = vld [vmem:[%s451 + $0xc] sm:$0xf]
          %v471 = vld [vmem:[%s451 + $0x10] sm:$0xf]
          %v472 = vld [vmem:[%s451 + $0x14] sm:$0xf]
          %v473 = vld [vmem:[%s451 + $0x18] sm:$0xf]
          %v474 = vld [vmem:[%s451 + $0x1c] sm:$0xf]
          %v475 = vld [vmem:[%s451 + $0x20] sm:$0xf]
          %v476 = vld [vmem:[%s451 + $0x24] sm:$0xf]
          %v477 = vld [vmem:[%s451 + $0x28] sm:$0xf]
          %v478 = vld [vmem:[%s451 + $0x2c] sm:$0xf]
          %v479 = vld [vmem:[%s451 + $0x30] sm:$0xf]
          %v480 = vld [vmem:[%s451 + $0x34] sm:$0xf]
          %v481 = vld [vmem:[%s451 + $0x38] sm:$0xf]
          %v482 = vld [vmem:[%s451 + $0x3c] sm:$0xf]
          %v483 = vld [vmem:[%s451 + $0x40] sm:$0xf]
          %v484 = vld [vmem:[%s451 + $0x44] sm:$0xf]
          %v485 = vld [vmem:[%s451 + $0x48] sm:$0xf]
          %v486 = vld [vmem:[%s451 + $0x4c] sm:$0xf]
          %v487 = vld [vmem:[%s451 + $0x50] sm:$0xf]
          %v488 = vld [vmem:[%s451 + $0x54] sm:$0xf]
          %v489 = vld [vmem:[%s451 + $0x58] sm:$0xf]
          %v490 = vld [vmem:[%s451 + $0x5c] sm:$0xf]
          %v491 = vld [vmem:[%s451 + $0x60] sm:$0xf]
          %v492 = vld [vmem:[%s451 + $0x64] sm:$0xf]
          %v493 = vld [vmem:[%s451 + $0x68] sm:$0xf]
          %v494 = vld [vmem:[%s451 + $0x6c] sm:$0xf]
          %v495 = vld [vmem:[%s451 + $0x70] sm:$0xf]
          %v496 = vld [vmem:[%s451 + $0x74] sm:$0xf]
          %v497 = vld [vmem:[%s451 + $0x78] sm:$0xf]
          %v498 = vld [vmem:[%s451 + $0x7c] sm:$0xf]
          %v499 = vld [vmem:[%s2] sm:$0xf]
          %v500 = vld [vmem:[%s2 + $0x4] sm:$0xf]
          %v501 = vld [vmem:[%s2 + $0x8] sm:$0xf]
          %v502 = vld [vmem:[%s2 + $0xc] sm:$0xf]
          %v503 = vld [vmem:[%s2 + $0x10] sm:$0x3]
          %v504 = vld [vmem:[%s3] sm:$0x1]
          %v506 = vlaneseq
          %v507 = vshrl.u32 %v506, 7
          %v508 = vsub.s32 0, %v507
          %v509 = vrot.slane %v504, %v508
          %v543 = vunpack.c.l.b16 %v467
          %v544 = vunpack.c.l.b16 %v468
          %v545 = vunpack.c.l.b16 %v469
          %v546 = vunpack.c.l.b16 %v470
          %v547 = vunpack.c.l.b16 %v471
          %v548 = vunpack.c.l.b16 %v472
          %v549 = vunpack.c.l.b16 %v473
          %v550 = vunpack.c.l.b16 %v474
          %v551 = vunpack.c.l.b16 %v475
          %v552 = vunpack.c.l.b16 %v476
          %v553 = vunpack.c.l.b16 %v477
          %v554 = vunpack.c.l.b16 %v478
          %v555 = vunpack.c.l.b16 %v479
          %v556 = vunpack.c.l.b16 %v480
          %v557 = vunpack.c.l.b16 %v481
          %v558 = vunpack.c.l.b16 %v482
          %v559 = vunpack.c.l.b16 %v483
          %v560 = vunpack.c.l.b16 %v484
          %v561 = vunpack.c.l.b16 %v485
          %v562 = vunpack.c.l.b16 %v486
          %v563 = vunpack.c.l.b16 %v487
          %v564 = vunpack.c.l.b16 %v488
          %v565 = vunpack.c.l.b16 %v489
          %v566 = vunpack.c.l.b16 %v490
          %v567 = vunpack.c.l.b16 %v491
          %v568 = vunpack.c.l.b16 %v492
          %v569 = vunpack.c.l.b16 %v493
          %v570 = vunpack.c.l.b16 %v494
          %v571 = vunpack.c.l.b16 %v495
          %v572 = vunpack.c.l.b16 %v496
          %v573 = vunpack.c.l.b16 %v497
          %v574 = vunpack.c.l.b16 %v498
          %v575 = vpack.c.b16 %v544, %v543
          %v576 = vpack.c.b16 %v546, %v545
          %v577 = vpack.c.b16 %v548, %v547
          %v578 = vpack.c.b16 %v550, %v549
          %v579 = vpack.c.b16 %v552, %v551
          %v580 = vpack.c.b16 %v554, %v553
          %v581 = vpack.c.b16 %v556, %v555
          %v582 = vpack.c.b16 %v558, %v557
          %v583 = vpack.c.b16 %v560, %v559
          %v584 = vpack.c.b16 %v562, %v561
          %v585 = vpack.c.b16 %v564, %v563
          %v586 = vpack.c.b16 %v566, %v565
          %v587 = vpack.c.b16 %v568, %v567
          %v588 = vpack.c.b16 %v570, %v569
          %v589 = vpack.c.b16 %v572, %v571
          %v590 = vpack.c.b16 %v574, %v573
          %v596 = vunpack.c.l.b16 %v499
          %v597 = vunpack.c.l.b16 %v500
          %v598 = vunpack.c.l.b16 %v501
          %v599 = vunpack.c.l.b16 %v502
          %v600 = vunpack.c.l.b16 %v503
          %v601 = vpack.c.b16 %v597, %v596
          %v602 = vpack.c.b16 %v599, %v598
          %v603 = vpack.c.b16 %v600, %v600
          %vm606 = vcmask 293888
          %v608 = vsel %vm606, %v575, 0
          %v611 = vsel %vm606, %v576, 0
          %v614 = vsel %vm606, %v577, 0
          %v617 = vsel %vm606, %v578, 0
          %v620 = vsel %vm606, %v579, 0
          %v623 = vsel %vm606, %v580, 0
          %v626 = vsel %vm606, %v581, 0
          %v629 = vsel %vm606, %v582, 0
          %v632 = vsel %vm606, %v583, 0
          %v635 = vsel %vm606, %v584, 0
          %v638 = vsel %vm606, %v585, 0
          %v641 = vsel %vm606, %v586, 0
          %v644 = vsel %vm606, %v587, 0
          %v647 = vsel %vm606, %v588, 0
          %v650 = vsel %vm606, %v589, 0
          %v653 = vsel %vm606, %v590, 0
          %vm655 = vcmask 1041408
          %v657 = vsel %vm655, %v603, 0
          %659 = vmatprep.subr.bf16.mxu0 0
          %660 = vmatpush1.bf16.msra.mxu0 %v601
          %661 = vmatprep.subr.bf16.mxu0 0
          %662 = vmatpush1.bf16.msra.mxu0 %v602
          %663 = vmatprep.subr.bf16.mxu0 0
          %664 = vmatpush1.bf16.msra.mxu0 %v657
          %665 = vmatprep.subr.bf16.mxu0 0
          %666 = vmatpush1.bf16.msra.mxu0 0
          %667 = vmatprep.subr.bf16.mxu0 0
          %668 = vmatpush1.bf16.msra.mxu0 0
          %669 = vmatprep.subr.bf16.mxu0 0
          %670 = vmatpush1.bf16.msra.mxu0 0
          %671 = vmatprep.subr.bf16.mxu0 0
          %672 = vmatpush1.bf16.msra.mxu0 0
          %673 = vmatprep.subr.bf16.mxu0 0
          %674 = vmatpush1.bf16.msra.mxu0 0
          %675 = vmatprep.subr.bf16.mxu0 0
          %676 = vmatpush1.bf16.msra.mxu0 0
          %677 = vmatprep.subr.bf16.mxu0 0
          %678 = vmatpush1.bf16.msra.mxu0 0
          %679 = vmatprep.subr.bf16.mxu0 0
          %680 = vmatpush1.bf16.msra.mxu0 0
          %681 = vmatprep.subr.bf16.mxu0 0
          %682 = vmatpush1.bf16.msra.mxu0 0
          %683 = vmatprep.subr.bf16.mxu0 0
          %684 = vmatpush1.bf16.msra.mxu0 0
          %685 = vmatprep.subr.bf16.mxu0 0
          %686 = vmatpush1.bf16.msra.mxu0 0
          %687 = vmatprep.subr.bf16.mxu0 0
          %688 = vmatpush1.bf16.msra.mxu0 0
          %689 = vmatprep.subr.bf16.mxu0 0
          %690 = vmatpush1.bf16.msra.mxu0 0
          %691 = vmatprep.mubr.bf16.mxu0 0
          %692 = vmatmul.mubr.bf16.gmra.mrb[0].mxu0 %v608
          %v693 = vpop.f32.mrb[0].mxu0
          %v694 = vadd.f32 %v509, %v693
          %v695 = vpop.f32.mrb[0].mxu0
          %v696 = vpop.f32.mrb[0].mxu0
          %v697 = vadd.f32 %v509, %v696
          %v698 = vpop.f32.mrb[0].mxu0
          %699 = vmatprep.mubr.bf16.mxu0 0
          %700 = vmatmul.mubr.bf16.gmra.mrb[0].mxu0 %v611
          %v701 = vpop.f32.mrb[0].mxu0
          %v702 = vadd.f32 %v509, %v701
          %v703 = vpop.f32.mrb[0].mxu0
          %v704 = vpop.f32.mrb[0].mxu0
          %v705 = vadd.f32 %v509, %v704
          %v706 = vpop.f32.mrb[0].mxu0
          %707 = vmatprep.mubr.bf16.mxu0 0
          %708 = vmatmul.mubr.bf16.gmra.mrb[0].mxu0 %v614
          %v709 = vpop.f32.mrb[0].mxu0
          %v710 = vadd.f32 %v509, %v709
          %v711 = vpop.f32.mrb[0].mxu0
          %v712 = vpop.f32.mrb[0].mxu0
          %v713 = vadd.f32 %v509, %v712
          %v714 = vpop.f32.mrb[0].mxu0
          %715 = vmatprep.mubr.bf16.mxu0 0
          %716 = vmatmul.mubr.bf16.gmra.mrb[0].mxu0 %v617
          %v717 = vpop.f32.mrb[0].mxu0
          %v718 = vadd.f32 %v509, %v717
          %v719 = vpop.f32.mrb[0].mxu0
          %v720 = vpop.f32.mrb[0].mxu0
          %v721 = vadd.f32 %v509, %v720
          %v722 = vpop.f32.mrb[0].mxu0
          %723 = vmatprep.mubr.bf16.mxu0 0
          %724 = vmatmul.mubr.bf16.gmra.mrb[0].mxu0 %v620
          %v725 = vpop.f32.mrb[0].mxu0
          %v726 = vadd.f32 %v509, %v725
          %v727 = vpop.f32.mrb[0].mxu0
          %v728 = vpop.f32.mrb[0].mxu0
          %v729 = vadd.f32 %v509, %v728
          %v730 = vpop.f32.mrb[0].mxu0
          %731 = vmatprep.mubr.bf16.mxu0 0
          %732 = vmatmul.mubr.bf16.gmra.mrb[0].mxu0 %v623
          %v733 = vpop.f32.mrb[0].mxu0
          %v734 = vadd.f32 %v509, %v733
          %v735 = vpop.f32.mrb[0].mxu0
          %v736 = vpop.f32.mrb[0].mxu0
          %v737 = vadd.f32 %v509, %v736
          %v738 = vpop.f32.mrb[0].mxu0
          %739 = vmatprep.mubr.bf16.mxu0 0
          %740 = vmatmul.mubr.bf16.gmra.mrb[0].mxu0 %v626
          %v741 = vpop.f32.mrb[0].mxu0
          %v742 = vadd.f32 %v509, %v741
          %v743 = vpop.f32.mrb[0].mxu0
          %v744 = vpop.f32.mrb[0].mxu0
          %v745 = vadd.f32 %v509, %v744
          %v746 = vpop.f32.mrb[0].mxu0
          %747 = vmatprep.mubr.bf16.mxu0 0
          %748 = vmatmul.mubr.bf16.gmra.mrb[0].mxu0 %v629
          %v749 = vpop.f32.mrb[0].mxu0
          %v750 = vadd.f32 %v509, %v749
          %v751 = vpop.f32.mrb[0].mxu0
          %v752 = vpop.f32.mrb[0].mxu0
          %v753 = vadd.f32 %v509, %v752
          %v754 = vpop.f32.mrb[0].mxu0
          %755 = vmatprep.mubr.bf16.mxu0 0
          %756 = vmatmul.mubr.bf16.gmra.mrb[0].mxu0 %v632
          %v757 = vpop.f32.mrb[0].mxu0
          %v758 = vadd.f32 %v509, %v757
          %v759 = vpop.f32.mrb[0].mxu0
          %v760 = vpop.f32.mrb[0].mxu0
          %v761 = vadd.f32 %v509, %v760
          %v762 = vpop.f32.mrb[0].mxu0
          %763 = vmatprep.mubr.bf16.mxu0 0
          %764 = vmatmul.mubr.bf16.gmra.mrb[0].mxu0 %v635
          %v765 = vpop.f32.mrb[0].mxu0
          %v766 = vadd.f32 %v509, %v765
          %v767 = vpop.f32.mrb[0].mxu0
          %v768 = vpop.f32.mrb[0].mxu0
          %v769 = vadd.f32 %v509, %v768
          %v770 = vpop.f32.mrb[0].mxu0
          %771 = vmatprep.mubr.bf16.mxu0 0
          %772 = vmatmul.mubr.bf16.gmra.mrb[0].mxu0 %v638
          %v773 = vpop.f32.mrb[0].mxu0
          %v774 = vadd.f32 %v509, %v773
          %v775 = vpop.f32.mrb[0].mxu0
          %v776 = vpop.f32.mrb[0].mxu0
          %v777 = vadd.f32 %v509, %v776
          %v778 = vpop.f32.mrb[0].mxu0
          %779 = vmatprep.mubr.bf16.mxu0 0
          %780 = vmatmul.mubr.bf16.gmra.mrb[0].mxu0 %v641
          %v781 = vpop.f32.mrb[0].mxu0
          %v782 = vadd.f32 %v509, %v781
          %v783 = vpop.f32.mrb[0].mxu0
          %v784 = vpop.f32.mrb[0].mxu0
          %v785 = vadd.f32 %v509, %v784
          %v786 = vpop.f32.mrb[0].mxu0
          %787 = vmatprep.mubr.bf16.mxu0 0
          %788 = vmatmul.mubr.bf16.gmra.mrb[0].mxu0 %v644
          %v789 = vpop.f32.mrb[0].mxu0
          %v790 = vadd.f32 %v509, %v789
          %v791 = vpop.f32.mrb[0].mxu0
          %v792 = vpop.f32.mrb[0].mxu0
          %v793 = vadd.f32 %v509, %v792
          %v794 = vpop.f32.mrb[0].mxu0
          %795 = vmatprep.mubr.bf16.mxu0 0
          %796 = vmatmul.mubr.bf16.gmra.mrb[0].mxu0 %v647
          %v797 = vpop.f32.mrb[0].mxu0
          %v798 = vadd.f32 %v509, %v797
          %v799 = vpop.f32.mrb[0].mxu0
          %v800 = vpop.f32.mrb[0].mxu0
          %v801 = vadd.f32 %v509, %v800
          %v802 = vpop.f32.mrb[0].mxu0
          %803 = vmatprep.mubr.bf16.mxu0 0
          %804 = vmatmul.mubr.bf16.gmra.mrb[0].mxu0 %v650
          %v805 = vpop.f32.mrb[0].mxu0
          %v806 = vadd.f32 %v509, %v805
          %v807 = vpop.f32.mrb[0].mxu0
          %v808 = vpop.f32.mrb[0].mxu0
          %v809 = vadd.f32 %v509, %v808
          %v810 = vpop.f32.mrb[0].mxu0
          %811 = vmatprep.mubr.bf16.mxu0 0
          %812 = vmatmul.mubr.bf16.gmra.mrb[0].mxu0 %v653
          %v813 = vpop.f32.mrb[0].mxu0
          %v814 = vadd.f32 %v509, %v813
          %v815 = vpop.f32.mrb[0].mxu0
          %v816 = vpop.f32.mrb[0].mxu0
          %v817 = vadd.f32 %v509, %v816
          %v818 = vpop.f32.mrb[0].mxu0
          %819 = vdwg.mxu0
          %vm820 = vcmask 130048
          %821 = vst.msk [vmem:[#allocation2] sm:$0xff] %vm820, %v694
          %822 = vst.msk [vmem:[#allocation2 + $0x8] sm:$0xff] %vm820, %v697
          %823 = vst.msk [vmem:[#allocation2 + $0x10] sm:$0xff] %vm820, %v702
          %824 = vst.msk [vmem:[#allocation2 + $0x18] sm:$0xff] %vm820, %v705
          %825 = vst.msk [vmem:[#allocation2 + $0x20] sm:$0xff] %vm820, %v710
          %826 = vst.msk [vmem:[#allocation2 + $0x28] sm:$0xff] %vm820, %v713
          %827 = vst.msk [vmem:[#allocation2 + $0x30] sm:$0xff] %vm820, %v718
          %828 = vst.msk [vmem:[#allocation2 + $0x38] sm:$0xff] %vm820, %v721
          %829 = vst.msk [vmem:[#allocation2 + $0x40] sm:$0xff] %vm820, %v726
          %830 = vst.msk [vmem:[#allocation2 + $0x48] sm:$0xff] %vm820, %v729
          %831 = vst.msk [vmem:[#allocation2 + $0x50] sm:$0xff] %vm820, %v734
          %832 = vst.msk [vmem:[#allocation2 + $0x58] sm:$0xff] %vm820, %v737
          %833 = vst.msk [vmem:[#allocation2 + $0x60] sm:$0xff] %vm820, %v742
          %834 = vst.msk [vmem:[#allocation2 + $0x68] sm:$0xff] %vm820, %v745
          %835 = vst.msk [vmem:[#allocation2 + $0x70] sm:$0xff] %vm820, %v750
          %836 = vst.msk [vmem:[#allocation2 + $0x78] sm:$0xff] %vm820, %v753
          %837 = vst.msk [vmem:[#allocation2 + $0x80] sm:$0xff] %vm820, %v758
          %838 = vst.msk [vmem:[#allocation2 + $0x88] sm:$0xff] %vm820, %v761
          %839 = vst.msk [vmem:[#allocation2 + $0x90] sm:$0xff] %vm820, %v766
          %840 = vst.msk [vmem:[#allocation2 + $0x98] sm:$0xff] %vm820, %v769
          %841 = vst.msk [vmem:[#allocation2 + $0xa0] sm:$0xff] %vm820, %v774
          %842 = vst.msk [vmem:[#allocation2 + $0xa8] sm:$0xff] %vm820, %v777
          %843 = vst.msk [vmem:[#allocation2 + $0xb0] sm:$0xff] %vm820, %v782
          %844 = vst.msk [vmem:[#allocation2 + $0xb8] sm:$0xff] %vm820, %v785
          %845 = vst.msk [vmem:[#allocation2 + $0xc0] sm:$0xff] %vm820, %v790
          %846 = vst.msk [vmem:[#allocation2 + $0xc8] sm:$0xff] %vm820, %v793
          %847 = vst.msk [vmem:[#allocation2 + $0xd0] sm:$0xff] %vm820, %v798
          %848 = vst.msk [vmem:[#allocation2 + $0xd8] sm:$0xff] %vm820, %v801
          %849 = vst.msk [vmem:[#allocation2 + $0xe0] sm:$0xff] %vm820, %v806
          %850 = vst.msk [vmem:[#allocation2 + $0xe8] sm:$0xff] %vm820, %v809
          %851 = vst.msk [vmem:[#allocation2 + $0xf0] sm:$0xff] %vm820, %v814
          %852 = vst.msk [vmem:[#allocation2 + $0xf8] sm:$0xff] %vm820, %v817
          %885 = vrot.lane.b32.xlu0 %v694, 112
          %v886 = vpop.permute.xlu0 %885
          %887 = vrot.lane.b32.xlu0 %v697, 112
          %v888 = vpop.permute.xlu0 %887
          %889 = vrot.lane.b32.xlu0 %v702, 112
          %v890 = vpop.permute.xlu0 %889
          %891 = vrot.lane.b32.xlu0 %v705, 112
          %v892 = vpop.permute.xlu0 %891
          %893 = vrot.lane.b32.xlu0 %v710, 112
          %v894 = vpop.permute.xlu0 %893
          %895 = vrot.lane.b32.xlu0 %v713, 112
          %v896 = vpop.permute.xlu0 %895
          %897 = vrot.lane.b32.xlu0 %v718, 112
          %v898 = vpop.permute.xlu0 %897
          %899 = vrot.lane.b32.xlu0 %v721, 112
          %v900 = vpop.permute.xlu0 %899
          %901 = vrot.lane.b32.xlu0 %v726, 112
          %v902 = vpop.permute.xlu0 %901
          %903 = vrot.lane.b32.xlu0 %v729, 112
          %v904 = vpop.permute.xlu0 %903
          %905 = vrot.lane.b32.xlu0 %v734, 112
          %v906 = vpop.permute.xlu0 %905
          %907 = vrot.lane.b32.xlu0 %v737, 112
          %v908 = vpop.permute.xlu0 %907
          %909 = vrot.lane.b32.xlu0 %v742, 112
          %v910 = vpop.permute.xlu0 %909
          %911 = vrot.lane.b32.xlu0 %v745, 112
          %v912 = vpop.permute.xlu0 %911
          %913 = vrot.lane.b32.xlu0 %v750, 112
          %v914 = vpop.permute.xlu0 %913
          %915 = vrot.lane.b32.xlu0 %v753, 112
          %v916 = vpop.permute.xlu0 %915
          %917 = vrot.lane.b32.xlu0 %v758, 112
          %v918 = vpop.permute.xlu0 %917
          %919 = vrot.lane.b32.xlu0 %v761, 112
          %v920 = vpop.permute.xlu0 %919
          %921 = vrot.lane.b32.xlu0 %v766, 112
          %v922 = vpop.permute.xlu0 %921
          %923 = vrot.lane.b32.xlu0 %v769, 112
          %v924 = vpop.permute.xlu0 %923
          %925 = vrot.lane.b32.xlu0 %v774, 112
          %v926 = vpop.permute.xlu0 %925
          %927 = vrot.lane.b32.xlu0 %v777, 112
          %v928 = vpop.permute.xlu0 %927
          %929 = vrot.lane.b32.xlu0 %v782, 112
          %v930 = vpop.permute.xlu0 %929
          %931 = vrot.lane.b32.xlu0 %v785, 112
          %v932 = vpop.permute.xlu0 %931
          %933 = vrot.lane.b32.xlu0 %v790, 112
          %v934 = vpop.permute.xlu0 %933
          %935 = vrot.lane.b32.xlu0 %v793, 112
          %v936 = vpop.permute.xlu0 %935
          %937 = vrot.lane.b32.xlu0 %v798, 112
          %v938 = vpop.permute.xlu0 %937
          %939 = vrot.lane.b32.xlu0 %v801, 112
          %v940 = vpop.permute.xlu0 %939
          %941 = vrot.lane.b32.xlu0 %v806, 112
          %v942 = vpop.permute.xlu0 %941
          %943 = vrot.lane.b32.xlu0 %v809, 112
          %v944 = vpop.permute.xlu0 %943
          %945 = vrot.lane.b32.xlu0 %v814, 112
          %v946 = vpop.permute.xlu0 %945
          %947 = vrot.lane.b32.xlu0 %v817, 112
          %v948 = vpop.permute.xlu0 %947
          %981 = vst.msk [vmem:[#allocation3] sm:$0xff] %vm820, %v886
          %982 = vst.msk [vmem:[#allocation3 + $0x8] sm:$0xff] %vm820, %v888
          %983 = vst.msk [vmem:[#allocation3 + $0x10] sm:$0xff] %vm820, %v890
          %984 = vst.msk [vmem:[#allocation3 + $0x18] sm:$0xff] %vm820, %v892
          %985 = vst.msk [vmem:[#allocation3 + $0x20] sm:$0xff] %vm820, %v894
          %986 = vst.msk [vmem:[#allocation3 + $0x28] sm:$0xff] %vm820, %v896
          %987 = vst.msk [vmem:[#allocation3 + $0x30] sm:$0xff] %vm820, %v898
          %988 = vst.msk [vmem:[#allocation3 + $0x38] sm:$0xff] %vm820, %v900
          %989 = vst.msk [vmem:[#allocation3 + $0x40] sm:$0xff] %vm820, %v902
          %990 = vst.msk [vmem:[#allocation3 + $0x48] sm:$0xff] %vm820, %v904
          %991 = vst.msk [vmem:[#allocation3 + $0x50] sm:$0xff] %vm820, %v906
          %992 = vst.msk [vmem:[#allocation3 + $0x58] sm:$0xff] %vm820, %v908
          %993 = vst.msk [vmem:[#allocation3 + $0x60] sm:$0xff] %vm820, %v910
          %994 = vst.msk [vmem:[#allocation3 + $0x68] sm:$0xff] %vm820, %v912
          %995 = vst.msk [vmem:[#allocation3 + $0x70] sm:$0xff] %vm820, %v914
          %996 = vst.msk [vmem:[#allocation3 + $0x78] sm:$0xff] %vm820, %v916
          %997 = vst.msk [vmem:[#allocation3 + $0x80] sm:$0xff] %vm820, %v918
          %998 = vst.msk [vmem:[#allocation3 + $0x88] sm:$0xff] %vm820, %v920
          %999 = vst.msk [vmem:[#allocation3 + $0x90] sm:$0xff] %vm820, %v922
          %1000 = vst.msk [vmem:[#allocation3 + $0x98] sm:$0xff] %vm820, %v924
          %1001 = vst.msk [vmem:[#allocation3 + $0xa0] sm:$0xff] %vm820, %v926
          %1002 = vst.msk [vmem:[#allocation3 + $0xa8] sm:$0xff] %vm820, %v928
          %1003 = vst.msk [vmem:[#allocation3 + $0xb0] sm:$0xff] %vm820, %v930
          %1004 = vst.msk [vmem:[#allocation3 + $0xb8] sm:$0xff] %vm820, %v932
          %1005 = vst.msk [vmem:[#allocation3 + $0xc0] sm:$0xff] %vm820, %v934
          %1006 = vst.msk [vmem:[#allocation3 + $0xc8] sm:$0xff] %vm820, %v936
          %1007 = vst.msk [vmem:[#allocation3 + $0xd0] sm:$0xff] %vm820, %v938
          %1008 = vst.msk [vmem:[#allocation3 + $0xd8] sm:$0xff] %vm820, %v940
          %1009 = vst.msk [vmem:[#allocation3 + $0xe0] sm:$0xff] %vm820, %v942
          %1010 = vst.msk [vmem:[#allocation3 + $0xe8] sm:$0xff] %vm820, %v944
          %1011 = vst.msk [vmem:[#allocation3 + $0xf0] sm:$0xff] %vm820, %v946
          %1012 = vst.msk [vmem:[#allocation3 + $0xf8] sm:$0xff] %vm820, %v948
          %1013 = vrot.lane.b32.xlu0 %v694, 96
          %v1014 = vpop.permute.xlu0 %1013
          %1015 = vrot.lane.b32.xlu0 %v697, 96
          %v1016 = vpop.permute.xlu0 %1015
          %1017 = vrot.lane.b32.xlu0 %v702, 96
          %v1018 = vpop.permute.xlu0 %1017
          %1019 = vrot.lane.b32.xlu0 %v705, 96
          %v1020 = vpop.permute.xlu0 %1019
          %1021 = vrot.lane.b32.xlu0 %v710, 96
          %v1022 = vpop.permute.xlu0 %1021
          %1023 = vrot.lane.b32.xlu0 %v713, 96
          %v1024 = vpop.permute.xlu0 %1023
          %1025 = vrot.lane.b32.xlu0 %v718, 96
          %v1026 = vpop.permute.xlu0 %1025
          %1027 = vrot.lane.b32.xlu0 %v721, 96
          %v1028 = vpop.permute.xlu0 %1027
          %1029 = vrot.lane.b32.xlu0 %v726, 96
          %v1030 = vpop.permute.xlu0 %1029
          %1031 = vrot.lane.b32.xlu0 %v729, 96
          %v1032 = vpop.permute.xlu0 %1031
          %1033 = vrot.lane.b32.xlu0 %v734, 96
          %v1034 = vpop.permute.xlu0 %1033
          %1035 = vrot.lane.b32.xlu0 %v737, 96
          %v1036 = vpop.permute.xlu0 %1035
          %1037 = vrot.lane.b32.xlu0 %v742, 96
          %v1038 = vpop.permute.xlu0 %1037
          %1039 = vrot.lane.b32.xlu0 %v745, 96
          %v1040 = vpop.permute.xlu0 %1039
          %1041 = vrot.lane.b32.xlu0 %v750, 96
          %v1042 = vpop.permute.xlu0 %1041
          %1043 = vrot.lane.b32.xlu0 %v753, 96
          %v1044 = vpop.permute.xlu0 %1043
          %1045 = vrot.lane.b32.xlu0 %v758, 96
          %v1046 = vpop.permute.xlu0 %1045
          %1047 = vrot.lane.b32.xlu0 %v761, 96
          %v1048 = vpop.permute.xlu0 %1047
          %1049 = vrot.lane.b32.xlu0 %v766, 96
          %v1050 = vpop.permute.xlu0 %1049
          %1051 = vrot.lane.b32.xlu0 %v769, 96
          %v1052 = vpop.permute.xlu0 %1051
          %1053 = vrot.lane.b32.xlu0 %v774, 96
          %v1054 = vpop.permute.xlu0 %1053
          %1055 = vrot.lane.b32.xlu0 %v777, 96
          %v1056 = vpop.permute.xlu0 %1055
          %1057 = vrot.lane.b32.xlu0 %v782, 96
          %v1058 = vpop.permute.xlu0 %1057
          %1059 = vrot.lane.b32.xlu0 %v785, 96
          %v1060 = vpop.permute.xlu0 %1059
          %1061 = vrot.lane.b32.xlu0 %v790, 96
          %v1062 = vpop.permute.xlu0 %1061
          %1063 = vrot.lane.b32.xlu0 %v793, 96
          %v1064 = vpop.permute.xlu0 %1063
          %1065 = vrot.lane.b32.xlu0 %v798, 96
          %v1066 = vpop.permute.xlu0 %1065
          %1067 = vrot.lane.b32.xlu0 %v801, 96
          %v1068 = vpop.permute.xlu0 %1067
          %1069 = vrot.lane.b32.xlu0 %v806, 96
          %v1070 = vpop.permute.xlu0 %1069
          %1071 = vrot.lane.b32.xlu0 %v809, 96
          %v1072 = vpop.permute.xlu0 %1071
          %1073 = vrot.lane.b32.xlu0 %v814, 96
          %v1074 = vpop.permute.xlu0 %1073
          %1075 = vrot.lane.b32.xlu0 %v817, 96
          %v1076 = vpop.permute.xlu0 %1075
          %1109 = vst.msk [vmem:[#allocation4] sm:$0xff] %vm820, %v1014
          %1110 = vst.msk [vmem:[#allocation4 + $0x8] sm:$0xff] %vm820, %v1016
          %1111 = vst.msk [vmem:[#allocation4 + $0x10] sm:$0xff] %vm820, %v1018
          %1112 = vst.msk [vmem:[#allocation4 + $0x18] sm:$0xff] %vm820, %v1020
          %1113 = vst.msk [vmem:[#allocation4 + $0x20] sm:$0xff] %vm820, %v1022
          %1114 = vst.msk [vmem:[#allocation4 + $0x28] sm:$0xff] %vm820, %v1024
          %1115 = vst.msk [vmem:[#allocation4 + $0x30] sm:$0xff] %vm820, %v1026
          %1116 = vst.msk [vmem:[#allocation4 + $0x38] sm:$0xff] %vm820, %v1028
          %1117 = vst.msk [vmem:[#allocation4 + $0x40] sm:$0xff] %vm820, %v1030
          %1118 = vst.msk [vmem:[#allocation4 + $0x48] sm:$0xff] %vm820, %v1032
          %1119 = vst.msk [vmem:[#allocation4 + $0x50] sm:$0xff] %vm820, %v1034
          %1120 = vst.msk [vmem:[#allocation4 + $0x58] sm:$0xff] %vm820, %v1036
          %1121 = vst.msk [vmem:[#allocation4 + $0x60] sm:$0xff] %vm820, %v1038
          %1122 = vst.msk [vmem:[#allocation4 + $0x68] sm:$0xff] %vm820, %v1040
          %1123 = vst.msk [vmem:[#allocation4 + $0x70] sm:$0xff] %vm820, %v1042
          %1124 = vst.msk [vmem:[#allocation4 + $0x78] sm:$0xff] %vm820, %v1044
          %1125 = vst.msk [vmem:[#allocation4 + $0x80] sm:$0xff] %vm820, %v1046
          %1126 = vst.msk [vmem:[#allocation4 + $0x88] sm:$0xff] %vm820, %v1048
          %1127 = vst.msk [vmem:[#allocation4 + $0x90] sm:$0xff] %vm820, %v1050
          %1128 = vst.msk [vmem:[#allocation4 + $0x98] sm:$0xff] %vm820, %v1052
          %1129 = vst.msk [vmem:[#allocation4 + $0xa0] sm:$0xff] %vm820, %v1054
          %1130 = vst.msk [vmem:[#allocation4 + $0xa8] sm:$0xff] %vm820, %v1056
          %1131 = vst.msk [vmem:[#allocation4 + $0xb0] sm:$0xff] %vm820, %v1058
          %1132 = vst.msk [vmem:[#allocation4 + $0xb8] sm:$0xff] %vm820, %v1060
          %1133 = vst.msk [vmem:[#allocation4 + $0xc0] sm:$0xff] %vm820, %v1062
          %1134 = vst.msk [vmem:[#allocation4 + $0xc8] sm:$0xff] %vm820, %v1064
          %1135 = vst.msk [vmem:[#allocation4 + $0xd0] sm:$0xff] %vm820, %v1066
          %1136 = vst.msk [vmem:[#allocation4 + $0xd8] sm:$0xff] %vm820, %v1068
          %1137 = vst.msk [vmem:[#allocation4 + $0xe0] sm:$0xff] %vm820, %v1070
          %1138 = vst.msk [vmem:[#allocation4 + $0xe8] sm:$0xff] %vm820, %v1072
          %1139 = vst.msk [vmem:[#allocation4 + $0xf0] sm:$0xff] %vm820, %v1074
          %1140 = vst.msk [vmem:[#allocation4 + $0xf8] sm:$0xff] %vm820, %v1076
        $region72: #{tpu_custom_call.1} parent=67 // pred_fallthru
          _
        %s1141 = smul.u32 %s31, 128
        %s1142 = scalar_lea.vmem [#allocation2], %s1141
        %v1143 = vld [vmem:[%s1142] sm:$0xff]
        %v1144 = vld [vmem:[%s1142 + $0x8] sm:$0xff]
        %v1145 = vld [vmem:[%s1142 + $0x10] sm:$0xff]
        %v1146 = vld [vmem:[%s1142 + $0x18] sm:$0xff]
        %v1147 = vld [vmem:[%s1142 + $0x20] sm:$0xff]
        %v1148 = vld [vmem:[%s1142 + $0x28] sm:$0xff]
        %v1149 = vld [vmem:[%s1142 + $0x30] sm:$0xff]
        %v1150 = vld [vmem:[%s1142 + $0x38] sm:$0xff]
        %v1151 = vld [vmem:[%s1142 + $0x40] sm:$0xff]
        %v1152 = vld [vmem:[%s1142 + $0x48] sm:$0xff]
        %v1153 = vld [vmem:[%s1142 + $0x50] sm:$0xff]
        %v1154 = vld [vmem:[%s1142 + $0x58] sm:$0xff]
        %v1155 = vld [vmem:[%s1142 + $0x60] sm:$0xff]
        %v1156 = vld [vmem:[%s1142 + $0x68] sm:$0xff]
        %v1157 = vld [vmem:[%s1142 + $0x70] sm:$0xff]
        %v1158 = vld [vmem:[%s1142 + $0x78] sm:$0xff]
        %v1159 = vpack.c.bf16 %v1144, %v1143
        %v1160 = vpack.c.bf16 %v1146, %v1145
        %v1161 = vpack.c.bf16 %v1148, %v1147
        %v1162 = vpack.c.bf16 %v1150, %v1149
        %v1163 = vpack.c.bf16 %v1152, %v1151
        %v1164 = vpack.c.bf16 %v1154, %v1153
        %v1165 = vpack.c.bf16 %v1156, %v1155
        %v1166 = vpack.c.bf16 %v1158, %v1157
        %v1167 = vld [vmem:[#allocation3] sm:$0xff]
        %v1168 = vld [vmem:[#allocation3 + $0x8] sm:$0xff]
        %v1169 = vld [vmem:[#allocation3 + $0x10] sm:$0xff]
        %v1170 = vld [vmem:[#allocation3 + $0x18] sm:$0xff]
        %v1171 = vld [vmem:[#allocation3 + $0x20] sm:$0xff]
        %v1172 = vld [vmem:[#allocation3 + $0x28] sm:$0xff]
        %v1173 = vld [vmem:[#allocation3 + $0x30] sm:$0xff]
        %v1174 = vld [vmem:[#allocation3 + $0x38] sm:$0xff]
        %v1175 = vld [vmem:[#allocation3 + $0x40] sm:$0xff]
        %v1176 = vld [vmem:[#allocation3 + $0x48] sm:$0xff]
        %v1177 = vld [vmem:[#allocation3 + $0x50] sm:$0xff]
        %v1178 = vld [vmem:[#allocation3 + $0x58] sm:$0xff]
        %v1179 = vld [vmem:[#allocation3 + $0x60] sm:$0xff]
        %v1180 = vld [vmem:[#allocation3 + $0x68] sm:$0xff]
        %v1181 = vld [vmem:[#allocation3 + $0x70] sm:$0xff]
        %v1182 = vld [vmem:[#allocation3 + $0x78] sm:$0xff]
        %v1183 = vld [vmem:[#allocation3 + $0x80] sm:$0xff]
        %v1184 = vld [vmem:[#allocation3 + $0x88] sm:$0xff]
        %v1185 = vld [vmem:[#allocation3 + $0x90] sm:$0xff]
        %v1186 = vld [vmem:[#allocation3 + $0x98] sm:$0xff]
        %v1187 = vld [vmem:[#allocation3 + $0xa0] sm:$0xff]
        %v1188 = vld [vmem:[#allocation3 + $0xa8] sm:$0xff]
        %v1189 = vld [vmem:[#allocation3 + $0xb0] sm:$0xff]
        %v1190 = vld [vmem:[#allocation3 + $0xb8] sm:$0xff]
        %v1191 = vld [vmem:[#allocation3 + $0xc0] sm:$0xff]
        %v1192 = vld [vmem:[#allocation3 + $0xc8] sm:$0xff]
        %v1193 = vld [vmem:[#allocation3 + $0xd0] sm:$0xff]
        %v1194 = vld [vmem:[#allocation3 + $0xd8] sm:$0xff]
        %v1195 = vld [vmem:[#allocation3 + $0xe0] sm:$0xff]
        %v1196 = vld [vmem:[#allocation3 + $0xe8] sm:$0xff]
        %v1197 = vld [vmem:[#allocation3 + $0xf0] sm:$0xff]
        %v1198 = vld [vmem:[#allocation3 + $0xf8] sm:$0xff]
        %v1199 = vpack.c.bf16 %v1168, %v1167
        %v1200 = vpack.c.bf16 %v1170, %v1169
        %v1201 = vpack.c.bf16 %v1172, %v1171
        %v1202 = vpack.c.bf16 %v1174, %v1173
        %v1203 = vpack.c.bf16 %v1176, %v1175
        %v1204 = vpack.c.bf16 %v1178, %v1177
        %v1205 = vpack.c.bf16 %v1180, %v1179
        %v1206 = vpack.c.bf16 %v1182, %v1181
        %v1207 = vpack.c.bf16 %v1184, %v1183
        %v1208 = vpack.c.bf16 %v1186, %v1185
        %v1209 = vpack.c.bf16 %v1188, %v1187
        %v1210 = vpack.c.bf16 %v1190, %v1189
        %v1211 = vpack.c.bf16 %v1192, %v1191
        %v1212 = vpack.c.bf16 %v1194, %v1193
        %v1213 = vpack.c.bf16 %v1196, %v1195
        %v1214 = vpack.c.bf16 %v1198, %v1197
        %v1215 = vld [vmem:[#allocation4] sm:$0xff]
        %v1216 = vld [vmem:[#allocation4 + $0x8] sm:$0xff]
        %v1217 = vld [vmem:[#allocation4 + $0x10] sm:$0xff]
        %v1218 = vld [vmem:[#allocation4 + $0x18] sm:$0xff]
        %v1219 = vld [vmem:[#allocation4 + $0x20] sm:$0xff]
        %v1220 = vld [vmem:[#allocation4 + $0x28] sm:$0xff]
        %v1221 = vld [vmem:[#allocation4 + $0x30] sm:$0xff]
        %v1222 = vld [vmem:[#allocation4 + $0x38] sm:$0xff]
        %v1223 = vld [vmem:[#allocation4 + $0x40] sm:$0xff]
        %v1224 = vld [vmem:[#allocation4 + $0x48] sm:$0xff]
        %v1225 = vld [vmem:[#allocation4 + $0x50] sm:$0xff]
        %v1226 = vld [vmem:[#allocation4 + $0x58] sm:$0xff]
        %v1227 = vld [vmem:[#allocation4 + $0x60] sm:$0xff]
        %v1228 = vld [vmem:[#allocation4 + $0x68] sm:$0xff]
        %v1229 = vld [vmem:[#allocation4 + $0x70] sm:$0xff]
        %v1230 = vld [vmem:[#allocation4 + $0x78] sm:$0xff]
        %v1231 = vld [vmem:[#allocation4 + $0x80] sm:$0xff]
        %v1232 = vld [vmem:[#allocation4 + $0x88] sm:$0xff]
        %v1233 = vld [vmem:[#allocation4 + $0x90] sm:$0xff]
        %v1234 = vld [vmem:[#allocation4 + $0x98] sm:$0xff]
        %v1235 = vld [vmem:[#allocation4 + $0xa0] sm:$0xff]
        %v1236 = vld [vmem:[#allocation4 + $0xa8] sm:$0xff]
        %v1237 = vld [vmem:[#allocation4 + $0xb0] sm:$0xff]
        %v1238 = vld [vmem:[#allocation4 + $0xb8] sm:$0xff]
        %v1239 = vld [vmem:[#allocation4 + $0xc0] sm:$0xff]
        %v1240 = vld [vmem:[#allocation4 + $0xc8] sm:$0xff]
        %v1241 = vld [vmem:[#allocation4 + $0xd0] sm:$0xff]
        %v1242 = vld [vmem:[#allocation4 + $0xd8] sm:$0xff]
        %v1243 = vld [vmem:[#allocation4 + $0xe0] sm:$0xff]
        %v1244 = vld [vmem:[#allocation4 + $0xe8] sm:$0xff]
        %v1245 = vld [vmem:[#allocation4 + $0xf0] sm:$0xff]
        %v1246 = vld [vmem:[#allocation4 + $0xf8] sm:$0xff]
        %v1247 = vpack.c.bf16 %v1216, %v1215
        %v1248 = vpack.c.bf16 %v1218, %v1217
        %v1249 = vpack.c.bf16 %v1220, %v1219
        %v1250 = vpack.c.bf16 %v1222, %v1221
        %v1251 = vpack.c.bf16 %v1224, %v1223
        %v1252 = vpack.c.bf16 %v1226, %v1225
        %v1253 = vpack.c.bf16 %v1228, %v1227
        %v1254 = vpack.c.bf16 %v1230, %v1229
        %v1255 = vpack.c.bf16 %v1232, %v1231
        %v1256 = vpack.c.bf16 %v1234, %v1233
        %v1257 = vpack.c.bf16 %v1236, %v1235
        %v1258 = vpack.c.bf16 %v1238, %v1237
        %v1259 = vpack.c.bf16 %v1240, %v1239
        %v1260 = vpack.c.bf16 %v1242, %v1241
        %v1261 = vpack.c.bf16 %v1244, %v1243
        %v1262 = vpack.c.bf16 %v1246, %v1245
        %vm1263 = vcmask 64512
        %v1265 = vsel %vm1263, %v1159, 0
        %v1268 = vsel %vm1263, %v1160, 0
        %v1271 = vsel %vm1263, %v1161, 0
        %v1274 = vsel %vm1263, %v1162, 0
        %v1277 = vsel %vm1263, %v1163, 0
        %v1280 = vsel %vm1263, %v1164, 0
        %v1283 = vsel %vm1263, %v1165, 0
        %v1286 = vsel %vm1263, %v1166, 0
        %v1289 = vsel %vm1263, %v1199, 0
        %v1292 = vsel %vm1263, %v1200, 0
        %v1295 = vsel %vm1263, %v1201, 0
        %v1298 = vsel %vm1263, %v1202, 0
        %v1301 = vsel %vm1263, %v1203, 0
        %v1304 = vsel %vm1263, %v1204, 0
        %v1307 = vsel %vm1263, %v1205, 0
        %v1310 = vsel %vm1263, %v1206, 0
        %v1313 = vsel %vm1263, %v1207, 0
        %v1316 = vsel %vm1263, %v1208, 0
        %v1319 = vsel %vm1263, %v1209, 0
        %v1322 = vsel %vm1263, %v1210, 0
        %v1325 = vsel %vm1263, %v1211, 0
        %v1328 = vsel %vm1263, %v1212, 0
        %v1331 = vsel %vm1263, %v1213, 0
        %v1334 = vsel %vm1263, %v1214, 0
        %1336 = vmatprep.subr.bf16.mxu0 0
        %1337 = vmatpush1.bf16.xpose.msra.mxu0 %v1289
        %1338 = vmatprep.subr.bf16.mxu0 0
        %1339 = vmatpush1.bf16.xpose.msra.mxu0 %v1292
        %1340 = vmatprep.subr.bf16.mxu0 0
        %1341 = vmatpush1.bf16.xpose.msra.mxu0 %v1295
        %1342 = vmatprep.subr.bf16.mxu0 0
        %1343 = vmatpush1.bf16.xpose.msra.mxu0 %v1298
        %1344 = vmatprep.subr.bf16.mxu0 0
        %1345 = vmatpush1.bf16.xpose.msra.mxu0 %v1301
        %1346 = vmatprep.subr.bf16.mxu0 0
        %1347 = vmatpush1.bf16.xpose.msra.mxu0 %v1304
        %1348 = vmatprep.subr.bf16.mxu0 0
        %1349 = vmatpush1.bf16.xpose.msra.mxu0 %v1307
        %1350 = vmatprep.subr.bf16.mxu0 0
        %1351 = vmatpush1.bf16.xpose.msra.mxu0 %v1310
        %1352 = vmatprep.subr.bf16.mxu0 0
        %1353 = vmatpush1.bf16.xpose.msra.mxu0 %v1313
        %1354 = vmatprep.subr.bf16.mxu0 0
        %1355 = vmatpush1.bf16.xpose.msra.mxu0 %v1316
        %1356 = vmatprep.subr.bf16.mxu0 0
        %1357 = vmatpush1.bf16.xpose.msra.mxu0 %v1319
        %1358 = vmatprep.subr.bf16.mxu0 0
        %1359 = vmatpush1.bf16.xpose.msra.mxu0 %v1322
        %1360 = vmatprep.subr.bf16.mxu0 0
        %1361 = vmatpush1.bf16.xpose.msra.mxu0 %v1325
        %1362 = vmatprep.subr.bf16.mxu0 0
        %1363 = vmatpush1.bf16.xpose.msra.mxu0 %v1328
        %1364 = vmatprep.subr.bf16.mxu0 0
        %1365 = vmatpush1.bf16.xpose.msra.mxu0 %v1331
        %1366 = vmatprep.subr.bf16.mxu0 0
        %1367 = vmatpush1.bf16.xpose.msra.mxu0 %v1334
        %1368 = vmatprep.mubr.bf16.mxu0 0
        %1369 = vmatmul.mubr.bf16.gmra.mrb[0].mxu0 %v1265
        %v1370 = vpop.f32.mrb[0].mxu0
        %v1371 = vadd.f32 0.0, %v1370
        %v1372 = vpop.f32.mrb[0].mxu0
        %v1373 = vadd.f32 0.0, %v1372
        %v1374 = vpop.f32.mrb[0].mxu0
        %v1375 = vadd.f32 0.0, %v1374
        %v1376 = vpop.f32.mrb[0].mxu0
        %v1377 = vadd.f32 0.0, %v1376
        %1378 = vmatprep.mubr.bf16.mxu0 0
        %1379 = vmatmul.mubr.bf16.gmra.mrb[0].mxu0 %v1268
        %v1380 = vpop.f32.mrb[0].mxu0
        %v1381 = vadd.f32 0.0, %v1380
        %v1382 = vpop.f32.mrb[0].mxu0
        %v1383 = vadd.f32 0.0, %v1382
        %v1384 = vpop.f32.mrb[0].mxu0
        %v1385 = vadd.f32 0.0, %v1384
        %v1386 = vpop.f32.mrb[0].mxu0
        %v1387 = vadd.f32 0.0, %v1386
        %1388 = vmatprep.mubr.bf16.mxu0 0
        %1389 = vmatmul.mubr.bf16.gmra.mrb[0].mxu0 %v1271
        %v1390 = vpop.f32.mrb[0].mxu0
        %v1391 = vadd.f32 0.0, %v1390
        %v1392 = vpop.f32.mrb[0].mxu0
        %v1393 = vadd.f32 0.0, %v1392
        %v1394 = vpop.f32.mrb[0].mxu0
        %v1395 = vadd.f32 0.0, %v1394
        %v1396 = vpop.f32.mrb[0].mxu0
        %v1397 = vadd.f32 0.0, %v1396
        %1398 = vmatprep.mubr.bf16.mxu0 0
        %1399 = vmatmul.mubr.bf16.gmra.mrb[0].mxu0 %v1274
        %v1400 = vpop.f32.mrb[0].mxu0
        %v1401 = vadd.f32 0.0, %v1400
        %v1402 = vpop.f32.mrb[0].mxu0
        %v1403 = vadd.f32 0.0, %v1402
        %v1404 = vpop.f32.mrb[0].mxu0
        %v1405 = vadd.f32 0.0, %v1404
        %v1406 = vpop.f32.mrb[0].mxu0
        %v1407 = vadd.f32 0.0, %v1406
        %1408 = vmatprep.mubr.bf16.mxu0 0
        %1409 = vmatmul.mubr.bf16.gmra.mrb[0].mxu0 %v1277
        %v1410 = vpop.f32.mrb[0].mxu0
        %v1411 = vadd.f32 0.0, %v1410
        %v1412 = vpop.f32.mrb[0].mxu0
        %v1413 = vadd.f32 0.0, %v1412
        %v1414 = vpop.f32.mrb[0].mxu0
        %v1415 = vadd.f32 0.0, %v1414
        %v1416 = vpop.f32.mrb[0].mxu0
        %v1417 = vadd.f32 0.0, %v1416
        %1418 = vmatprep.mubr.bf16.mxu0 0
        %1419 = vmatmul.mubr.bf16.gmra.mrb[0].mxu0 %v1280
        %v1420 = vpop.f32.mrb[0].mxu0
        %v1421 = vadd.f32 0.0, %v1420
        %v1422 = vpop.f32.mrb[0].mxu0
        %v1423 = vadd.f32 0.0, %v1422
        %v1424 = vpop.f32.mrb[0].mxu0
        %v1425 = vadd.f32 0.0, %v1424
        %v1426 = vpop.f32.mrb[0].mxu0
        %v1427 = vadd.f32 0.0, %v1426
        %1428 = vmatprep.mubr.bf16.mxu0 0
        %1429 = vmatmul.mubr.bf16.gmra.mrb[0].mxu0 %v1283
        %v1430 = vpop.f32.mrb[0].mxu0
        %v1431 = vadd.f32 0.0, %v1430
        %v1432 = vpop.f32.mrb[0].mxu0
        %v1433 = vadd.f32 0.0, %v1432
        %v1434 = vpop.f32.mrb[0].mxu0
        %v1435 = vadd.f32 0.0, %v1434
        %v1436 = vpop.f32.mrb[0].mxu0
        %v1437 = vadd.f32 0.0, %v1436
        %1438 = vmatprep.mubr.bf16.mxu0 0
        %1439 = vmatmul.mubr.bf16.gmra.mrb[0].mxu0 %v1286
        %v1440 = vpop.f32.mrb[0].mxu0
        %v1441 = vadd.f32 0.0, %v1440
        %v1442 = vpop.f32.mrb[0].mxu0
        %v1443 = vadd.f32 0.0, %v1442
        %v1444 = vpop.f32.mrb[0].mxu0
        %v1445 = vadd.f32 0.0, %v1444
        %v1446 = vpop.f32.mrb[0].mxu0
        %v1447 = vadd.f32 0.0, %v1446
        %1448 = vdwg.mxu0
        %1449 = vst [vmem:[#allocation5] sm:$0xff] %v1371
        %1450 = vst [vmem:[#allocation5 + $0x8] sm:$0xff] %v1373
        %1451 = vst [vmem:[#allocation5 + $0x10] sm:$0xff] %v1375
        %1452 = vst [vmem:[#allocation5 + $0x18] sm:$0xff] %v1377
        %1453 = vst [vmem:[#allocation5 + $0x20] sm:$0xff] %v1381
        %1454 = vst [vmem:[#allocation5 + $0x28] sm:$0xff] %v1383
        %1455 = vst [vmem:[#allocation5 + $0x30] sm:$0xff] %v1385
        %1456 = vst [vmem:[#allocation5 + $0x38] sm:$0xff] %v1387
        %1457 = vst [vmem:[#allocation5 + $0x40] sm:$0xff] %v1391
        %1458 = vst [vmem:[#allocation5 + $0x48] sm:$0xff] %v1393
        %1459 = vst [vmem:[#allocation5 + $0x50] sm:$0xff] %v1395
        %1460 = vst [vmem:[#allocation5 + $0x58] sm:$0xff] %v1397
        %1461 = vst [vmem:[#allocation5 + $0x60] sm:$0xff] %v1401
        %1462 = vst [vmem:[#allocation5 + $0x68] sm:$0xff] %v1403
        %1463 = vst [vmem:[#allocation5 + $0x70] sm:$0xff] %v1405
        %1464 = vst [vmem:[#allocation5 + $0x78] sm:$0xff] %v1407
        %1465 = vst [vmem:[#allocation5 + $0x80] sm:$0xff] %v1411
        %1466 = vst [vmem:[#allocation5 + $0x88] sm:$0xff] %v1413
        %1467 = vst [vmem:[#allocation5 + $0x90] sm:$0xff] %v1415
        %1468 = vst [vmem:[#allocation5 + $0x98] sm:$0xff] %v1417
        %1469 = vst [vmem:[#allocation5 + $0xa0] sm:$0xff] %v1421
        %1470 = vst [vmem:[#allocation5 + $0xa8] sm:$0xff] %v1423
        %1471 = vst [vmem:[#allocation5 + $0xb0] sm:$0xff] %v1425
        %1472 = vst [vmem:[#allocation5 + $0xb8] sm:$0xff] %v1427
        %1473 = vst [vmem:[#allocation5 + $0xc0] sm:$0xff] %v1431
        %1474 = vst [vmem:[#allocation5 + $0xc8] sm:$0xff] %v1433
        %1475 = vst [vmem:[#allocation5 + $0xd0] sm:$0xff] %v1435
        %1476 = vst [vmem:[#allocation5 + $0xd8] sm:$0xff] %v1437
        %1477 = vst [vmem:[#allocation5 + $0xe0] sm:$0xff] %v1441
        %1478 = vst [vmem:[#allocation5 + $0xe8] sm:$0xff] %v1443
        %1479 = vst [vmem:[#allocation5 + $0xf0] sm:$0xff] %v1445
        %1480 = vst [vmem:[#allocation5 + $0xf8] sm:$0xff] %v1447
        %1489 = vrot.lane.b32.xlu0 %v1159, 120
        %v1490 = vpop.permute.xlu0 %1489
        %1491 = vrot.lane.b32.xlu0 %v1160, 120
        %v1492 = vpop.permute.xlu0 %1491
        %1493 = vrot.lane.b32.xlu0 %v1161, 120
        %v1494 = vpop.permute.xlu0 %1493
        %1495 = vrot.lane.b32.xlu0 %v1162, 120
        %v1496 = vpop.permute.xlu0 %1495
        %1497 = vrot.lane.b32.xlu0 %v1163, 120
        %v1498 = vpop.permute.xlu0 %1497
        %1499 = vrot.lane.b32.xlu0 %v1164, 120
        %v1500 = vpop.permute.xlu0 %1499
        %1501 = vrot.lane.b32.xlu0 %v1165, 120
        %v1502 = vpop.permute.xlu0 %1501
        %1503 = vrot.lane.b32.xlu0 %v1166, 120
        %v1504 = vpop.permute.xlu0 %1503
        %1521 = vrot.lane.b32.xlu0 %v1199, 120
        %v1522 = vpop.permute.xlu0 %1521
        %1523 = vrot.lane.b32.xlu0 %v1200, 120
        %v1524 = vpop.permute.xlu0 %1523
        %1525 = vrot.lane.b32.xlu0 %v1201, 120
        %v1526 = vpop.permute.xlu0 %1525
        %1527 = vrot.lane.b32.xlu0 %v1202, 120
        %v1528 = vpop.permute.xlu0 %1527
        %1529 = vrot.lane.b32.xlu0 %v1203, 120
        %v1530 = vpop.permute.xlu0 %1529
        %1531 = vrot.lane.b32.xlu0 %v1204, 120
        %v1532 = vpop.permute.xlu0 %1531
        %1533 = vrot.lane.b32.xlu0 %v1205, 120
        %v1534 = vpop.permute.xlu0 %1533
        %1535 = vrot.lane.b32.xlu0 %v1206, 120
        %v1536 = vpop.permute.xlu0 %1535
        %1537 = vrot.lane.b32.xlu0 %v1207, 120
        %v1538 = vpop.permute.xlu0 %1537
        %1539 = vrot.lane.b32.xlu0 %v1208, 120
        %v1540 = vpop.permute.xlu0 %1539
        %1541 = vrot.lane.b32.xlu0 %v1209, 120
        %v1542 = vpop.permute.xlu0 %1541
        %1543 = vrot.lane.b32.xlu0 %v1210, 120
        %v1544 = vpop.permute.xlu0 %1543
        %1545 = vrot.lane.b32.xlu0 %v1211, 120
        %v1546 = vpop.permute.xlu0 %1545
        %1547 = vrot.lane.b32.xlu0 %v1212, 120
        %v1548 = vpop.permute.xlu0 %1547
        %1549 = vrot.lane.b32.xlu0 %v1213, 120
        %v1550 = vpop.permute.xlu0 %1549
        %1551 = vrot.lane.b32.xlu0 %v1214, 120
        %v1552 = vpop.permute.xlu0 %1551
        %v1554 = vsel %vm1263, %v1490, 0
        %v1557 = vsel %vm1263, %v1492, 0
        %v1560 = vsel %vm1263, %v1494, 0
        %v1563 = vsel %vm1263, %v1496, 0
        %v1566 = vsel %vm1263, %v1498, 0
        %v1569 = vsel %vm1263, %v1500, 0
        %v1572 = vsel %vm1263, %v1502, 0
        %v1575 = vsel %vm1263, %v1504, 0
        %v1578 = vsel %vm1263, %v1522, 0
        %v1581 = vsel %vm1263, %v1524, 0
        %v1584 = vsel %vm1263, %v1526, 0
        %v1587 = vsel %vm1263, %v1528, 0
        %v1590 = vsel %vm1263, %v1530, 0
        %v1593 = vsel %vm1263, %v1532, 0
        %v1596 = vsel %vm1263, %v1534, 0
        %v1599 = vsel %vm1263, %v1536, 0
        %v1602 = vsel %vm1263, %v1538, 0
        %v1605 = vsel %vm1263, %v1540, 0
        %v1608 = vsel %vm1263, %v1542, 0
        %v1611 = vsel %vm1263, %v1544, 0
        %v1614 = vsel %vm1263, %v1546, 0
        %v1617 = vsel %vm1263, %v1548, 0
        %v1620 = vsel %vm1263, %v1550, 0
        %v1623 = vsel %vm1263, %v1552, 0
        %1625 = vmatprep.subr.bf16.mxu0 0
        %1626 = vmatpush1.bf16.xpose.msra.mxu0 %v1578
        %1627 = vmatprep.subr.bf16.mxu0 0
        %1628 = vmatpush1.bf16.xpose.msra.mxu0 %v1581
        %1629 = vmatprep.subr.bf16.mxu0 0
        %1630 = vmatpush1.bf16.xpose.msra.mxu0 %v1584
        %1631 = vmatprep.subr.bf16.mxu0 0
        %1632 = vmatpush1.bf16.xpose.msra.mxu0 %v1587
        %1633 = vmatprep.subr.bf16.mxu0 0
        %1634 = vmatpush1.bf16.xpose.msra.mxu0 %v1590
        %1635 = vmatprep.subr.bf16.mxu0 0
        %1636 = vmatpush1.bf16.xpose.msra.mxu0 %v1593
        %1637 = vmatprep.subr.bf16.mxu0 0
        %1638 = vmatpush1.bf16.xpose.msra.mxu0 %v1596
        %1639 = vmatprep.subr.bf16.mxu0 0
        %1640 = vmatpush1.bf16.xpose.msra.mxu0 %v1599
        %1641 = vmatprep.subr.bf16.mxu0 0
        %1642 = vmatpush1.bf16.xpose.msra.mxu0 %v1602
        %1643 = vmatprep.subr.bf16.mxu0 0
        %1644 = vmatpush1.bf16.xpose.msra.mxu0 %v1605
        %1645 = vmatprep.subr.bf16.mxu0 0
        %1646 = vmatpush1.bf16.xpose.msra.mxu0 %v1608
        %1647 = vmatprep.subr.bf16.mxu0 0
        %1648 = vmatpush1.bf16.xpose.msra.mxu0 %v1611
        %1649 = vmatprep.subr.bf16.mxu0 0
        %1650 = vmatpush1.bf16.xpose.msra.mxu0 %v1614
        %1651 = vmatprep.subr.bf16.mxu0 0
        %1652 = vmatpush1.bf16.xpose.msra.mxu0 %v1617
        %1653 = vmatprep.subr.bf16.mxu0 0
        %1654 = vmatpush1.bf16.xpose.msra.mxu0 %v1620
        %1655 = vmatprep.subr.bf16.mxu0 0
        %1656 = vmatpush1.bf16.xpose.msra.mxu0 %v1623
        %1657 = vmatprep.mubr.bf16.mxu0 0
        %1658 = vmatmul.mubr.bf16.gmra.mrb[0].mxu0 %v1554
        %v1659 = vpop.f32.mrb[0].mxu0
        %v1660 = vadd.f32 0.0, %v1659
        %v1661 = vpop.f32.mrb[0].mxu0
        %v1662 = vadd.f32 0.0, %v1661
        %v1663 = vpop.f32.mrb[0].mxu0
        %v1664 = vadd.f32 0.0, %v1663
        %v1665 = vpop.f32.mrb[0].mxu0
        %v1666 = vadd.f32 0.0, %v1665
        %1667 = vmatprep.mubr.bf16.mxu0 0
        %1668 = vmatmul.mubr.bf16.gmra.mrb[0].mxu0 %v1557
        %v1669 = vpop.f32.mrb[0].mxu0
        %v1670 = vadd.f32 0.0, %v1669
        %v1671 = vpop.f32.mrb[0].mxu0
        %v1672 = vadd.f32 0.0, %v1671
        %v1673 = vpop.f32.mrb[0].mxu0
        %v1674 = vadd.f32 0.0, %v1673
        %v1675 = vpop.f32.mrb[0].mxu0
        %v1676 = vadd.f32 0.0, %v1675
        %1677 = vmatprep.mubr.bf16.mxu0 0
        %1678 = vmatmul.mubr.bf16.gmra.mrb[0].mxu0 %v1560
        %v1679 = vpop.f32.mrb[0].mxu0
        %v1680 = vadd.f32 0.0, %v1679
        %v1681 = vpop.f32.mrb[0].mxu0
        %v1682 = vadd.f32 0.0, %v1681
        %v1683 = vpop.f32.mrb[0].mxu0
        %v1684 = vadd.f32 0.0, %v1683
        %v1685 = vpop.f32.mrb[0].mxu0
        %v1686 = vadd.f32 0.0, %v1685
        %1687 = vmatprep.mubr.bf16.mxu0 0
        %1688 = vmatmul.mubr.bf16.gmra.mrb[0].mxu0 %v1563
        %v1689 = vpop.f32.mrb[0].mxu0
        %v1690 = vadd.f32 0.0, %v1689
        %v1691 = vpop.f32.mrb[0].mxu0
        %v1692 = vadd.f32 0.0, %v1691
        %v1693 = vpop.f32.mrb[0].mxu0
        %v1694 = vadd.f32 0.0, %v1693
        %v1695 = vpop.f32.mrb[0].mxu0
        %v1696 = vadd.f32 0.0, %v1695
        %1697 = vmatprep.mubr.bf16.mxu0 0
        %1698 = vmatmul.mubr.bf16.gmra.mrb[0].mxu0 %v1566
        %v1699 = vpop.f32.mrb[0].mxu0
        %v1700 = vadd.f32 0.0, %v1699
        %v1701 = vpop.f32.mrb[0].mxu0
        %v1702 = vadd.f32 0.0, %v1701
        %v1703 = vpop.f32.mrb[0].mxu0
        %v1704 = vadd.f32 0.0, %v1703
        %v1705 = vpop.f32.mrb[0].mxu0
        %v1706 = vadd.f32 0.0, %v1705
        %1707 = vmatprep.mubr.bf16.mxu0 0
        %1708 = vmatmul.mubr.bf16.gmra.mrb[0].mxu0 %v1569
        %v1709 = vpop.f32.mrb[0].mxu0
        %v1710 = vadd.f32 0.0, %v1709
        %v1711 = vpop.f32.mrb[0].mxu0
        %v1712 = vadd.f32 0.0, %v1711
        %v1713 = vpop.f32.mrb[0].mxu0
        %v1714 = vadd.f32 0.0, %v1713
        %v1715 = vpop.f32.mrb[0].mxu0
        %v1716 = vadd.f32 0.0, %v1715
        %1717 = vmatprep.mubr.bf16.mxu0 0
        %1718 = vmatmul.mubr.bf16.gmra.mrb[0].mxu0 %v1572
        %v1719 = vpop.f32.mrb[0].mxu0
        %v1720 = vadd.f32 0.0, %v1719
        %v1721 = vpop.f32.mrb[0].mxu0
        %v1722 = vadd.f32 0.0, %v1721
        %v1723 = vpop.f32.mrb[0].mxu0
        %v1724 = vadd.f32 0.0, %v1723
        %v1725 = vpop.f32.mrb[0].mxu0
        %v1726 = vadd.f32 0.0, %v1725
        %1727 = vmatprep.mubr.bf16.mxu0 0
        %1728 = vmatmul.mubr.bf16.gmra.mrb[0].mxu0 %v1575
        %v1729 = vpop.f32.mrb[0].mxu0
        %v1730 = vadd.f32 0.0, %v1729
        %v1731 = vpop.f32.mrb[0].mxu0
        %v1732 = vadd.f32 0.0, %v1731
        %v1733 = vpop.f32.mrb[0].mxu0
        %v1734 = vadd.f32 0.0, %v1733
        %v1735 = vpop.f32.mrb[0].mxu0
        %v1736 = vadd.f32 0.0, %v1735
        %1737 = vdwg.mxu0
        %s1738 = scalar_lea.vmem [#allocation5], 256
        %1739 = vst [vmem:[%s1738] sm:$0xff] %v1660
        %1740 = vst [vmem:[%s1738 + $0x8] sm:$0xff] %v1662
        %1741 = vst [vmem:[%s1738 + $0x10] sm:$0xff] %v1664
        %1742 = vst [vmem:[%s1738 + $0x18] sm:$0xff] %v1666
        %1743 = vst [vmem:[%s1738 + $0x20] sm:$0xff] %v1670
        %1744 = vst [vmem:[%s1738 + $0x28] sm:$0xff] %v1672
        %1745 = vst [vmem:[%s1738 + $0x30] sm:$0xff] %v1674
        %1746 = vst [vmem:[%s1738 + $0x38] sm:$0xff] %v1676
        %1747 = vst [vmem:[%s1738 + $0x40] sm:$0xff] %v1680
        %1748 = vst [vmem:[%s1738 + $0x48] sm:$0xff] %v1682
        %1749 = vst [vmem:[%s1738 + $0x50] sm:$0xff] %v1684
        %1750 = vst [vmem:[%s1738 + $0x58] sm:$0xff] %v1686
        %1751 = vst [vmem:[%s1738 + $0x60] sm:$0xff] %v1690
        %1752 = vst [vmem:[%s1738 + $0x68] sm:$0xff] %v1692
        %1753 = vst [vmem:[%s1738 + $0x70] sm:$0xff] %v1694
        %1754 = vst [vmem:[%s1738 + $0x78] sm:$0xff] %v1696
        %1755 = vst [vmem:[%s1738 + $0x80] sm:$0xff] %v1700
        %1756 = vst [vmem:[%s1738 + $0x88] sm:$0xff] %v1702
        %1757 = vst [vmem:[%s1738 + $0x90] sm:$0xff] %v1704
        %1758 = vst [vmem:[%s1738 + $0x98] sm:$0xff] %v1706
        %1759 = vst [vmem:[%s1738 + $0xa0] sm:$0xff] %v1710
        %1760 = vst [vmem:[%s1738 + $0xa8] sm:$0xff] %v1712
        %1761 = vst [vmem:[%s1738 + $0xb0] sm:$0xff] %v1714
        %1762 = vst [vmem:[%s1738 + $0xb8] sm:$0xff] %v1716
        %1763 = vst [vmem:[%s1738 + $0xc0] sm:$0xff] %v1720
        %1764 = vst [vmem:[%s1738 + $0xc8] sm:$0xff] %v1722
        %1765 = vst [vmem:[%s1738 + $0xd0] sm:$0xff] %v1724
        %1766 = vst [vmem:[%s1738 + $0xd8] sm:$0xff] %v1726
        %1767 = vst [vmem:[%s1738 + $0xe0] sm:$0xff] %v1730
        %1768 = vst [vmem:[%s1738 + $0xe8] sm:$0xff] %v1732
        %1769 = vst [vmem:[%s1738 + $0xf0] sm:$0xff] %v1734
        %1770 = vst [vmem:[%s1738 + $0xf8] sm:$0xff] %v1736
        %v1771 = vld [vmem:[#allocation5] sm:$0xff]
        %v1772 = vld [vmem:[#allocation5 + $0x8] sm:$0xff]
        %v1773 = vld [vmem:[#allocation5 + $0x10] sm:$0xff]
        %v1774 = vld [vmem:[#allocation5 + $0x18] sm:$0xff]
        %v1775 = vld [vmem:[#allocation5 + $0x20] sm:$0xff]
        %v1776 = vld [vmem:[#allocation5 + $0x28] sm:$0xff]
        %v1777 = vld [vmem:[#allocation5 + $0x30] sm:$0xff]
        %v1778 = vld [vmem:[#allocation5 + $0x38] sm:$0xff]
        %v1779 = vld [vmem:[#allocation5 + $0x40] sm:$0xff]
        %v1780 = vld [vmem:[#allocation5 + $0x48] sm:$0xff]
        %v1781 = vld [vmem:[#allocation5 + $0x50] sm:$0xff]
        %v1782 = vld [vmem:[#allocation5 + $0x58] sm:$0xff]
        %v1783 = vld [vmem:[#allocation5 + $0x60] sm:$0xff]
        %v1784 = vld [vmem:[#allocation5 + $0x68] sm:$0xff]
        %v1785 = vld [vmem:[#allocation5 + $0x70] sm:$0xff]
        %v1786 = vld [vmem:[#allocation5 + $0x78] sm:$0xff]
        %v1787 = vld [vmem:[#allocation5 + $0x80] sm:$0xff]
        %v1788 = vld [vmem:[#allocation5 + $0x88] sm:$0xff]
        %v1789 = vld [vmem:[#allocation5 + $0x90] sm:$0xff]
        %v1790 = vld [vmem:[#allocation5 + $0x98] sm:$0xff]
        %v1791 = vld [vmem:[#allocation5 + $0xa0] sm:$0xff]
        %v1792 = vld [vmem:[#allocation5 + $0xa8] sm:$0xff]
        %v1793 = vld [vmem:[#allocation5 + $0xb0] sm:$0xff]
        %v1794 = vld [vmem:[#allocation5 + $0xb8] sm:$0xff]
        %v1795 = vld [vmem:[#allocation5 + $0xc0] sm:$0xff]
        %v1796 = vld [vmem:[#allocation5 + $0xc8] sm:$0xff]
        %v1797 = vld [vmem:[#allocation5 + $0xd0] sm:$0xff]
        %v1798 = vld [vmem:[#allocation5 + $0xd8] sm:$0xff]
        %v1799 = vld [vmem:[#allocation5 + $0xe0] sm:$0xff]
        %v1800 = vld [vmem:[#allocation5 + $0xe8] sm:$0xff]
        %v1801 = vld [vmem:[#allocation5 + $0xf0] sm:$0xff]
        %v1802 = vld [vmem:[#allocation5 + $0xf8] sm:$0xff]
        %v1803 = vld [vmem:[%s1738] sm:$0xff]
        %v1804 = vld [vmem:[%s1738 + $0x8] sm:$0xff]
        %v1805 = vld [vmem:[%s1738 + $0x10] sm:$0xff]
        %v1806 = vld [vmem:[%s1738 + $0x18] sm:$0xff]
        %v1807 = vld [vmem:[%s1738 + $0x20] sm:$0xff]
        %v1808 = vld [vmem:[%s1738 + $0x28] sm:$0xff]
        %v1809 = vld [vmem:[%s1738 + $0x30] sm:$0xff]
        %v1810 = vld [vmem:[%s1738 + $0x38] sm:$0xff]
        %v1811 = vld [vmem:[%s1738 + $0x40] sm:$0xff]
        %v1812 = vld [vmem:[%s1738 + $0x48] sm:$0xff]
        %v1813 = vld [vmem:[%s1738 + $0x50] sm:$0xff]
        %v1814 = vld [vmem:[%s1738 + $0x58] sm:$0xff]
        %v1815 = vld [vmem:[%s1738 + $0x60] sm:$0xff]
        %v1816 = vld [vmem:[%s1738 + $0x68] sm:$0xff]
        %v1817 = vld [vmem:[%s1738 + $0x70] sm:$0xff]
        %v1818 = vld [vmem:[%s1738 + $0x78] sm:$0xff]
        %v1819 = vld [vmem:[%s1738 + $0x80] sm:$0xff]
        %v1820 = vld [vmem:[%s1738 + $0x88] sm:$0xff]
        %v1821 = vld [vmem:[%s1738 + $0x90] sm:$0xff]
        %v1822 = vld [vmem:[%s1738 + $0x98] sm:$0xff]
        %v1823 = vld [vmem:[%s1738 + $0xa0] sm:$0xff]
        %v1824 = vld [vmem:[%s1738 + $0xa8] sm:$0xff]
        %v1825 = vld [vmem:[%s1738 + $0xb0] sm:$0xff]
        %v1826 = vld [vmem:[%s1738 + $0xb8] sm:$0xff]
        %v1827 = vld [vmem:[%s1738 + $0xc0] sm:$0xff]
        %v1828 = vld [vmem:[%s1738 + $0xc8] sm:$0xff]
        %v1829 = vld [vmem:[%s1738 + $0xd0] sm:$0xff]
        %v1830 = vld [vmem:[%s1738 + $0xd8] sm:$0xff]
        %v1831 = vld [vmem:[%s1738 + $0xe0] sm:$0xff]
        %v1832 = vld [vmem:[%s1738 + $0xe8] sm:$0xff]
        %v1833 = vld [vmem:[%s1738 + $0xf0] sm:$0xff]
        %v1834 = vld [vmem:[%s1738 + $0xf8] sm:$0xff]
        %v1835 = vmax.f32 %v1771, %v1803
        %v1836 = vmax.f32 %v1772, %v1804
        %v1837 = vmax.f32 %v1773, %v1805
        %v1838 = vmax.f32 %v1774, %v1806
        %v1839 = vmax.f32 %v1775, %v1807
        %v1840 = vmax.f32 %v1776, %v1808
        %v1841 = vmax.f32 %v1777, %v1809
        %v1842 = vmax.f32 %v1778, %v1810
        %v1843 = vmax.f32 %v1779, %v1811
        %v1844 = vmax.f32 %v1780, %v1812
        %v1845 = vmax.f32 %v1781, %v1813
        %v1846 = vmax.f32 %v1782, %v1814
        %v1847 = vmax.f32 %v1783, %v1815
        %v1848 = vmax.f32 %v1784, %v1816
        %v1849 = vmax.f32 %v1785, %v1817
        %v1850 = vmax.f32 %v1786, %v1818
        %v1851 = vmax.f32 %v1787, %v1819
        %v1852 = vmax.f32 %v1788, %v1820
        %v1853 = vmax.f32 %v1789, %v1821
        %v1854 = vmax.f32 %v1790, %v1822
        %v1855 = vmax.f32 %v1791, %v1823
        %v1856 = vmax.f32 %v1792, %v1824
        %v1857 = vmax.f32 %v1793, %v1825
        %v1858 = vmax.f32 %v1794, %v1826
        %v1859 = vmax.f32 %v1795, %v1827
        %v1860 = vmax.f32 %v1796, %v1828
        %v1861 = vmax.f32 %v1797, %v1829
        %v1862 = vmax.f32 %v1798, %v1830
        %v1863 = vmax.f32 %v1799, %v1831
        %v1864 = vmax.f32 %v1800, %v1832
        %v1865 = vmax.f32 %v1801, %v1833
        %v1866 = vmax.f32 %v1802, %v1834
        %v1867 = vsub.f32 %v1771, %v1835
        %v1868 = vsub.f32 %v1772, %v1836
        %v1869 = vsub.f32 %v1773, %v1837
        %v1870 = vsub.f32 %v1774, %v1838
        %v1871 = vsub.f32 %v1775, %v1839
        %v1872 = vsub.f32 %v1776, %v1840
        %v1873 = vsub.f32 %v1777, %v1841
        %v1874 = vsub.f32 %v1778, %v1842
        %v1875 = vsub.f32 %v1779, %v1843
        %v1876 = vsub.f32 %v1780, %v1844
        %v1877 = vsub.f32 %v1781, %v1845
        %v1878 = vsub.f32 %v1782, %v1846
        %v1879 = vsub.f32 %v1783, %v1847
        %v1880 = vsub.f32 %v1784, %v1848
        %v1881 = vsub.f32 %v1785, %v1849
        %v1882 = vsub.f32 %v1786, %v1850
        %v1883 = vsub.f32 %v1787, %v1851
        %v1884 = vsub.f32 %v1788, %v1852
        %v1885 = vsub.f32 %v1789, %v1853
        %v1886 = vsub.f32 %v1790, %v1854
        %v1887 = vsub.f32 %v1791, %v1855
        %v1888 = vsub.f32 %v1792, %v1856
        %v1889 = vsub.f32 %v1793, %v1857
        %v1890 = vsub.f32 %v1794, %v1858
        %v1891 = vsub.f32 %v1795, %v1859
        %v1892 = vsub.f32 %v1796, %v1860
        %v1893 = vsub.f32 %v1797, %v1861
        %v1894 = vsub.f32 %v1798, %v1862
        %v1895 = vsub.f32 %v1799, %v1863
        %v1896 = vsub.f32 %v1800, %v1864
        %v1897 = vsub.f32 %v1801, %v1865
        %v1898 = vsub.f32 %v1802, %v1866
        %v1899 = vmul.f32 %v1867, 1.442695
        %v1900 = vpow.pop %v1899
        %v1901 = vmul.f32 %v1868, 1.442695
        %v1902 = vpow.pop %v1901
        %v1903 = vmul.f32 %v1869, 1.442695
        %v1904 = vpow.pop %v1903
        %v1905 = vmul.f32 %v1870, 1.442695
        %v1906 = vpow.pop %v1905
        %v1907 = vmul.f32 %v1871, 1.442695
        %v1908 = vpow.pop %v1907
        %v1909 = vmul.f32 %v1872, 1.442695
        %v1910 = vpow.pop %v1909
        %v1911 = vmul.f32 %v1873, 1.442695
        %v1912 = vpow.pop %v1911
        %v1913 = vmul.f32 %v1874, 1.442695
        %v1914 = vpow.pop %v1913
        %v1915 = vmul.f32 %v1875, 1.442695
        %v1916 = vpow.pop %v1915
        %v1917 = vmul.f32 %v1876, 1.442695
        %v1918 = vpow.pop %v1917
        %v1919 = vmul.f32 %v1877, 1.442695
        %v1920 = vpow.pop %v1919
        %v1921 = vmul.f32 %v1878, 1.442695
        %v1922 = vpow.pop %v1921
        %v1923 = vmul.f32 %v1879, 1.442695
        %v1924 = vpow.pop %v1923
        %v1925 = vmul.f32 %v1880, 1.442695
        %v1926 = vpow.pop %v1925
        %v1927 = vmul.f32 %v1881, 1.442695
        %v1928 = vpow.pop %v1927
        %v1929 = vmul.f32 %v1882, 1.442695
        %v1930 = vpow.pop %v1929
        %v1931 = vmul.f32 %v1883, 1.442695
        %v1932 = vpow.pop %v1931
        %v1933 = vmul.f32 %v1884, 1.442695
        %v1934 = vpow.pop %v1933
        %v1935 = vmul.f32 %v1885, 1.442695
        %v1936 = vpow.pop %v1935
        %v1937 = vmul.f32 %v1886, 1.442695
        %v1938 = vpow.pop %v1937
        %v1939 = vmul.f32 %v1887, 1.442695
        %v1940 = vpow.pop %v1939
        %v1941 = vmul.f32 %v1888, 1.442695
        %v1942 = vpow.pop %v1941
        %v1943 = vmul.f32 %v1889, 1.442695
        %v1944 = vpow.pop %v1943
        %v1945 = vmul.f32 %v1890, 1.442695
        %v1946 = vpow.pop %v1945
        %v1947 = vmul.f32 %v1891, 1.442695
        %v1948 = vpow.pop %v1947
        %v1949 = vmul.f32 %v1892, 1.442695
        %v1950 = vpow.pop %v1949
        %v1951 = vmul.f32 %v1893, 1.442695
        %v1952 = vpow.pop %v1951
        %v1953 = vmul.f32 %v1894, 1.442695
        %v1954 = vpow.pop %v1953
        %v1955 = vmul.f32 %v1895, 1.442695
        %v1956 = vpow.pop %v1955
        %v1957 = vmul.f32 %v1896, 1.442695
        %v1958 = vpow.pop %v1957
        %v1959 = vmul.f32 %v1897, 1.442695
        %v1960 = vpow.pop %v1959
        %v1961 = vmul.f32 %v1898, 1.442695
        %v1962 = vpow.pop %v1961
        %1963 = vst [vmem:[#allocation5] sm:$0xff] %v1900
        %1964 = vst [vmem:[#allocation5 + $0x8] sm:$0xff] %v1902
        %1965 = vst [vmem:[#allocation5 + $0x10] sm:$0xff] %v1904
        %1966 = vst [vmem:[#allocation5 + $0x18] sm:$0xff] %v1906
        %1967 = vst [vmem:[#allocation5 + $0x20] sm:$0xff] %v1908
        %1968 = vst [vmem:[#allocation5 + $0x28] sm:$0xff] %v1910
        %1969 = vst [vmem:[#allocation5 + $0x30] sm:$0xff] %v1912
        %1970 = vst [vmem:[#allocation5 + $0x38] sm:$0xff] %v1914
        %1971 = vst [vmem:[#allocation5 + $0x40] sm:$0xff] %v1916
        %1972 = vst [vmem:[#allocation5 + $0x48] sm:$0xff] %v1918
        %1973 = vst [vmem:[#allocation5 + $0x50] sm:$0xff] %v1920
        %1974 = vst [vmem:[#allocation5 + $0x58] sm:$0xff] %v1922
        %1975 = vst [vmem:[#allocation5 + $0x60] sm:$0xff] %v1924
        %1976 = vst [vmem:[#allocation5 + $0x68] sm:$0xff] %v1926
        %1977 = vst [vmem:[#allocation5 + $0x70] sm:$0xff] %v1928
        %1978 = vst [vmem:[#allocation5 + $0x78] sm:$0xff] %v1930
        %1979 = vst [vmem:[#allocation5 + $0x80] sm:$0xff] %v1932
        %1980 = vst [vmem:[#allocation5 + $0x88] sm:$0xff] %v1934
        %1981 = vst [vmem:[#allocation5 + $0x90] sm:$0xff] %v1936
        %1982 = vst [vmem:[#allocation5 + $0x98] sm:$0xff] %v1938
        %1983 = vst [vmem:[#allocation5 + $0xa0] sm:$0xff] %v1940
        %1984 = vst [vmem:[#allocation5 + $0xa8] sm:$0xff] %v1942
        %1985 = vst [vmem:[#allocation5 + $0xb0] sm:$0xff] %v1944
        %1986 = vst [vmem:[#allocation5 + $0xb8] sm:$0xff] %v1946
        %1987 = vst [vmem:[#allocation5 + $0xc0] sm:$0xff] %v1948
        %1988 = vst [vmem:[#allocation5 + $0xc8] sm:$0xff] %v1950
        %1989 = vst [vmem:[#allocation5 + $0xd0] sm:$0xff] %v1952
        %1990 = vst [vmem:[#allocation5 + $0xd8] sm:$0xff] %v1954
        %1991 = vst [vmem:[#allocation5 + $0xe0] sm:$0xff] %v1956
        %1992 = vst [vmem:[#allocation5 + $0xe8] sm:$0xff] %v1958
        %1993 = vst [vmem:[#allocation5 + $0xf0] sm:$0xff] %v1960
        %1994 = vst [vmem:[#allocation5 + $0xf8] sm:$0xff] %v1962
        %v1995 = vadd.f32 %v1900, 0.0
        %v1996 = vadd.f32 %v1902, 0.0
        %v1997 = vadd.f32 %v1904, 0.0
        %v1998 = vadd.f32 %v1906, 0.0
        %v1999 = vadd.f32 %v1908, 0.0
        %v2000 = vadd.f32 %v1910, 0.0
        %v2001 = vadd.f32 %v1912, 0.0
        %v2002 = vadd.f32 %v1914, 0.0
        %v2003 = vadd.f32 %v1916, 0.0
        %v2004 = vadd.f32 %v1918, 0.0
        %v2005 = vadd.f32 %v1920, 0.0
        %v2006 = vadd.f32 %v1922, 0.0
        %v2007 = vadd.f32 %v1924, 0.0
        %v2008 = vadd.f32 %v1926, 0.0
        %v2009 = vadd.f32 %v1928, 0.0
        %v2010 = vadd.f32 %v1930, 0.0
        %v2011 = vadd.f32 %v1932, 0.0
        %v2012 = vadd.f32 %v1934, 0.0
        %v2013 = vadd.f32 %v1936, 0.0
        %v2014 = vadd.f32 %v1938, 0.0
        %v2015 = vadd.f32 %v1940, 0.0
        %v2016 = vadd.f32 %v1942, 0.0
        %v2017 = vadd.f32 %v1944, 0.0
        %v2018 = vadd.f32 %v1946, 0.0
        %v2019 = vadd.f32 %v1948, 0.0
        %v2020 = vadd.f32 %v1950, 0.0
        %v2021 = vadd.f32 %v1952, 0.0
        %v2022 = vadd.f32 %v1954, 0.0
        %v2023 = vadd.f32 %v1956, 0.0
        %v2024 = vadd.f32 %v1958, 0.0
        %v2025 = vadd.f32 %v1960, 0.0
        %v2026 = vadd.f32 %v1962, 0.0
        %v2027 = vld [vmem:[%s1738] sm:$0xff]
        %v2028 = vld [vmem:[%s1738 + $0x8] sm:$0xff]
        %v2029 = vld [vmem:[%s1738 + $0x10] sm:$0xff]
        %v2030 = vld [vmem:[%s1738 + $0x18] sm:$0xff]
        %v2031 = vld [vmem:[%s1738 + $0x20] sm:$0xff]
        %v2032 = vld [vmem:[%s1738 + $0x28] sm:$0xff]
        %v2033 = vld [vmem:[%s1738 + $0x30] sm:$0xff]
        %v2034 = vld [vmem:[%s1738 + $0x38] sm:$0xff]
        %v2035 = vld [vmem:[%s1738 + $0x40] sm:$0xff]
        %v2036 = vld [vmem:[%s1738 + $0x48] sm:$0xff]
        %v2037 = vld [vmem:[%s1738 + $0x50] sm:$0xff]
        %v2038 = vld [vmem:[%s1738 + $0x58] sm:$0xff]
        %v2039 = vld [vmem:[%s1738 + $0x60] sm:$0xff]
        %v2040 = vld [vmem:[%s1738 + $0x68] sm:$0xff]
        %v2041 = vld [vmem:[%s1738 + $0x70] sm:$0xff]
        %v2042 = vld [vmem:[%s1738 + $0x78] sm:$0xff]
        %v2043 = vld [vmem:[%s1738 + $0x80] sm:$0xff]
        %v2044 = vld [vmem:[%s1738 + $0x88] sm:$0xff]
        %v2045 = vld [vmem:[%s1738 + $0x90] sm:$0xff]
        %v2046 = vld [vmem:[%s1738 + $0x98] sm:$0xff]
        %v2047 = vld [vmem:[%s1738 + $0xa0] sm:$0xff]
        %v2048 = vld [vmem:[%s1738 + $0xa8] sm:$0xff]
        %v2049 = vld [vmem:[%s1738 + $0xb0] sm:$0xff]
        %v2050 = vld [vmem:[%s1738 + $0xb8] sm:$0xff]
        %v2051 = vld [vmem:[%s1738 + $0xc0] sm:$0xff]
        %v2052 = vld [vmem:[%s1738 + $0xc8] sm:$0xff]
        %v2053 = vld [vmem:[%s1738 + $0xd0] sm:$0xff]
        %v2054 = vld [vmem:[%s1738 + $0xd8] sm:$0xff]
        %v2055 = vld [vmem:[%s1738 + $0xe0] sm:$0xff]
        %v2056 = vld [vmem:[%s1738 + $0xe8] sm:$0xff]
        %v2057 = vld [vmem:[%s1738 + $0xf0] sm:$0xff]
        %v2058 = vld [vmem:[%s1738 + $0xf8] sm:$0xff]
        %v2059 = vsub.f32 %v2027, %v1835
        %v2060 = vsub.f32 %v2028, %v1836
        %v2061 = vsub.f32 %v2029, %v1837
        %v2062 = vsub.f32 %v2030, %v1838
        %v2063 = vsub.f32 %v2031, %v1839
        %v2064 = vsub.f32 %v2032, %v1840
        %v2065 = vsub.f32 %v2033, %v1841
        %v2066 = vsub.f32 %v2034, %v1842
        %v2067 = vsub.f32 %v2035, %v1843
        %v2068 = vsub.f32 %v2036, %v1844
        %v2069 = vsub.f32 %v2037, %v1845
        %v2070 = vsub.f32 %v2038, %v1846
        %v2071 = vsub.f32 %v2039, %v1847
        %v2072 = vsub.f32 %v2040, %v1848
        %v2073 = vsub.f32 %v2041, %v1849
        %v2074 = vsub.f32 %v2042, %v1850
        %v2075 = vsub.f32 %v2043, %v1851
        %v2076 = vsub.f32 %v2044, %v1852
        %v2077 = vsub.f32 %v2045, %v1853
        %v2078 = vsub.f32 %v2046, %v1854
        %v2079 = vsub.f32 %v2047, %v1855
        %v2080 = vsub.f32 %v2048, %v1856
        %v2081 = vsub.f32 %v2049, %v1857
        %v2082 = vsub.f32 %v2050, %v1858
        %v2083 = vsub.f32 %v2051, %v1859
        %v2084 = vsub.f32 %v2052, %v1860
        %v2085 = vsub.f32 %v2053, %v1861
        %v2086 = vsub.f32 %v2054, %v1862
        %v2087 = vsub.f32 %v2055, %v1863
        %v2088 = vsub.f32 %v2056, %v1864
        %v2089 = vsub.f32 %v2057, %v1865
        %v2090 = vsub.f32 %v2058, %v1866
        %v2091 = vmul.f32 %v2059, 1.442695
        %v2092 = vpow.pop %v2091
        %v2093 = vmul.f32 %v2060, 1.442695
        %v2094 = vpow.pop %v2093
        %v2095 = vmul.f32 %v2061, 1.442695
        %v2096 = vpow.pop %v2095
        %v2097 = vmul.f32 %v2062, 1.442695
        %v2098 = vpow.pop %v2097
        %v2099 = vmul.f32 %v2063, 1.442695
        %v2100 = vpow.pop %v2099
        %v2101 = vmul.f32 %v2064, 1.442695
        %v2102 = vpow.pop %v2101
        %v2103 = vmul.f32 %v2065, 1.442695
        %v2104 = vpow.pop %v2103
        %v2105 = vmul.f32 %v2066, 1.442695
        %v2106 = vpow.pop %v2105
        %v2107 = vmul.f32 %v2067, 1.442695
        %v2108 = vpow.pop %v2107
        %v2109 = vmul.f32 %v2068, 1.442695
        %v2110 = vpow.pop %v2109
        %v2111 = vmul.f32 %v2069, 1.442695
        %v2112 = vpow.pop %v2111
        %v2113 = vmul.f32 %v2070, 1.442695
        %v2114 = vpow.pop %v2113
        %v2115 = vmul.f32 %v2071, 1.442695
        %v2116 = vpow.pop %v2115
        %v2117 = vmul.f32 %v2072, 1.442695
        %v2118 = vpow.pop %v2117
        %v2119 = vmul.f32 %v2073, 1.442695
        %v2120 = vpow.pop %v2119
        %v2121 = vmul.f32 %v2074, 1.442695
        %v2122 = vpow.pop %v2121
        %v2123 = vmul.f32 %v2075, 1.442695
        %v2124 = vpow.pop %v2123
        %v2125 = vmul.f32 %v2076, 1.442695
        %v2126 = vpow.pop %v2125
        %v2127 = vmul.f32 %v2077, 1.442695
        %v2128 = vpow.pop %v2127
        %v2129 = vmul.f32 %v2078, 1.442695
        %v2130 = vpow.pop %v2129
        %v2131 = vmul.f32 %v2079, 1.442695
        %v2132 = vpow.pop %v2131
        %v2133 = vmul.f32 %v2080, 1.442695
        %v2134 = vpow.pop %v2133
        %v2135 = vmul.f32 %v2081, 1.442695
        %v2136 = vpow.pop %v2135
        %v2137 = vmul.f32 %v2082, 1.442695
        %v2138 = vpow.pop %v2137
        %v2139 = vmul.f32 %v2083, 1.442695
        %v2140 = vpow.pop %v2139
        %v2141 = vmul.f32 %v2084, 1.442695
        %v2142 = vpow.pop %v2141
        %v2143 = vmul.f32 %v2085, 1.442695
        %v2144 = vpow.pop %v2143
        %v2145 = vmul.f32 %v2086, 1.442695
        %v2146 = vpow.pop %v2145
        %v2147 = vmul.f32 %v2087, 1.442695
        %v2148 = vpow.pop %v2147
        %v2149 = vmul.f32 %v2088, 1.442695
        %v2150 = vpow.pop %v2149
        %v2151 = vmul.f32 %v2089, 1.442695
        %v2152 = vpow.pop %v2151
        %v2153 = vmul.f32 %v2090, 1.442695
        %v2154 = vpow.pop %v2153
        %2155 = vst [vmem:[%s1738] sm:$0xff] %v2092
        %2156 = vst [vmem:[%s1738 + $0x8] sm:$0xff] %v2094
        %2157 = vst [vmem:[%s1738 + $0x10] sm:$0xff] %v2096
        %2158 = vst [vmem:[%s1738 + $0x18] sm:$0xff] %v2098
        %2159 = vst [vmem:[%s1738 + $0x20] sm:$0xff] %v2100
        %2160 = vst [vmem:[%s1738 + $0x28] sm:$0xff] %v2102
        %2161 = vst [vmem:[%s1738 + $0x30] sm:$0xff] %v2104
        %2162 = vst [vmem:[%s1738 + $0x38] sm:$0xff] %v2106
        %2163 = vst [vmem:[%s1738 + $0x40] sm:$0xff] %v2108
        %2164 = vst [vmem:[%s1738 + $0x48] sm:$0xff] %v2110
        %2165 = vst [vmem:[%s1738 + $0x50] sm:$0xff] %v2112
        %2166 = vst [vmem:[%s1738 + $0x58] sm:$0xff] %v2114
        %2167 = vst [vmem:[%s1738 + $0x60] sm:$0xff] %v2116
        %2168 = vst [vmem:[%s1738 + $0x68] sm:$0xff] %v2118
        %2169 = vst [vmem:[%s1738 + $0x70] sm:$0xff] %v2120
        %2170 = vst [vmem:[%s1738 + $0x78] sm:$0xff] %v2122
        %2171 = vst [vmem:[%s1738 + $0x80] sm:$0xff] %v2124
        %2172 = vst [vmem:[%s1738 + $0x88] sm:$0xff] %v2126
        %2173 = vst [vmem:[%s1738 + $0x90] sm:$0xff] %v2128
        %2174 = vst [vmem:[%s1738 + $0x98] sm:$0xff] %v2130
        %2175 = vst [vmem:[%s1738 + $0xa0] sm:$0xff] %v2132
        %2176 = vst [vmem:[%s1738 + $0xa8] sm:$0xff] %v2134
        %2177 = vst [vmem:[%s1738 + $0xb0] sm:$0xff] %v2136
        %2178 = vst [vmem:[%s1738 + $0xb8] sm:$0xff] %v2138
        %2179 = vst [vmem:[%s1738 + $0xc0] sm:$0xff] %v2140
        %2180 = vst [vmem:[%s1738 + $0xc8] sm:$0xff] %v2142
        %2181 = vst [vmem:[%s1738 + $0xd0] sm:$0xff] %v2144
        %2182 = vst [vmem:[%s1738 + $0xd8] sm:$0xff] %v2146
        %2183 = vst [vmem:[%s1738 + $0xe0] sm:$0xff] %v2148
        %2184 = vst [vmem:[%s1738 + $0xe8] sm:$0xff] %v2150
        %2185 = vst [vmem:[%s1738 + $0xf0] sm:$0xff] %v2152
        %2186 = vst [vmem:[%s1738 + $0xf8] sm:$0xff] %v2154
        %v2187 = vadd.f32 %v1995, %v2092
        %v2188 = vadd.f32 %v1996, %v2094
        %v2189 = vadd.f32 %v1997, %v2096
        %v2190 = vadd.f32 %v1998, %v2098
        %v2191 = vadd.f32 %v1999, %v2100
        %v2192 = vadd.f32 %v2000, %v2102
        %v2193 = vadd.f32 %v2001, %v2104
        %v2194 = vadd.f32 %v2002, %v2106
        %v2195 = vadd.f32 %v2003, %v2108
        %v2196 = vadd.f32 %v2004, %v2110
        %v2197 = vadd.f32 %v2005, %v2112
        %v2198 = vadd.f32 %v2006, %v2114
        %v2199 = vadd.f32 %v2007, %v2116
        %v2200 = vadd.f32 %v2008, %v2118
        %v2201 = vadd.f32 %v2009, %v2120
        %v2202 = vadd.f32 %v2010, %v2122
        %v2203 = vadd.f32 %v2011, %v2124
        %v2204 = vadd.f32 %v2012, %v2126
        %v2205 = vadd.f32 %v2013, %v2128
        %v2206 = vadd.f32 %v2014, %v2130
        %v2207 = vadd.f32 %v2015, %v2132
        %v2208 = vadd.f32 %v2016, %v2134
        %v2209 = vadd.f32 %v2017, %v2136
        %v2210 = vadd.f32 %v2018, %v2138
        %v2211 = vadd.f32 %v2019, %v2140
        %v2212 = vadd.f32 %v2020, %v2142
        %v2213 = vadd.f32 %v2021, %v2144
        %v2214 = vadd.f32 %v2022, %v2146
        %v2215 = vadd.f32 %v2023, %v2148
        %v2216 = vadd.f32 %v2024, %v2150
        %v2217 = vadd.f32 %v2025, %v2152
        %v2218 = vadd.f32 %v2026, %v2154
        %v2219 = vrcp.pop %v2187
        %v2220 = vrcp.pop %v2188
        %v2221 = vrcp.pop %v2189
        %v2222 = vrcp.pop %v2190
        %v2223 = vrcp.pop %v2191
        %v2224 = vrcp.pop %v2192
        %v2225 = vrcp.pop %v2193
        %v2226 = vrcp.pop %v2194
        %v2227 = vrcp.pop %v2195
        %v2228 = vrcp.pop %v2196
        %v2229 = vrcp.pop %v2197
        %v2230 = vrcp.pop %v2198
        %v2231 = vrcp.pop %v2199
        %v2232 = vrcp.pop %v2200
        %v2233 = vrcp.pop %v2201
        %v2234 = vrcp.pop %v2202
        %v2235 = vrcp.pop %v2203
        %v2236 = vrcp.pop %v2204
        %v2237 = vrcp.pop %v2205
        %v2238 = vrcp.pop %v2206
        %v2239 = vrcp.pop %v2207
        %v2240 = vrcp.pop %v2208
        %v2241 = vrcp.pop %v2209
        %v2242 = vrcp.pop %v2210
        %v2243 = vrcp.pop %v2211
        %v2244 = vrcp.pop %v2212
        %v2245 = vrcp.pop %v2213
        %v2246 = vrcp.pop %v2214
        %v2247 = vrcp.pop %v2215
        %v2248 = vrcp.pop %v2216
        %v2249 = vrcp.pop %v2217
        %v2250 = vrcp.pop %v2218
        %v2251 = vld [vmem:[#allocation5] sm:$0xff]
        %v2252 = vld [vmem:[#allocation5 + $0x8] sm:$0xff]
        %v2253 = vld [vmem:[#allocation5 + $0x10] sm:$0xff]
        %v2254 = vld [vmem:[#allocation5 + $0x18] sm:$0xff]
        %v2255 = vld [vmem:[#allocation5 + $0x20] sm:$0xff]
        %v2256 = vld [vmem:[#allocation5 + $0x28] sm:$0xff]
        %v2257 = vld [vmem:[#allocation5 + $0x30] sm:$0xff]
        %v2258 = vld [vmem:[#allocation5 + $0x38] sm:$0xff]
        %v2259 = vld [vmem:[#allocation5 + $0x40] sm:$0xff]
        %v2260 = vld [vmem:[#allocation5 + $0x48] sm:$0xff]
        %v2261 = vld [vmem:[#allocation5 + $0x50] sm:$0xff]
        %v2262 = vld [vmem:[#allocation5 + $0x58] sm:$0xff]
        %v2263 = vld [vmem:[#allocation5 + $0x60] sm:$0xff]
        %v2264 = vld [vmem:[#allocation5 + $0x68] sm:$0xff]
        %v2265 = vld [vmem:[#allocation5 + $0x70] sm:$0xff]
        %v2266 = vld [vmem:[#allocation5 + $0x78] sm:$0xff]
        %v2267 = vld [vmem:[#allocation5 + $0x80] sm:$0xff]
        %v2268 = vld [vmem:[#allocation5 + $0x88] sm:$0xff]
        %v2269 = vld [vmem:[#allocation5 + $0x90] sm:$0xff]
        %v2270 = vld [vmem:[#allocation5 + $0x98] sm:$0xff]
        %v2271 = vld [vmem:[#allocation5 + $0xa0] sm:$0xff]
        %v2272 = vld [vmem:[#allocation5 + $0xa8] sm:$0xff]
        %v2273 = vld [vmem:[#allocation5 + $0xb0] sm:$0xff]
        %v2274 = vld [vmem:[#allocation5 + $0xb8] sm:$0xff]
        %v2275 = vld [vmem:[#allocation5 + $0xc0] sm:$0xff]
        %v2276 = vld [vmem:[#allocation5 + $0xc8] sm:$0xff]
        %v2277 = vld [vmem:[#allocation5 + $0xd0] sm:$0xff]
        %v2278 = vld [vmem:[#allocation5 + $0xd8] sm:$0xff]
        %v2279 = vld [vmem:[#allocation5 + $0xe0] sm:$0xff]
        %v2280 = vld [vmem:[#allocation5 + $0xe8] sm:$0xff]
        %v2281 = vld [vmem:[#allocation5 + $0xf0] sm:$0xff]
        %v2282 = vld [vmem:[#allocation5 + $0xf8] sm:$0xff]
        %v2283 = vmul.f32 %v2251, %v2219
        %v2284 = vmul.f32 %v2252, %v2220
        %v2285 = vmul.f32 %v2253, %v2221
        %v2286 = vmul.f32 %v2254, %v2222
        %v2287 = vmul.f32 %v2255, %v2223
        %v2288 = vmul.f32 %v2256, %v2224
        %v2289 = vmul.f32 %v2257, %v2225
        %v2290 = vmul.f32 %v2258, %v2226
        %v2291 = vmul.f32 %v2259, %v2227
        %v2292 = vmul.f32 %v2260, %v2228
        %v2293 = vmul.f32 %v2261, %v2229
        %v2294 = vmul.f32 %v2262, %v2230
        %v2295 = vmul.f32 %v2263, %v2231
        %v2296 = vmul.f32 %v2264, %v2232
        %v2297 = vmul.f32 %v2265, %v2233
        %v2298 = vmul.f32 %v2266, %v2234
        %v2299 = vmul.f32 %v2267, %v2235
        %v2300 = vmul.f32 %v2268, %v2236
        %v2301 = vmul.f32 %v2269, %v2237
        %v2302 = vmul.f32 %v2270, %v2238
        %v2303 = vmul.f32 %v2271, %v2239
        %v2304 = vmul.f32 %v2272, %v2240
        %v2305 = vmul.f32 %v2273, %v2241
        %v2306 = vmul.f32 %v2274, %v2242
        %v2307 = vmul.f32 %v2275, %v2243
        %v2308 = vmul.f32 %v2276, %v2244
        %v2309 = vmul.f32 %v2277, %v2245
        %v2310 = vmul.f32 %v2278, %v2246
        %v2311 = vmul.f32 %v2279, %v2247
        %v2312 = vmul.f32 %v2280, %v2248
        %v2313 = vmul.f32 %v2281, %v2249
        %v2314 = vmul.f32 %v2282, %v2250
        %v2315 = vpack.c.bf16 %v2285, %v2283
        %v2316 = vpack.c.bf16 %v2286, %v2284
        %v2317 = vpack.c.bf16 %v2289, %v2287
        %v2318 = vpack.c.bf16 %v2290, %v2288
        %v2319 = vpack.c.bf16 %v2293, %v2291
        %v2320 = vpack.c.bf16 %v2294, %v2292
        %v2321 = vpack.c.bf16 %v2297, %v2295
        %v2322 = vpack.c.bf16 %v2298, %v2296
        %v2323 = vpack.c.bf16 %v2301, %v2299
        %v2324 = vpack.c.bf16 %v2302, %v2300
        %v2325 = vpack.c.bf16 %v2305, %v2303
        %v2326 = vpack.c.bf16 %v2306, %v2304
        %v2327 = vpack.c.bf16 %v2309, %v2307
        %v2328 = vpack.c.bf16 %v2310, %v2308
        %v2329 = vpack.c.bf16 %v2313, %v2311
        %v2330 = vpack.c.bf16 %v2314, %v2312
        %2331 = vmatprep.subr.bf16.mxu0 0
        %2332 = vmatpush1.bf16.msra.mxu0 %v1247
        %2333 = vmatprep.subr.bf16.mxu0 0
        %2334 = vmatpush1.bf16.msra.mxu0 %v1248
        %2335 = vmatprep.subr.bf16.mxu0 0
        %2336 = vmatpush1.bf16.msra.mxu0 %v1249
        %2337 = vmatprep.subr.bf16.mxu0 0
        %2338 = vmatpush1.bf16.msra.mxu0 %v1250
        %2339 = vmatprep.subr.bf16.mxu0 0
        %2340 = vmatpush1.bf16.msra.mxu0 %v1251
        %2341 = vmatprep.subr.bf16.mxu0 0
        %2342 = vmatpush1.bf16.msra.mxu0 %v1252
        %2343 = vmatprep.subr.bf16.mxu0 0
        %2344 = vmatpush1.bf16.msra.mxu0 %v1253
        %2345 = vmatprep.subr.bf16.mxu0 0
        %2346 = vmatpush1.bf16.msra.mxu0 %v1254
        %2347 = vmatprep.subr.bf16.mxu0 0
        %2348 = vmatpush1.bf16.msra.mxu0 %v1255
        %2349 = vmatprep.subr.bf16.mxu0 0
        %2350 = vmatpush1.bf16.msra.mxu0 %v1256
        %2351 = vmatprep.subr.bf16.mxu0 0
        %2352 = vmatpush1.bf16.msra.mxu0 %v1257
        %2353 = vmatprep.subr.bf16.mxu0 0
        %2354 = vmatpush1.bf16.msra.mxu0 %v1258
        %2355 = vmatprep.subr.bf16.mxu0 0
        %2356 = vmatpush1.bf16.msra.mxu0 %v1259
        %2357 = vmatprep.subr.bf16.mxu0 0
        %2358 = vmatpush1.bf16.msra.mxu0 %v1260
        %2359 = vmatprep.subr.bf16.mxu0 0
        %2360 = vmatpush1.bf16.msra.mxu0 %v1261
        %2361 = vmatprep.subr.bf16.mxu0 0
        %2362 = vmatpush1.bf16.msra.mxu0 %v1262
        %2363 = vmatprep.mubr.bf16.mxu0 %v2316
        %2364 = vmatmul.mubr.bf16.gmra.mrb[0].mxu0 %v2315
        %v2365 = vpop.f32.mrb[0].mxu0
        %v2366 = vadd.f32 0.0, %v2365
        %v2367 = vpop.f32.mrb[0].mxu0
        %v2368 = vpop.f32.mrb[0].mxu0
        %v2369 = vadd.f32 0.0, %v2368
        %v2370 = vpop.f32.mrb[0].mxu0
        %2371 = vmatprep.mubr.bf16.mxu0 %v2318
        %2372 = vmatmul.mubr.bf16.gmra.mrb[0].mxu0 %v2317
        %v2373 = vpop.f32.mrb[0].mxu0
        %v2374 = vadd.f32 0.0, %v2373
        %v2375 = vpop.f32.mrb[0].mxu0
        %v2376 = vpop.f32.mrb[0].mxu0
        %v2377 = vadd.f32 0.0, %v2376
        %v2378 = vpop.f32.mrb[0].mxu0
        %2379 = vmatprep.mubr.bf16.mxu0 %v2320
        %2380 = vmatmul.mubr.bf16.gmra.mrb[0].mxu0 %v2319
        %v2381 = vpop.f32.mrb[0].mxu0
        %v2382 = vadd.f32 0.0, %v2381
        %v2383 = vpop.f32.mrb[0].mxu0
        %v2384 = vpop.f32.mrb[0].mxu0
        %v2385 = vadd.f32 0.0, %v2384
        %v2386 = vpop.f32.mrb[0].mxu0
        %2387 = vmatprep.mubr.bf16.mxu0 %v2322
        %2388 = vmatmul.mubr.bf16.gmra.mrb[0].mxu0 %v2321
        %v2389 = vpop.f32.mrb[0].mxu0
        %v2390 = vadd.f32 0.0, %v2389
        %v2391 = vpop.f32.mrb[0].mxu0
        %v2392 = vpop.f32.mrb[0].mxu0
        %v2393 = vadd.f32 0.0, %v2392
        %v2394 = vpop.f32.mrb[0].mxu0
        %2395 = vmatprep.mubr.bf16.mxu0 %v2324
        %2396 = vmatmul.mubr.bf16.gmra.mrb[0].mxu0 %v2323
        %v2397 = vpop.f32.mrb[0].mxu0
        %v2398 = vadd.f32 0.0, %v2397
        %v2399 = vpop.f32.mrb[0].mxu0
        %v2400 = vpop.f32.mrb[0].mxu0
        %v2401 = vadd.f32 0.0, %v2400
        %v2402 = vpop.f32.mrb[0].mxu0
        %2403 = vmatprep.mubr.bf16.mxu0 %v2326
        %2404 = vmatmul.mubr.bf16.gmra.mrb[0].mxu0 %v2325
        %v2405 = vpop.f32.mrb[0].mxu0
        %v2406 = vadd.f32 0.0, %v2405
        %v2407 = vpop.f32.mrb[0].mxu0
        %v2408 = vpop.f32.mrb[0].mxu0
        %v2409 = vadd.f32 0.0, %v2408
        %v2410 = vpop.f32.mrb[0].mxu0
        %2411 = vmatprep.mubr.bf16.mxu0 %v2328
        %2412 = vmatmul.mubr.bf16.gmra.mrb[0].mxu0 %v2327
        %v2413 = vpop.f32.mrb[0].mxu0
        %v2414 = vadd.f32 0.0, %v2413
        %v2415 = vpop.f32.mrb[0].mxu0
        %v2416 = vpop.f32.mrb[0].mxu0
        %v2417 = vadd.f32 0.0, %v2416
        %v2418 = vpop.f32.mrb[0].mxu0
        %2419 = vmatprep.mubr.bf16.mxu0 %v2330
        %2420 = vmatmul.mubr.bf16.gmra.mrb[0].mxu0 %v2329
        %v2421 = vpop.f32.mrb[0].mxu0
        %v2422 = vadd.f32 0.0, %v2421
        %v2423 = vpop.f32.mrb[0].mxu0
        %v2424 = vpop.f32.mrb[0].mxu0
        %v2425 = vadd.f32 0.0, %v2424
        %v2426 = vpop.f32.mrb[0].mxu0
        %2427 = vdwg.mxu0
        %v2428 = vld [vmem:[%s1738] sm:$0xff]
        %v2429 = vld [vmem:[%s1738 + $0x8] sm:$0xff]
        %v2430 = vld [vmem:[%s1738 + $0x10] sm:$0xff]
        %v2431 = vld [vmem:[%s1738 + $0x18] sm:$0xff]
        %v2432 = vld [vmem:[%s1738 + $0x20] sm:$0xff]
        %v2433 = vld [vmem:[%s1738 + $0x28] sm:$0xff]
        %v2434 = vld [vmem:[%s1738 + $0x30] sm:$0xff]
        %v2435 = vld [vmem:[%s1738 + $0x38] sm:$0xff]
        %v2436 = vld [vmem:[%s1738 + $0x40] sm:$0xff]
        %v2437 = vld [vmem:[%s1738 + $0x48] sm:$0xff]
        %v2438 = vld [vmem:[%s1738 + $0x50] sm:$0xff]
        %v2439 = vld [vmem:[%s1738 + $0x58] sm:$0xff]
        %v2440 = vld [vmem:[%s1738 + $0x60] sm:$0xff]
        %v2441 = vld [vmem:[%s1738 + $0x68] sm:$0xff]
        %v2442 = vld [vmem:[%s1738 + $0x70] sm:$0xff]
        %v2443 = vld [vmem:[%s1738 + $0x78] sm:$0xff]
        %v2444 = vld [vmem:[%s1738 + $0x80] sm:$0xff]
        %v2445 = vld [vmem:[%s1738 + $0x88] sm:$0xff]
        %v2446 = vld [vmem:[%s1738 + $0x90] sm:$0xff]
        %v2447 = vld [vmem:[%s1738 + $0x98] sm:$0xff]
        %v2448 = vld [vmem:[%s1738 + $0xa0] sm:$0xff]
        %v2449 = vld [vmem:[%s1738 + $0xa8] sm:$0xff]
        %v2450 = vld [vmem:[%s1738 + $0xb0] sm:$0xff]
        %v2451 = vld [vmem:[%s1738 + $0xb8] sm:$0xff]
        %v2452 = vld [vmem:[%s1738 + $0xc0] sm:$0xff]
        %v2453 = vld [vmem:[%s1738 + $0xc8] sm:$0xff]
        %v2454 = vld [vmem:[%s1738 + $0xd0] sm:$0xff]
        %v2455 = vld [vmem:[%s1738 + $0xd8] sm:$0xff]
        %v2456 = vld [vmem:[%s1738 + $0xe0] sm:$0xff]
        %v2457 = vld [vmem:[%s1738 + $0xe8] sm:$0xff]
        %v2458 = vld [vmem:[%s1738 + $0xf0] sm:$0xff]
        %v2459 = vld [vmem:[%s1738 + $0xf8] sm:$0xff]
        %v2460 = vmul.f32 %v2428, %v2219
        %v2461 = vmul.f32 %v2429, %v2220
        %v2462 = vmul.f32 %v2430, %v2221
        %v2463 = vmul.f32 %v2431, %v2222
        %v2464 = vmul.f32 %v2432, %v2223
        %v2465 = vmul.f32 %v2433, %v2224
        %v2466 = vmul.f32 %v2434, %v2225
        %v2467 = vmul.f32 %v2435, %v2226
        %v2468 = vmul.f32 %v2436, %v2227
        %v2469 = vmul.f32 %v2437, %v2228
        %v2470 = vmul.f32 %v2438, %v2229
        %v2471 = vmul.f32 %v2439, %v2230
        %v2472 = vmul.f32 %v2440, %v2231
        %v2473 = vmul.f32 %v2441, %v2232
        %v2474 = vmul.f32 %v2442, %v2233
        %v2475 = vmul.f32 %v2443, %v2234
        %v2476 = vmul.f32 %v2444, %v2235
        %v2477 = vmul.f32 %v2445, %v2236
        %v2478 = vmul.f32 %v2446, %v2237
        %v2479 = vmul.f32 %v2447, %v2238
        %v2480 = vmul.f32 %v2448, %v2239
        %v2481 = vmul.f32 %v2449, %v2240
        %v2482 = vmul.f32 %v2450, %v2241
        %v2483 = vmul.f32 %v2451, %v2242
        %v2484 = vmul.f32 %v2452, %v2243
        %v2485 = vmul.f32 %v2453, %v2244
        %v2486 = vmul.f32 %v2454, %v2245
        %v2487 = vmul.f32 %v2455, %v2246
        %v2488 = vmul.f32 %v2456, %v2247
        %v2489 = vmul.f32 %v2457, %v2248
        %v2490 = vmul.f32 %v2458, %v2249
        %v2491 = vmul.f32 %v2459, %v2250
        %v2492 = vpack.c.bf16 %v2462, %v2460
        %v2493 = vpack.c.bf16 %v2463, %v2461
        %v2494 = vpack.c.bf16 %v2466, %v2464
        %v2495 = vpack.c.bf16 %v2467, %v2465
        %v2496 = vpack.c.bf16 %v2470, %v2468
        %v2497 = vpack.c.bf16 %v2471, %v2469
        %v2498 = vpack.c.bf16 %v2474, %v2472
        %v2499 = vpack.c.bf16 %v2475, %v2473
        %v2500 = vpack.c.bf16 %v2478, %v2476
        %v2501 = vpack.c.bf16 %v2479, %v2477
        %v2502 = vpack.c.bf16 %v2482, %v2480
        %v2503 = vpack.c.bf16 %v2483, %v2481
        %v2504 = vpack.c.bf16 %v2486, %v2484
        %v2505 = vpack.c.bf16 %v2487, %v2485
        %v2506 = vpack.c.bf16 %v2490, %v2488
        %v2507 = vpack.c.bf16 %v2491, %v2489
        %2524 = vrot.lane.b32.xlu0 %v1247, 120
        %v2525 = vpop.permute.xlu0 %2524
        %2526 = vrot.lane.b32.xlu0 %v1248, 120
        %v2527 = vpop.permute.xlu0 %2526
        %2528 = vrot.lane.b32.xlu0 %v1249, 120
        %v2529 = vpop.permute.xlu0 %2528
        %2530 = vrot.lane.b32.xlu0 %v1250, 120
        %v2531 = vpop.permute.xlu0 %2530
        %2532 = vrot.lane.b32.xlu0 %v1251, 120
        %v2533 = vpop.permute.xlu0 %2532
        %2534 = vrot.lane.b32.xlu0 %v1252, 120
        %v2535 = vpop.permute.xlu0 %2534
        %2536 = vrot.lane.b32.xlu0 %v1253, 120
        %v2537 = vpop.permute.xlu0 %2536
        %2538 = vrot.lane.b32.xlu0 %v1254, 120
        %v2539 = vpop.permute.xlu0 %2538
        %2540 = vrot.lane.b32.xlu0 %v1255, 120
        %v2541 = vpop.permute.xlu0 %2540
        %2542 = vrot.lane.b32.xlu0 %v1256, 120
        %v2543 = vpop.permute.xlu0 %2542
        %2544 = vrot.lane.b32.xlu0 %v1257, 120
        %v2545 = vpop.permute.xlu0 %2544
        %2546 = vrot.lane.b32.xlu0 %v1258, 120
        %v2547 = vpop.permute.xlu0 %2546
        %2548 = vrot.lane.b32.xlu0 %v1259, 120
        %v2549 = vpop.permute.xlu0 %2548
        %2550 = vrot.lane.b32.xlu0 %v1260, 120
        %v2551 = vpop.permute.xlu0 %2550
        %2552 = vrot.lane.b32.xlu0 %v1261, 120
        %v2553 = vpop.permute.xlu0 %2552
        %2554 = vrot.lane.b32.xlu0 %v1262, 120
        %v2555 = vpop.permute.xlu0 %2554
        %2572 = vmatprep.subr.bf16.mxu0 0
        %2573 = vmatpush1.bf16.msra.mxu0 %v2525
        %2574 = vmatprep.subr.bf16.mxu0 0
        %2575 = vmatpush1.bf16.msra.mxu0 %v2527
        %2576 = vmatprep.subr.bf16.mxu0 0
        %2577 = vmatpush1.bf16.msra.mxu0 %v2529
        %2578 = vmatprep.subr.bf16.mxu0 0
        %2579 = vmatpush1.bf16.msra.mxu0 %v2531
        %2580 = vmatprep.subr.bf16.mxu0 0
        %2581 = vmatpush1.bf16.msra.mxu0 %v2533
        %2582 = vmatprep.subr.bf16.mxu0 0
        %2583 = vmatpush1.bf16.msra.mxu0 %v2535
        %2584 = vmatprep.subr.bf16.mxu0 0
        %2585 = vmatpush1.bf16.msra.mxu0 %v2537
        %2586 = vmatprep.subr.bf16.mxu0 0
        %2587 = vmatpush1.bf16.msra.mxu0 %v2539
        %2588 = vmatprep.subr.bf16.mxu0 0
        %2589 = vmatpush1.bf16.msra.mxu0 %v2541
        %2590 = vmatprep.subr.bf16.mxu0 0
        %2591 = vmatpush1.bf16.msra.mxu0 %v2543
        %2592 = vmatprep.subr.bf16.mxu0 0
        %2593 = vmatpush1.bf16.msra.mxu0 %v2545
        %2594 = vmatprep.subr.bf16.mxu0 0
        %2595 = vmatpush1.bf16.msra.mxu0 %v2547
        %2596 = vmatprep.subr.bf16.mxu0 0
        %2597 = vmatpush1.bf16.msra.mxu0 %v2549
        %2598 = vmatprep.subr.bf16.mxu0 0
        %2599 = vmatpush1.bf16.msra.mxu0 %v2551
        %2600 = vmatprep.subr.bf16.mxu0 0
        %2601 = vmatpush1.bf16.msra.mxu0 %v2553
        %2602 = vmatprep.subr.bf16.mxu0 0
        %2603 = vmatpush1.bf16.msra.mxu0 %v2555
        %2604 = vmatprep.mubr.bf16.mxu0 %v2493
        %2605 = vmatmul.mubr.bf16.gmra.mrb[0].mxu0 %v2492
        %v2606 = vpop.f32.mrb[0].mxu0
        %v2607 = vadd.f32 0.0, %v2606
        %v2608 = vpop.f32.mrb[0].mxu0
        %v2609 = vpop.f32.mrb[0].mxu0
        %v2610 = vadd.f32 0.0, %v2609
        %v2611 = vpop.f32.mrb[0].mxu0
        %2612 = vmatprep.mubr.bf16.mxu0 %v2495
        %2613 = vmatmul.mubr.bf16.gmra.mrb[0].mxu0 %v2494
        %v2614 = vpop.f32.mrb[0].mxu0
        %v2615 = vadd.f32 0.0, %v2614
        %v2616 = vpop.f32.mrb[0].mxu0
        %v2617 = vpop.f32.mrb[0].mxu0
        %v2618 = vadd.f32 0.0, %v2617
        %v2619 = vpop.f32.mrb[0].mxu0
        %2620 = vmatprep.mubr.bf16.mxu0 %v2497
        %2621 = vmatmul.mubr.bf16.gmra.mrb[0].mxu0 %v2496
        %v2622 = vpop.f32.mrb[0].mxu0
        %v2623 = vadd.f32 0.0, %v2622
        %v2624 = vpop.f32.mrb[0].mxu0
        %v2625 = vpop.f32.mrb[0].mxu0
        %v2626 = vadd.f32 0.0, %v2625
        %v2627 = vpop.f32.mrb[0].mxu0
        %2628 = vmatprep.mubr.bf16.mxu0 %v2499
        %2629 = vmatmul.mubr.bf16.gmra.mrb[0].mxu0 %v2498
        %v2630 = vpop.f32.mrb[0].mxu0
        %v2631 = vadd.f32 0.0, %v2630
        %v2632 = vpop.f32.mrb[0].mxu0
        %v2633 = vpop.f32.mrb[0].mxu0
        %v2634 = vadd.f32 0.0, %v2633
        %v2635 = vpop.f32.mrb[0].mxu0
        %2636 = vmatprep.mubr.bf16.mxu0 %v2501
        %2637 = vmatmul.mubr.bf16.gmra.mrb[0].mxu0 %v2500
        %v2638 = vpop.f32.mrb[0].mxu0
        %v2639 = vadd.f32 0.0, %v2638
        %v2640 = vpop.f32.mrb[0].mxu0
        %v2641 = vpop.f32.mrb[0].mxu0
        %v2642 = vadd.f32 0.0, %v2641
        %v2643 = vpop.f32.mrb[0].mxu0
        %2644 = vmatprep.mubr.bf16.mxu0 %v2503
        %2645 = vmatmul.mubr.bf16.gmra.mrb[0].mxu0 %v2502
        %v2646 = vpop.f32.mrb[0].mxu0
        %v2647 = vadd.f32 0.0, %v2646
        %v2648 = vpop.f32.mrb[0].mxu0
        %v2649 = vpop.f32.mrb[0].mxu0
        %v2650 = vadd.f32 0.0, %v2649
        %v2651 = vpop.f32.mrb[0].mxu0
        %2652 = vmatprep.mubr.bf16.mxu0 %v2505
        %2653 = vmatmul.mubr.bf16.gmra.mrb[0].mxu0 %v2504
        %v2654 = vpop.f32.mrb[0].mxu0
        %v2655 = vadd.f32 0.0, %v2654
        %v2656 = vpop.f32.mrb[0].mxu0
        %v2657 = vpop.f32.mrb[0].mxu0
        %v2658 = vadd.f32 0.0, %v2657
        %v2659 = vpop.f32.mrb[0].mxu0
        %2660 = vmatprep.mubr.bf16.mxu0 %v2507
        %2661 = vmatmul.mubr.bf16.gmra.mrb[0].mxu0 %v2506
        %v2662 = vpop.f32.mrb[0].mxu0
        %v2663 = vadd.f32 0.0, %v2662
        %v2664 = vpop.f32.mrb[0].mxu0
        %v2665 = vpop.f32.mrb[0].mxu0
        %v2666 = vadd.f32 0.0, %v2665
        %v2667 = vpop.f32.mrb[0].mxu0
        %2668 = vdwg.mxu0
        %2685 = vrot.lane.b32.xlu0 %v2607, 8
        %v2686 = vpop.permute.xlu0 %2685
        %2687 = vrot.lane.b32.xlu0 %v2610, 8
        %v2688 = vpop.permute.xlu0 %2687
        %2689 = vrot.lane.b32.xlu0 %v2615, 8
        %v2690 = vpop.permute.xlu0 %2689
        %2691 = vrot.lane.b32.xlu0 %v2618, 8
        %v2692 = vpop.permute.xlu0 %2691
        %2693 = vrot.lane.b32.xlu0 %v2623, 8
        %v2694 = vpop.permute.xlu0 %2693
        %2695 = vrot.lane.b32.xlu0 %v2626, 8
        %v2696 = vpop.permute.xlu0 %2695
        %2697 = vrot.lane.b32.xlu0 %v2631, 8
        %v2698 = vpop.permute.xlu0 %2697
        %2699 = vrot.lane.b32.xlu0 %v2634, 8
        %v2700 = vpop.permute.xlu0 %2699
        %2701 = vrot.lane.b32.xlu0 %v2639, 8
        %v2702 = vpop.permute.xlu0 %2701
        %2703 = vrot.lane.b32.xlu0 %v2642, 8
        %v2704 = vpop.permute.xlu0 %2703
        %2705 = vrot.lane.b32.xlu0 %v2647, 8
        %v2706 = vpop.permute.xlu0 %2705
        %2707 = vrot.lane.b32.xlu0 %v2650, 8
        %v2708 = vpop.permute.xlu0 %2707
        %2709 = vrot.lane.b32.xlu0 %v2655, 8
        %v2710 = vpop.permute.xlu0 %2709
        %2711 = vrot.lane.b32.xlu0 %v2658, 8
        %v2712 = vpop.permute.xlu0 %2711
        %2713 = vrot.lane.b32.xlu0 %v2663, 8
        %v2714 = vpop.permute.xlu0 %2713
        %2715 = vrot.lane.b32.xlu0 %v2666, 8
        %v2716 = vpop.permute.xlu0 %2715
        %v2733 = vsel %vm1263, %v2366, %v2686
        %v2734 = vsel %vm1263, %v2369, %v2688
        %v2735 = vsel %vm1263, %v2374, %v2690
        %v2736 = vsel %vm1263, %v2377, %v2692
        %v2737 = vsel %vm1263, %v2382, %v2694
        %v2738 = vsel %vm1263, %v2385, %v2696
        %v2739 = vsel %vm1263, %v2390, %v2698
        %v2740 = vsel %vm1263, %v2393, %v2700
        %v2741 = vsel %vm1263, %v2398, %v2702
        %v2742 = vsel %vm1263, %v2401, %v2704
        %v2743 = vsel %vm1263, %v2406, %v2706
        %v2744 = vsel %vm1263, %v2409, %v2708
        %v2745 = vsel %vm1263, %v2414, %v2710
        %v2746 = vsel %vm1263, %v2417, %v2712
        %v2747 = vsel %vm1263, %v2422, %v2714
        %v2748 = vsel %vm1263, %v2425, %v2716
        %v2749 = vpack.c.bf16 %v2734, %v2733
        %v2750 = vpack.c.bf16 %v2736, %v2735
        %v2751 = vpack.c.bf16 %v2738, %v2737
        %v2752 = vpack.c.bf16 %v2740, %v2739
        %v2753 = vpack.c.bf16 %v2742, %v2741
        %v2754 = vpack.c.bf16 %v2744, %v2743
        %v2755 = vpack.c.bf16 %v2746, %v2745
        %v2756 = vpack.c.bf16 %v2748, %v2747
        %v2757 = vld [vmem:[%s4] sm:$0xf]
        %v2758 = vld [vmem:[%s4 + $0x4] sm:$0xf]
        %v2759 = vld [vmem:[%s5] sm:$0x1]
        %v2761 = vlaneseq
        %v2762 = vshrl.u32 %v2761, 7
        %v2763 = vsub.s32 0, %v2762
        %v2764 = vrot.slane %v2759, %v2763
        %v2768 = vunpack.c.l.b16 %v2757
        %v2769 = vunpack.c.l.b16 %v2758
        %v2770 = vpack.c.b16 %v2769, %v2768
        %vm2772 = vcmask 130048
        %v2774 = vsel %vm2772, %v2749, 0
        %v2777 = vsel %vm2772, %v2750, 0
        %v2780 = vsel %vm2772, %v2751, 0
        %v2783 = vsel %vm2772, %v2752, 0
        %v2786 = vsel %vm2772, %v2753, 0
        %v2789 = vsel %vm2772, %v2754, 0
        %v2792 = vsel %vm2772, %v2755, 0
        %v2795 = vsel %vm2772, %v2756, 0
        %2797 = vmatprep.subr.bf16.mxu0 0
        %2798 = vmatpush1.bf16.msra.mxu0 %v2770
        %2799 = vmatprep.subr.bf16.mxu0 0
        %2800 = vmatpush1.bf16.msra.mxu0 0
        %2801 = vmatprep.subr.bf16.mxu0 0
        %2802 = vmatpush1.bf16.msra.mxu0 0
        %2803 = vmatprep.subr.bf16.mxu0 0
        %2804 = vmatpush1.bf16.msra.mxu0 0
        %2805 = vmatprep.subr.bf16.mxu0 0
        %2806 = vmatpush1.bf16.msra.mxu0 0
        %2807 = vmatprep.subr.bf16.mxu0 0
        %2808 = vmatpush1.bf16.msra.mxu0 0
        %2809 = vmatprep.subr.bf16.mxu0 0
        %2810 = vmatpush1.bf16.msra.mxu0 0
        %2811 = vmatprep.subr.bf16.mxu0 0
        %2812 = vmatpush1.bf16.msra.mxu0 0
        %2813 = vmatprep.subr.bf16.mxu0 0
        %2814 = vmatpush1.bf16.msra.mxu0 0
        %2815 = vmatprep.subr.bf16.mxu0 0
        %2816 = vmatpush1.bf16.msra.mxu0 0
        %2817 = vmatprep.subr.bf16.mxu0 0
        %2818 = vmatpush1.bf16.msra.mxu0 0
        %2819 = vmatprep.subr.bf16.mxu0 0
        %2820 = vmatpush1.bf16.msra.mxu0 0
        %2821 = vmatprep.subr.bf16.mxu0 0
        %2822 = vmatpush1.bf16.msra.mxu0 0
        %2823 = vmatprep.subr.bf16.mxu0 0
        %2824 = vmatpush1.bf16.msra.mxu0 0
        %2825 = vmatprep.subr.bf16.mxu0 0
        %2826 = vmatpush1.bf16.msra.mxu0 0
        %2827 = vmatprep.subr.bf16.mxu0 0
        %2828 = vmatpush1.bf16.msra.mxu0 0
        %2829 = vmatprep.mubr.bf16.mxu0 0
        %2830 = vmatmul.mubr.bf16.gmra.mrb[0].mxu0 %v2774
        %v2831 = vpop.f32.mrb[0].mxu0
        %v2832 = vadd.f32 %v2764, %v2831
        %v2833 = vpop.f32.mrb[0].mxu0
        %v2834 = vpop.f32.mrb[0].mxu0
        %v2835 = vadd.f32 %v2764, %v2834
        %v2836 = vpop.f32.mrb[0].mxu0
        %2837 = vmatprep.mubr.bf16.mxu0 0
        %2838 = vmatmul.mubr.bf16.gmra.mrb[0].mxu0 %v2777
        %v2839 = vpop.f32.mrb[0].mxu0
        %v2840 = vadd.f32 %v2764, %v2839
        %v2841 = vpop.f32.mrb[0].mxu0
        %v2842 = vpop.f32.mrb[0].mxu0
        %v2843 = vadd.f32 %v2764, %v2842
        %v2844 = vpop.f32.mrb[0].mxu0
        %2845 = vmatprep.mubr.bf16.mxu0 0
        %2846 = vmatmul.mubr.bf16.gmra.mrb[0].mxu0 %v2780
        %v2847 = vpop.f32.mrb[0].mxu0
        %v2848 = vadd.f32 %v2764, %v2847
        %v2849 = vpop.f32.mrb[0].mxu0
        %v2850 = vpop.f32.mrb[0].mxu0
        %v2851 = vadd.f32 %v2764, %v2850
        %v2852 = vpop.f32.mrb[0].mxu0
        %2853 = vmatprep.mubr.bf16.mxu0 0
        %2854 = vmatmul.mubr.bf16.gmra.mrb[0].mxu0 %v2783
        %v2855 = vpop.f32.mrb[0].mxu0
        %v2856 = vadd.f32 %v2764, %v2855
        %v2857 = vpop.f32.mrb[0].mxu0
        %v2858 = vpop.f32.mrb[0].mxu0
        %v2859 = vadd.f32 %v2764, %v2858
        %v2860 = vpop.f32.mrb[0].mxu0
        %2861 = vmatprep.mubr.bf16.mxu0 0
        %2862 = vmatmul.mubr.bf16.gmra.mrb[0].mxu0 %v2786
        %v2863 = vpop.f32.mrb[0].mxu0
        %v2864 = vadd.f32 %v2764, %v2863
        %v2865 = vpop.f32.mrb[0].mxu0
        %v2866 = vpop.f32.mrb[0].mxu0
        %v2867 = vadd.f32 %v2764, %v2866
        %v2868 = vpop.f32.mrb[0].mxu0
        %2869 = vmatprep.mubr.bf16.mxu0 0
        %2870 = vmatmul.mubr.bf16.gmra.mrb[0].mxu0 %v2789
        %v2871 = vpop.f32.mrb[0].mxu0
        %v2872 = vadd.f32 %v2764, %v2871
        %v2873 = vpop.f32.mrb[0].mxu0
        %v2874 = vpop.f32.mrb[0].mxu0
        %v2875 = vadd.f32 %v2764, %v2874
        %v2876 = vpop.f32.mrb[0].mxu0
        %2877 = vmatprep.mubr.bf16.mxu0 0
        %2878 = vmatmul.mubr.bf16.gmra.mrb[0].mxu0 %v2792
        %v2879 = vpop.f32.mrb[0].mxu0
        %v2880 = vadd.f32 %v2764, %v2879
        %v2881 = vpop.f32.mrb[0].mxu0
        %v2882 = vpop.f32.mrb[0].mxu0
        %v2883 = vadd.f32 %v2764, %v2882
        %v2884 = vpop.f32.mrb[0].mxu0
        %2885 = vmatprep.mubr.bf16.mxu0 0
        %2886 = vmatmul.mubr.bf16.gmra.mrb[0].mxu0 %v2795
        %v2887 = vpop.f32.mrb[0].mxu0
        %v2888 = vadd.f32 %v2764, %v2887
        %v2889 = vpop.f32.mrb[0].mxu0
        %v2890 = vpop.f32.mrb[0].mxu0
        %v2891 = vadd.f32 %v2764, %v2890
        %v2892 = vpop.f32.mrb[0].mxu0
        %2893 = vdwg.mxu0
        %v2894 = vld [vmem:[%s460] sm:$0xff]
        %v2895 = vld [vmem:[%s460 + $0x8] sm:$0xff]
        %v2896 = vld [vmem:[%s460 + $0x10] sm:$0xff]
        %v2897 = vld [vmem:[%s460 + $0x18] sm:$0xff]
        %v2898 = vld [vmem:[%s460 + $0x20] sm:$0xff]
        %v2899 = vld [vmem:[%s460 + $0x28] sm:$0xff]
        %v2900 = vld [vmem:[%s460 + $0x30] sm:$0xff]
        %v2901 = vld [vmem:[%s460 + $0x38] sm:$0xff]
        %v2902 = vld [vmem:[%s460 + $0x40] sm:$0xff]
        %v2903 = vld [vmem:[%s460 + $0x48] sm:$0xff]
        %v2904 = vld [vmem:[%s460 + $0x50] sm:$0xff]
        %v2905 = vld [vmem:[%s460 + $0x58] sm:$0xff]
        %v2906 = vld [vmem:[%s460 + $0x60] sm:$0xff]
        %v2907 = vld [vmem:[%s460 + $0x68] sm:$0xff]
        %v2908 = vld [vmem:[%s460 + $0x70] sm:$0xff]
        %v2909 = vld [vmem:[%s460 + $0x78] sm:$0xff]
        %v2910 = vadd.f32 %v2894, %v2832
        %v2911 = vadd.f32 %v2895, %v2835
        %v2912 = vadd.f32 %v2896, %v2840
        %v2913 = vadd.f32 %v2897, %v2843
        %v2914 = vadd.f32 %v2898, %v2848
        %v2915 = vadd.f32 %v2899, %v2851
        %v2916 = vadd.f32 %v2900, %v2856
        %v2917 = vadd.f32 %v2901, %v2859
        %v2918 = vadd.f32 %v2902, %v2864
        %v2919 = vadd.f32 %v2903, %v2867
        %v2920 = vadd.f32 %v2904, %v2872
        %v2921 = vadd.f32 %v2905, %v2875
        %v2922 = vadd.f32 %v2906, %v2880
        %v2923 = vadd.f32 %v2907, %v2883
        %v2924 = vadd.f32 %v2908, %v2888
        %v2925 = vadd.f32 %v2909, %v2891
        %vm2926 = vcmask 31744
        %v2927 = vsel %vm2926, %v2910, 0.0
        %2928 = vadd.xlane.f32.xlu0 %v2927
        %v2929 = vpop.xlane.xlu0 %2928
        %v2930 = vsel %vm2926, %v2911, 0.0
        %2931 = vadd.xlane.f32.xlu0 %v2930
        %v2932 = vpop.xlane.xlu0 %2931
        %v2933 = vsel %vm2926, %v2912, 0.0
        %2934 = vadd.xlane.f32.xlu0 %v2933
        %v2935 = vpop.xlane.xlu0 %2934
        %v2936 = vsel %vm2926, %v2913, 0.0
        %2937 = vadd.xlane.f32.xlu0 %v2936
        %v2938 = vpop.xlane.xlu0 %2937
        %v2939 = vsel %vm2926, %v2914, 0.0
        %2940 = vadd.xlane.f32.xlu0 %v2939
        %v2941 = vpop.xlane.xlu0 %2940
        %v2942 = vsel %vm2926, %v2915, 0.0
        %2943 = vadd.xlane.f32.xlu0 %v2942
        %v2944 = vpop.xlane.xlu0 %2943
        %v2945 = vsel %vm2926, %v2916, 0.0
        %2946 = vadd.xlane.f32.xlu0 %v2945
        %v2947 = vpop.xlane.xlu0 %2946
        %v2948 = vsel %vm2926, %v2917, 0.0
        %2949 = vadd.xlane.f32.xlu0 %v2948
        %v2950 = vpop.xlane.xlu0 %2949
        %v2951 = vsel %vm2926, %v2918, 0.0
        %2952 = vadd.xlane.f32.xlu0 %v2951
        %v2953 = vpop.xlane.xlu0 %2952
        %v2954 = vsel %vm2926, %v2919, 0.0
        %2955 = vadd.xlane.f32.xlu0 %v2954
        %v2956 = vpop.xlane.xlu0 %2955
        %v2957 = vsel %vm2926, %v2920, 0.0
        %2958 = vadd.xlane.f32.xlu0 %v2957
        %v2959 = vpop.xlane.xlu0 %2958
        %v2960 = vsel %vm2926, %v2921, 0.0
        %2961 = vadd.xlane.f32.xlu0 %v2960
        %v2962 = vpop.xlane.xlu0 %2961
        %v2963 = vsel %vm2926, %v2922, 0.0
        %2964 = vadd.xlane.f32.xlu0 %v2963
        %v2965 = vpop.xlane.xlu0 %2964
        %v2966 = vsel %vm2926, %v2923, 0.0
        %2967 = vadd.xlane.f32.xlu0 %v2966
        %v2968 = vpop.xlane.xlu0 %2967
        %v2969 = vsel %vm2926, %v2924, 0.0
        %2970 = vadd.xlane.f32.xlu0 %v2969
        %v2971 = vpop.xlane.xlu0 %2970
        %v2972 = vsel %vm2926, %v2925, 0.0
        %2973 = vadd.xlane.f32.xlu0 %v2972
        %v2974 = vpop.xlane.xlu0 %2973
        %v2975 = vmul.f32 %v2929, 0.25
        %v2976 = vmul.f32 %v2932, 0.25
        %v2977 = vmul.f32 %v2935, 0.25
        %v2978 = vmul.f32 %v2938, 0.25
        %v2979 = vmul.f32 %v2941, 0.25
        %v2980 = vmul.f32 %v2944, 0.25
        %v2981 = vmul.f32 %v2947, 0.25
        %v2982 = vmul.f32 %v2950, 0.25
        %v2983 = vmul.f32 %v2953, 0.25
        %v2984 = vmul.f32 %v2956, 0.25
        %v2985 = vmul.f32 %v2959, 0.25
        %v2986 = vmul.f32 %v2962, 0.25
        %v2987 = vmul.f32 %v2965, 0.25
        %v2988 = vmul.f32 %v2968, 0.25
        %v2989 = vmul.f32 %v2971, 0.25
        %v2990 = vmul.f32 %v2974, 0.25
        %v2991 = vmul.f32 %v2910, %v2910
        %v2992 = vmul.f32 %v2911, %v2911
        %v2993 = vmul.f32 %v2912, %v2912
        %v2994 = vmul.f32 %v2913, %v2913
        %v2995 = vmul.f32 %v2914, %v2914
        %v2996 = vmul.f32 %v2915, %v2915
        %v2997 = vmul.f32 %v2916, %v2916
        %v2998 = vmul.f32 %v2917, %v2917
        %v2999 = vmul.f32 %v2918, %v2918
        %v3000 = vmul.f32 %v2919, %v2919
        %v3001 = vmul.f32 %v2920, %v2920
        %v3002 = vmul.f32 %v2921, %v2921
        %v3003 = vmul.f32 %v2922, %v2922
        %v3004 = vmul.f32 %v2923, %v2923
        %v3005 = vmul.f32 %v2924, %v2924
        %v3006 = vmul.f32 %v2925, %v2925
        %v3007 = vsel %vm2926, %v2991, 0.0
        %3008 = vadd.xlane.f32.xlu0 %v3007
        %v3009 = vpop.xlane.xlu0 %3008
        %v3010 = vsel %vm2926, %v2992, 0.0
        %3011 = vadd.xlane.f32.xlu0 %v3010
        %v3012 = vpop.xlane.xlu0 %3011
        %v3013 = vsel %vm2926, %v2993, 0.0
        %3014 = vadd.xlane.f32.xlu0 %v3013
        %v3015 = vpop.xlane.xlu0 %3014
        %v3016 = vsel %vm2926, %v2994, 0.0
        %3017 = vadd.xlane.f32.xlu0 %v3016
        %v3018 = vpop.xlane.xlu0 %3017
        %v3019 = vsel %vm2926, %v2995, 0.0
        %3020 = vadd.xlane.f32.xlu0 %v3019
        %v3021 = vpop.xlane.xlu0 %3020
        %v3022 = vsel %vm2926, %v2996, 0.0
        %3023 = vadd.xlane.f32.xlu0 %v3022
        %v3024 = vpop.xlane.xlu0 %3023
        %v3025 = vsel %vm2926, %v2997, 0.0
        %3026 = vadd.xlane.f32.xlu0 %v3025
        %v3027 = vpop.xlane.xlu0 %3026
        %v3028 = vsel %vm2926, %v2998, 0.0
        %3029 = vadd.xlane.f32.xlu0 %v3028
        %v3030 = vpop.xlane.xlu0 %3029
        %v3031 = vsel %vm2926, %v2999, 0.0
        %3032 = vadd.xlane.f32.xlu0 %v3031
        %v3033 = vpop.xlane.xlu0 %3032
        %v3034 = vsel %vm2926, %v3000, 0.0
        %3035 = vadd.xlane.f32.xlu0 %v3034
        %v3036 = vpop.xlane.xlu0 %3035
        %v3037 = vsel %vm2926, %v3001, 0.0
        %3038 = vadd.xlane.f32.xlu0 %v3037
        %v3039 = vpop.xlane.xlu0 %3038
        %v3040 = vsel %vm2926, %v3002, 0.0
        %3041 = vadd.xlane.f32.xlu0 %v3040
        %v3042 = vpop.xlane.xlu0 %3041
        %v3043 = vsel %vm2926, %v3003, 0.0
        %3044 = vadd.xlane.f32.xlu0 %v3043
        %v3045 = vpop.xlane.xlu0 %3044
        %v3046 = vsel %vm2926, %v3004, 0.0
        %3047 = vadd.xlane.f32.xlu0 %v3046
        %v3048 = vpop.xlane.xlu0 %3047
        %v3049 = vsel %vm2926, %v3005, 0.0
        %3050 = vadd.xlane.f32.xlu0 %v3049
        %v3051 = vpop.xlane.xlu0 %3050
        %v3052 = vsel %vm2926, %v3006, 0.0
        %3053 = vadd.xlane.f32.xlu0 %v3052
        %v3054 = vpop.xlane.xlu0 %3053
        %v3055 = vmul.f32 %v3009, 0.25
        %v3056 = vmul.f32 %v3012, 0.25
        %v3057 = vmul.f32 %v3015, 0.25
        %v3058 = vmul.f32 %v3018, 0.25
        %v3059 = vmul.f32 %v3021, 0.25
        %v3060 = vmul.f32 %v3024, 0.25
        %v3061 = vmul.f32 %v3027, 0.25
        %v3062 = vmul.f32 %v3030, 0.25
        %v3063 = vmul.f32 %v3033, 0.25
        %v3064 = vmul.f32 %v3036, 0.25
        %v3065 = vmul.f32 %v3039, 0.25
        %v3066 = vmul.f32 %v3042, 0.25
        %v3067 = vmul.f32 %v3045, 0.25
        %v3068 = vmul.f32 %v3048, 0.25
        %v3069 = vmul.f32 %v3051, 0.25
        %v3070 = vmul.f32 %v3054, 0.25
        %v3071 = vmul.f32 %v2975, %v2975
        %v3072 = vmul.f32 %v2976, %v2976
        %v3073 = vmul.f32 %v2977, %v2977
        %v3074 = vmul.f32 %v2978, %v2978
        %v3075 = vmul.f32 %v2979, %v2979
        %v3076 = vmul.f32 %v2980, %v2980
        %v3077 = vmul.f32 %v2981, %v2981
        %v3078 = vmul.f32 %v2982, %v2982
        %v3079 = vmul.f32 %v2983, %v2983
        %v3080 = vmul.f32 %v2984, %v2984
        %v3081 = vmul.f32 %v2985, %v2985
        %v3082 = vmul.f32 %v2986, %v2986
        %v3083 = vmul.f32 %v2987, %v2987
        %v3084 = vmul.f32 %v2988, %v2988
        %v3085 = vmul.f32 %v2989, %v2989
        %v3086 = vmul.f32 %v2990, %v2990
        %v3087 = vsub.f32 %v3055, %v3071
        %v3088 = vsub.f32 %v3056, %v3072
        %v3089 = vsub.f32 %v3057, %v3073
        %v3090 = vsub.f32 %v3058, %v3074
        %v3091 = vsub.f32 %v3059, %v3075
        %v3092 = vsub.f32 %v3060, %v3076
        %v3093 = vsub.f32 %v3061, %v3077
        %v3094 = vsub.f32 %v3062, %v3078
        %v3095 = vsub.f32 %v3063, %v3079
        %v3096 = vsub.f32 %v3064, %v3080
        %v3097 = vsub.f32 %v3065, %v3081
        %v3098 = vsub.f32 %v3066, %v3082
        %v3099 = vsub.f32 %v3067, %v3083
        %v3100 = vsub.f32 %v3068, %v3084
        %v3101 = vsub.f32 %v3069, %v3085
        %v3102 = vsub.f32 %v3070, %v3086
        %v3103 = vsub.f32 %v2910, %v2975
        %v3104 = vsub.f32 %v2911, %v2976
        %v3105 = vsub.f32 %v2912, %v2977
        %v3106 = vsub.f32 %v2913, %v2978
        %v3107 = vsub.f32 %v2914, %v2979
        %v3108 = vsub.f32 %v2915, %v2980
        %v3109 = vsub.f32 %v2916, %v2981
        %v3110 = vsub.f32 %v2917, %v2982
        %v3111 = vsub.f32 %v2918, %v2983
        %v3112 = vsub.f32 %v2919, %v2984
        %v3113 = vsub.f32 %v2920, %v2985
        %v3114 = vsub.f32 %v2921, %v2986
        %v3115 = vsub.f32 %v2922, %v2987
        %v3116 = vsub.f32 %v2923, %v2988
        %v3117 = vsub.f32 %v2924, %v2989
        %v3118 = vsub.f32 %v2925, %v2990
        %v3119 = vadd.f32 %v3087, 1e-05
        %v3120 = vadd.f32 %v3088, 1e-05
        %v3121 = vadd.f32 %v3089, 1e-05
        %v3122 = vadd.f32 %v3090, 1e-05
        %v3123 = vadd.f32 %v3091, 1e-05
        %v3124 = vadd.f32 %v3092, 1e-05
        %v3125 = vadd.f32 %v3093, 1e-05
        %v3126 = vadd.f32 %v3094, 1e-05
        %v3127 = vadd.f32 %v3095, 1e-05
        %v3128 = vadd.f32 %v3096, 1e-05
        %v3129 = vadd.f32 %v3097, 1e-05
        %v3130 = vadd.f32 %v3098, 1e-05
        %v3131 = vadd.f32 %v3099, 1e-05
        %v3132 = vadd.f32 %v3100, 1e-05
        %v3133 = vadd.f32 %v3101, 1e-05
        %v3134 = vadd.f32 %v3102, 1e-05
        %v3135 = vrsqrt.pop %v3119
        %v3136 = vrsqrt.pop %v3120
        %v3137 = vrsqrt.pop %v3121
        %v3138 = vrsqrt.pop %v3122
        %v3139 = vrsqrt.pop %v3123
        %v3140 = vrsqrt.pop %v3124
        %v3141 = vrsqrt.pop %v3125
        %v3142 = vrsqrt.pop %v3126
        %v3143 = vrsqrt.pop %v3127
        %v3144 = vrsqrt.pop %v3128
        %v3145 = vrsqrt.pop %v3129
        %v3146 = vrsqrt.pop %v3130
        %v3147 = vrsqrt.pop %v3131
        %v3148 = vrsqrt.pop %v3132
        %v3149 = vrsqrt.pop %v3133
        %v3150 = vrsqrt.pop %v3134
        %v3151 = vmul.f32 %v3103, %v3135
        %v3152 = vmul.f32 %v3104, %v3136
        %v3153 = vmul.f32 %v3105, %v3137
        %v3154 = vmul.f32 %v3106, %v3138
        %v3155 = vmul.f32 %v3107, %v3139
        %v3156 = vmul.f32 %v3108, %v3140
        %v3157 = vmul.f32 %v3109, %v3141
        %v3158 = vmul.f32 %v3110, %v3142
        %v3159 = vmul.f32 %v3111, %v3143
        %v3160 = vmul.f32 %v3112, %v3144
        %v3161 = vmul.f32 %v3113, %v3145
        %v3162 = vmul.f32 %v3114, %v3146
        %v3163 = vmul.f32 %v3115, %v3147
        %v3164 = vmul.f32 %v3116, %v3148
        %v3165 = vmul.f32 %v3117, %v3149
        %v3166 = vmul.f32 %v3118, %v3150
        %v3167 = vld [vmem:[%s6] sm:$0x1]
        %v3169 = vlaneseq
        %v3170 = vshrl.u32 %v3169, 7
        %v3171 = vsub.s32 0, %v3170
        %v3172 = vrot.slane %v3167, %v3171
        %v3174 = vmul.f32 %v3151, %v3172
        %v3175 = vmul.f32 %v3152, %v3172
        %v3176 = vmul.f32 %v3153, %v3172
        %v3177 = vmul.f32 %v3154, %v3172
        %v3178 = vmul.f32 %v3155, %v3172
        %v3179 = vmul.f32 %v3156, %v3172
        %v3180 = vmul.f32 %v3157, %v3172
        %v3181 = vmul.f32 %v3158, %v3172
        %v3182 = vmul.f32 %v3159, %v3172
        %v3183 = vmul.f32 %v3160, %v3172
        %v3184 = vmul.f32 %v3161, %v3172
        %v3185 = vmul.f32 %v3162, %v3172
        %v3186 = vmul.f32 %v3163, %v3172
        %v3187 = vmul.f32 %v3164, %v3172
        %v3188 = vmul.f32 %v3165, %v3172
        %v3189 = vmul.f32 %v3166, %v3172
        %v3190 = vld [vmem:[%s7] sm:$0x1]
        %v3192 = vlaneseq
        %v3193 = vshrl.u32 %v3192, 7
        %v3194 = vsub.s32 0, %v3193
        %v3195 = vrot.slane %v3190, %v3194
        %v3197 = vadd.f32 %v3174, %v3195
        %v3198 = vadd.f32 %v3175, %v3195
        %v3199 = vadd.f32 %v3176, %v3195
        %v3200 = vadd.f32 %v3177, %v3195
        %v3201 = vadd.f32 %v3178, %v3195
        %v3202 = vadd.f32 %v3179, %v3195
        %v3203 = vadd.f32 %v3180, %v3195
        %v3204 = vadd.f32 %v3181, %v3195
        %v3205 = vadd.f32 %v3182, %v3195
        %v3206 = vadd.f32 %v3183, %v3195
        %v3207 = vadd.f32 %v3184, %v3195
        %v3208 = vadd.f32 %v3185, %v3195
        %v3209 = vadd.f32 %v3186, %v3195
        %v3210 = vadd.f32 %v3187, %v3195
        %v3211 = vadd.f32 %v3188, %v3195
        %v3212 = vadd.f32 %v3189, %v3195
        %v3213 = vld [vmem:[%s8] sm:$0xf]
        %v3214 = vld [vmem:[%s9] sm:$0x1]
        %v3216 = vlaneseq
        %v3217 = vshrl.u32 %v3216, 7
        %v3218 = vsub.s32 0, %v3217
        %v3219 = vrot.slane %v3214, %v3218
        %v3222 = vsel %vm2926, %v3197, 0
        %v3225 = vsel %vm2926, %v3198, 0
        %v3228 = vsel %vm2926, %v3199, 0
        %v3231 = vsel %vm2926, %v3200, 0
        %v3234 = vsel %vm2926, %v3201, 0
        %v3237 = vsel %vm2926, %v3202, 0
        %v3240 = vsel %vm2926, %v3203, 0
        %v3243 = vsel %vm2926, %v3204, 0
        %v3246 = vsel %vm2926, %v3205, 0
        %v3249 = vsel %vm2926, %v3206, 0
        %v3252 = vsel %vm2926, %v3207, 0
        %v3255 = vsel %vm2926, %v3208, 0
        %v3258 = vsel %vm2926, %v3209, 0
        %v3261 = vsel %vm2926, %v3210, 0
        %v3264 = vsel %vm2926, %v3211, 0
        %v3267 = vsel %vm2926, %v3212, 0
        %vm3269 = vcmask 1043456
        %v3271 = vsel %vm3269, %v3213, 0
        %3273 = vmatprep.subr.mxu0 0.0
        %3274 = vmatpush1.msra.mxu0 %v3271
        %3275 = vmatprep.subr.mxu0 0.0
        %3276 = vmatpush1.msra.mxu0 0.0
        %3277 = vmatprep.subr.mxu0 0.0
        %3278 = vmatpush1.msra.mxu0 0.0
        %3279 = vmatprep.subr.mxu0 0.0
        %3280 = vmatpush1.msra.mxu0 0.0
        %3281 = vmatprep.subr.mxu0 0.0
        %3282 = vmatpush1.msra.mxu0 0.0
        %3283 = vmatprep.subr.mxu0 0.0
        %3284 = vmatpush1.msra.mxu0 0.0
        %3285 = vmatprep.subr.mxu0 0.0
        %3286 = vmatpush1.msra.mxu0 0.0
        %3287 = vmatprep.subr.mxu0 0.0
        %3288 = vmatpush1.msra.mxu0 0.0
        %3289 = vmatprep.subr.mxu0 0.0
        %3290 = vmatpush1.msra.mxu0 0.0
        %3291 = vmatprep.subr.mxu0 0.0
        %3292 = vmatpush1.msra.mxu0 0.0
        %3293 = vmatprep.subr.mxu0 0.0
        %3294 = vmatpush1.msra.mxu0 0.0
        %3295 = vmatprep.subr.mxu0 0.0
        %3296 = vmatpush1.msra.mxu0 0.0
        %3297 = vmatprep.subr.mxu0 0.0
        %3298 = vmatpush1.msra.mxu0 0.0
        %3299 = vmatprep.subr.mxu0 0.0
        %3300 = vmatpush1.msra.mxu0 0.0
        %3301 = vmatprep.subr.mxu0 0.0
        %3302 = vmatpush1.msra.mxu0 0.0
        %3303 = vmatprep.subr.mxu0 0.0
        %3304 = vmatpush1.msra.mxu0 0.0
        %3305 = vmatprep.subr.mxu0 0.0
        %3306 = vmatpush1.msra.mxu0 0.0
        %3307 = vmatprep.subr.mxu0 0.0
        %3308 = vmatpush1.msra.mxu0 0.0
        %3309 = vmatprep.subr.mxu0 0.0
        %3310 = vmatpush1.msra.mxu0 0.0
        %3311 = vmatprep.subr.mxu0 0.0
        %3312 = vmatpush1.msra.mxu0 0.0
        %3313 = vmatprep.subr.mxu0 0.0
        %3314 = vmatpush1.msra.mxu0 0.0
        %3315 = vmatprep.subr.mxu0 0.0
        %3316 = vmatpush1.msra.mxu0 0.0
        %3317 = vmatprep.subr.mxu0 0.0
        %3318 = vmatpush1.msra.mxu0 0.0
        %3319 = vmatprep.subr.mxu0 0.0
        %3320 = vmatpush1.msra.mxu0 0.0
        %3321 = vmatprep.subr.mxu0 0.0
        %3322 = vmatpush1.msra.mxu0 0.0
        %3323 = vmatprep.subr.mxu0 0.0
        %3324 = vmatpush1.msra.mxu0 0.0
        %3325 = vmatprep.subr.mxu0 0.0
        %3326 = vmatpush1.msra.mxu0 0.0
        %3327 = vmatprep.subr.mxu0 0.0
        %3328 = vmatpush1.msra.mxu0 0.0
        %3329 = vmatprep.subr.mxu0 0.0
        %3330 = vmatpush1.msra.mxu0 0.0
        %3331 = vmatprep.subr.mxu0 0.0
        %3332 = vmatpush1.msra.mxu0 0.0
        %3333 = vmatprep.subr.mxu0 0.0
        %3334 = vmatpush1.msra.mxu0 0.0
        %3335 = vmatprep.subr.mxu0 0.0
        %3336 = vmatpush1.msra.mxu0 0.0
        %3337 = vmatprep.mubr.f32.mxu0 0.0
        %3338 = vmatmul.mubr.f32.gmra.mrb[0].mxu0 %v3222
        %v3339 = vpop.f32.mrb[0].mxu0
        %v3340 = vadd.f32 %v3219, %v3339
        %v3341 = vpop.f32.mrb[0].mxu0
        %3342 = vmatprep.mubr.f32.mxu0 0.0
        %3343 = vmatmul.mubr.f32.gmra.mrb[0].mxu0 %v3225
        %v3344 = vpop.f32.mrb[0].mxu0
        %v3345 = vadd.f32 %v3219, %v3344
        %v3346 = vpop.f32.mrb[0].mxu0
        %3347 = vmatprep.mubr.f32.mxu0 0.0
        %3348 = vmatmul.mubr.f32.gmra.mrb[0].mxu0 %v3228
        %v3349 = vpop.f32.mrb[0].mxu0
        %v3350 = vadd.f32 %v3219, %v3349
        %v3351 = vpop.f32.mrb[0].mxu0
        %3352 = vmatprep.mubr.f32.mxu0 0.0
        %3353 = vmatmul.mubr.f32.gmra.mrb[0].mxu0 %v3231
        %v3354 = vpop.f32.mrb[0].mxu0
        %v3355 = vadd.f32 %v3219, %v3354
        %v3356 = vpop.f32.mrb[0].mxu0
        %3357 = vmatprep.mubr.f32.mxu0 0.0
        %3358 = vmatmul.mubr.f32.gmra.mrb[0].mxu0 %v3234
        %v3359 = vpop.f32.mrb[0].mxu0
        %v3360 = vadd.f32 %v3219, %v3359
        %v3361 = vpop.f32.mrb[0].mxu0
        %3362 = vmatprep.mubr.f32.mxu0 0.0
        %3363 = vmatmul.mubr.f32.gmra.mrb[0].mxu0 %v3237
        %v3364 = vpop.f32.mrb[0].mxu0
        %v3365 = vadd.f32 %v3219, %v3364
        %v3366 = vpop.f32.mrb[0].mxu0
        %3367 = vmatprep.mubr.f32.mxu0 0.0
        %3368 = vmatmul.mubr.f32.gmra.mrb[0].mxu0 %v3240
        %v3369 = vpop.f32.mrb[0].mxu0
        %v3370 = vadd.f32 %v3219, %v3369
        %v3371 = vpop.f32.mrb[0].mxu0
        %3372 = vmatprep.mubr.f32.mxu0 0.0
        %3373 = vmatmul.mubr.f32.gmra.mrb[0].mxu0 %v3243
        %v3374 = vpop.f32.mrb[0].mxu0
        %v3375 = vadd.f32 %v3219, %v3374
        %v3376 = vpop.f32.mrb[0].mxu0
        %3377 = vmatprep.mubr.f32.mxu0 0.0
        %3378 = vmatmul.mubr.f32.gmra.mrb[0].mxu0 %v3246
        %v3379 = vpop.f32.mrb[0].mxu0
        %v3380 = vadd.f32 %v3219, %v3379
        %v3381 = vpop.f32.mrb[0].mxu0
        %3382 = vmatprep.mubr.f32.mxu0 0.0
        %3383 = vmatmul.mubr.f32.gmra.mrb[0].mxu0 %v3249
        %v3384 = vpop.f32.mrb[0].mxu0
        %v3385 = vadd.f32 %v3219, %v3384
        %v3386 = vpop.f32.mrb[0].mxu0
        %3387 = vmatprep.mubr.f32.mxu0 0.0
        %3388 = vmatmul.mubr.f32.gmra.mrb[0].mxu0 %v3252
        %v3389 = vpop.f32.mrb[0].mxu0
        %v3390 = vadd.f32 %v3219, %v3389
        %v3391 = vpop.f32.mrb[0].mxu0
        %3392 = vmatprep.mubr.f32.mxu0 0.0
        %3393 = vmatmul.mubr.f32.gmra.mrb[0].mxu0 %v3255
        %v3394 = vpop.f32.mrb[0].mxu0
        %v3395 = vadd.f32 %v3219, %v3394
        %v3396 = vpop.f32.mrb[0].mxu0
        %3397 = vmatprep.mubr.f32.mxu0 0.0
        %3398 = vmatmul.mubr.f32.gmra.mrb[0].mxu0 %v3258
        %v3399 = vpop.f32.mrb[0].mxu0
        %v3400 = vadd.f32 %v3219, %v3399
        %v3401 = vpop.f32.mrb[0].mxu0
        %3402 = vmatprep.mubr.f32.mxu0 0.0
        %3403 = vmatmul.mubr.f32.gmra.mrb[0].mxu0 %v3261
        %v3404 = vpop.f32.mrb[0].mxu0
        %v3405 = vadd.f32 %v3219, %v3404
        %v3406 = vpop.f32.mrb[0].mxu0
        %3407 = vmatprep.mubr.f32.mxu0 0.0
        %3408 = vmatmul.mubr.f32.gmra.mrb[0].mxu0 %v3264
        %v3409 = vpop.f32.mrb[0].mxu0
        %v3410 = vadd.f32 %v3219, %v3409
        %v3411 = vpop.f32.mrb[0].mxu0
        %3412 = vmatprep.mubr.f32.mxu0 0.0
        %3413 = vmatmul.mubr.f32.gmra.mrb[0].mxu0 %v3267
        %v3414 = vpop.f32.mrb[0].mxu0
        %v3415 = vadd.f32 %v3219, %v3414
        %v3416 = vpop.f32.mrb[0].mxu0
        %3417 = vdwg.mxu0
        %vm3418 = vcmp.gt.f32.partialorder %v3340, 0.0
        %vm3419 = vcmp.gt.f32.partialorder %v3345, 0.0
        %vm3420 = vcmp.gt.f32.partialorder %v3350, 0.0
        %vm3421 = vcmp.gt.f32.partialorder %v3355, 0.0
        %vm3422 = vcmp.gt.f32.partialorder %v3360, 0.0
        %vm3423 = vcmp.gt.f32.partialorder %v3365, 0.0
        %vm3424 = vcmp.gt.f32.partialorder %v3370, 0.0
        %vm3425 = vcmp.gt.f32.partialorder %v3375, 0.0
        %vm3426 = vcmp.gt.f32.partialorder %v3380, 0.0
        %vm3427 = vcmp.gt.f32.partialorder %v3385, 0.0
        %vm3428 = vcmp.gt.f32.partialorder %v3390, 0.0
        %vm3429 = vcmp.gt.f32.partialorder %v3395, 0.0
        %vm3430 = vcmp.gt.f32.partialorder %v3400, 0.0
        %vm3431 = vcmp.gt.f32.partialorder %v3405, 0.0
        %vm3432 = vcmp.gt.f32.partialorder %v3410, 0.0
        %vm3433 = vcmp.gt.f32.partialorder %v3415, 0.0
        %v3434 = vmul.f32 %v3340, 0.1
        %v3435 = vmul.f32 %v3345, 0.1
        %v3436 = vmul.f32 %v3350, 0.1
        %v3437 = vmul.f32 %v3355, 0.1
        %v3438 = vmul.f32 %v3360, 0.1
        %v3439 = vmul.f32 %v3365, 0.1
        %v3440 = vmul.f32 %v3370, 0.1
        %v3441 = vmul.f32 %v3375, 0.1
        %v3442 = vmul.f32 %v3380, 0.1
        %v3443 = vmul.f32 %v3385, 0.1
        %v3444 = vmul.f32 %v3390, 0.1
        %v3445 = vmul.f32 %v3395, 0.1
        %v3446 = vmul.f32 %v3400, 0.1
        %v3447 = vmul.f32 %v3405, 0.1
        %v3448 = vmul.f32 %v3410, 0.1
        %v3449 = vmul.f32 %v3415, 0.1
        %v3450 = vsel %vm3418, %v3340, %v3434
        %v3451 = vsel %vm3419, %v3345, %v3435
        %v3452 = vsel %vm3420, %v3350, %v3436
        %v3453 = vsel %vm3421, %v3355, %v3437
        %v3454 = vsel %vm3422, %v3360, %v3438
        %v3455 = vsel %vm3423, %v3365, %v3439
        %v3456 = vsel %vm3424, %v3370, %v3440
        %v3457 = vsel %vm3425, %v3375, %v3441
        %v3458 = vsel %vm3426, %v3380, %v3442
        %v3459 = vsel %vm3427, %v3385, %v3443
        %v3460 = vsel %vm3428, %v3390, %v3444
        %v3461 = vsel %vm3429, %v3395, %v3445
        %v3462 = vsel %vm3430, %v3400, %v3446
        %v3463 = vsel %vm3431, %v3405, %v3447
        %v3464 = vsel %vm3432, %v3410, %v3448
        %v3465 = vsel %vm3433, %v3415, %v3449
        %v3466 = vld [vmem:[%s10] sm:$0xf]
        %v3467 = vld [vmem:[%s11] sm:$0x1]
        %v3469 = vlaneseq
        %v3470 = vshrl.u32 %v3469, 7
        %v3471 = vsub.s32 0, %v3470
        %v3472 = vrot.slane %v3467, %v3471
        %v3475 = vsel %vm2926, %v3450, 0
        %v3478 = vsel %vm2926, %v3451, 0
        %v3481 = vsel %vm2926, %v3452, 0
        %v3484 = vsel %vm2926, %v3453, 0
        %v3487 = vsel %vm2926, %v3454, 0
        %v3490 = vsel %vm2926, %v3455, 0
        %v3493 = vsel %vm2926, %v3456, 0
        %v3496 = vsel %vm2926, %v3457, 0
        %v3499 = vsel %vm2926, %v3458, 0
        %v3502 = vsel %vm2926, %v3459, 0
        %v3505 = vsel %vm2926, %v3460, 0
        %v3508 = vsel %vm2926, %v3461, 0
        %v3511 = vsel %vm2926, %v3462, 0
        %v3514 = vsel %vm2926, %v3463, 0
        %v3517 = vsel %vm2926, %v3464, 0
        %v3520 = vsel %vm2926, %v3465, 0
        %v3523 = vsel %vm3269, %v3466, 0
        %3525 = vmatprep.subr.mxu0 0.0
        %3526 = vmatpush1.msra.mxu0 %v3523
        %3527 = vmatprep.subr.mxu0 0.0
        %3528 = vmatpush1.msra.mxu0 0.0
        %3529 = vmatprep.subr.mxu0 0.0
        %3530 = vmatpush1.msra.mxu0 0.0
        %3531 = vmatprep.subr.mxu0 0.0
        %3532 = vmatpush1.msra.mxu0 0.0
        %3533 = vmatprep.subr.mxu0 0.0
        %3534 = vmatpush1.msra.mxu0 0.0
        %3535 = vmatprep.subr.mxu0 0.0
        %3536 = vmatpush1.msra.mxu0 0.0
        %3537 = vmatprep.subr.mxu0 0.0
        %3538 = vmatpush1.msra.mxu0 0.0
        %3539 = vmatprep.subr.mxu0 0.0
        %3540 = vmatpush1.msra.mxu0 0.0
        %3541 = vmatprep.subr.mxu0 0.0
        %3542 = vmatpush1.msra.mxu0 0.0
        %3543 = vmatprep.subr.mxu0 0.0
        %3544 = vmatpush1.msra.mxu0 0.0
        %3545 = vmatprep.subr.mxu0 0.0
        %3546 = vmatpush1.msra.mxu0 0.0
        %3547 = vmatprep.subr.mxu0 0.0
        %3548 = vmatpush1.msra.mxu0 0.0
        %3549 = vmatprep.subr.mxu0 0.0
        %3550 = vmatpush1.msra.mxu0 0.0
        %3551 = vmatprep.subr.mxu0 0.0
        %3552 = vmatpush1.msra.mxu0 0.0
        %3553 = vmatprep.subr.mxu0 0.0
        %3554 = vmatpush1.msra.mxu0 0.0
        %3555 = vmatprep.subr.mxu0 0.0
        %3556 = vmatpush1.msra.mxu0 0.0
        %3557 = vmatprep.subr.mxu0 0.0
        %3558 = vmatpush1.msra.mxu0 0.0
        %3559 = vmatprep.subr.mxu0 0.0
        %3560 = vmatpush1.msra.mxu0 0.0
        %3561 = vmatprep.subr.mxu0 0.0
        %3562 = vmatpush1.msra.mxu0 0.0
        %3563 = vmatprep.subr.mxu0 0.0
        %3564 = vmatpush1.msra.mxu0 0.0
        %3565 = vmatprep.subr.mxu0 0.0
        %3566 = vmatpush1.msra.mxu0 0.0
        %3567 = vmatprep.subr.mxu0 0.0
        %3568 = vmatpush1.msra.mxu0 0.0
        %3569 = vmatprep.subr.mxu0 0.0
        %3570 = vmatpush1.msra.mxu0 0.0
        %3571 = vmatprep.subr.mxu0 0.0
        %3572 = vmatpush1.msra.mxu0 0.0
        %3573 = vmatprep.subr.mxu0 0.0
        %3574 = vmatpush1.msra.mxu0 0.0
        %3575 = vmatprep.subr.mxu0 0.0
        %3576 = vmatpush1.msra.mxu0 0.0
        %3577 = vmatprep.subr.mxu0 0.0
        %3578 = vmatpush1.msra.mxu0 0.0
        %3579 = vmatprep.subr.mxu0 0.0
        %3580 = vmatpush1.msra.mxu0 0.0
        %3581 = vmatprep.subr.mxu0 0.0
        %3582 = vmatpush1.msra.mxu0 0.0
        %3583 = vmatprep.subr.mxu0 0.0
        %3584 = vmatpush1.msra.mxu0 0.0
        %3585 = vmatprep.subr.mxu0 0.0
        %3586 = vmatpush1.msra.mxu0 0.0
        %3587 = vmatprep.subr.mxu0 0.0
        %3588 = vmatpush1.msra.mxu0 0.0
        %3589 = vmatprep.mubr.f32.mxu0 0.0
        %3590 = vmatmul.mubr.f32.gmra.mrb[0].mxu0 %v3475
        %v3591 = vpop.f32.mrb[0].mxu0
        %v3592 = vadd.f32 %v3472, %v3591
        %v3593 = vpop.f32.mrb[0].mxu0
        %3594 = vmatprep.mubr.f32.mxu0 0.0
        %3595 = vmatmul.mubr.f32.gmra.mrb[0].mxu0 %v3478
        %v3596 = vpop.f32.mrb[0].mxu0
        %v3597 = vadd.f32 %v3472, %v3596
        %v3598 = vpop.f32.mrb[0].mxu0
        %3599 = vmatprep.mubr.f32.mxu0 0.0
        %3600 = vmatmul.mubr.f32.gmra.mrb[0].mxu0 %v3481
        %v3601 = vpop.f32.mrb[0].mxu0
        %v3602 = vadd.f32 %v3472, %v3601
        %v3603 = vpop.f32.mrb[0].mxu0
        %3604 = vmatprep.mubr.f32.mxu0 0.0
        %3605 = vmatmul.mubr.f32.gmra.mrb[0].mxu0 %v3484
        %v3606 = vpop.f32.mrb[0].mxu0
        %v3607 = vadd.f32 %v3472, %v3606
        %v3608 = vpop.f32.mrb[0].mxu0
        %3609 = vmatprep.mubr.f32.mxu0 0.0
        %3610 = vmatmul.mubr.f32.gmra.mrb[0].mxu0 %v3487
        %v3611 = vpop.f32.mrb[0].mxu0
        %v3612 = vadd.f32 %v3472, %v3611
        %v3613 = vpop.f32.mrb[0].mxu0
        %3614 = vmatprep.mubr.f32.mxu0 0.0
        %3615 = vmatmul.mubr.f32.gmra.mrb[0].mxu0 %v3490
        %v3616 = vpop.f32.mrb[0].mxu0
        %v3617 = vadd.f32 %v3472, %v3616
        %v3618 = vpop.f32.mrb[0].mxu0
        %3619 = vmatprep.mubr.f32.mxu0 0.0
        %3620 = vmatmul.mubr.f32.gmra.mrb[0].mxu0 %v3493
        %v3621 = vpop.f32.mrb[0].mxu0
        %v3622 = vadd.f32 %v3472, %v3621
        %v3623 = vpop.f32.mrb[0].mxu0
        %3624 = vmatprep.mubr.f32.mxu0 0.0
        %3625 = vmatmul.mubr.f32.gmra.mrb[0].mxu0 %v3496
        %v3626 = vpop.f32.mrb[0].mxu0
        %v3627 = vadd.f32 %v3472, %v3626
        %v3628 = vpop.f32.mrb[0].mxu0
        %3629 = vmatprep.mubr.f32.mxu0 0.0
        %3630 = vmatmul.mubr.f32.gmra.mrb[0].mxu0 %v3499
        %v3631 = vpop.f32.mrb[0].mxu0
        %v3632 = vadd.f32 %v3472, %v3631
        %v3633 = vpop.f32.mrb[0].mxu0
        %3634 = vmatprep.mubr.f32.mxu0 0.0
        %3635 = vmatmul.mubr.f32.gmra.mrb[0].mxu0 %v3502
        %v3636 = vpop.f32.mrb[0].mxu0
        %v3637 = vadd.f32 %v3472, %v3636
        %v3638 = vpop.f32.mrb[0].mxu0
        %3639 = vmatprep.mubr.f32.mxu0 0.0
        %3640 = vmatmul.mubr.f32.gmra.mrb[0].mxu0 %v3505
        %v3641 = vpop.f32.mrb[0].mxu0
        %v3642 = vadd.f32 %v3472, %v3641
        %v3643 = vpop.f32.mrb[0].mxu0
        %3644 = vmatprep.mubr.f32.mxu0 0.0
        %3645 = vmatmul.mubr.f32.gmra.mrb[0].mxu0 %v3508
        %v3646 = vpop.f32.mrb[0].mxu0
        %v3647 = vadd.f32 %v3472, %v3646
        %v3648 = vpop.f32.mrb[0].mxu0
        %3649 = vmatprep.mubr.f32.mxu0 0.0
        %3650 = vmatmul.mubr.f32.gmra.mrb[0].mxu0 %v3511
        %v3651 = vpop.f32.mrb[0].mxu0
        %v3652 = vadd.f32 %v3472, %v3651
        %v3653 = vpop.f32.mrb[0].mxu0
        %3654 = vmatprep.mubr.f32.mxu0 0.0
        %3655 = vmatmul.mubr.f32.gmra.mrb[0].mxu0 %v3514
        %v3656 = vpop.f32.mrb[0].mxu0
        %v3657 = vadd.f32 %v3472, %v3656
        %v3658 = vpop.f32.mrb[0].mxu0
        %3659 = vmatprep.mubr.f32.mxu0 0.0
        %3660 = vmatmul.mubr.f32.gmra.mrb[0].mxu0 %v3517
        %v3661 = vpop.f32.mrb[0].mxu0
        %v3662 = vadd.f32 %v3472, %v3661
        %v3663 = vpop.f32.mrb[0].mxu0
        %3664 = vmatprep.mubr.f32.mxu0 0.0
        %3665 = vmatmul.mubr.f32.gmra.mrb[0].mxu0 %v3520
        %v3666 = vpop.f32.mrb[0].mxu0
        %v3667 = vadd.f32 %v3472, %v3666
        %v3668 = vpop.f32.mrb[0].mxu0
        %3669 = vdwg.mxu0
        %v3670 = vadd.f32 %v3592, %v3197
        %v3671 = vadd.f32 %v3597, %v3198
        %v3672 = vadd.f32 %v3602, %v3199
        %v3673 = vadd.f32 %v3607, %v3200
        %v3674 = vadd.f32 %v3612, %v3201
        %v3675 = vadd.f32 %v3617, %v3202
        %v3676 = vadd.f32 %v3622, %v3203
        %v3677 = vadd.f32 %v3627, %v3204
        %v3678 = vadd.f32 %v3632, %v3205
        %v3679 = vadd.f32 %v3637, %v3206
        %v3680 = vadd.f32 %v3642, %v3207
        %v3681 = vadd.f32 %v3647, %v3208
        %v3682 = vadd.f32 %v3652, %v3209
        %v3683 = vadd.f32 %v3657, %v3210
        %v3684 = vadd.f32 %v3662, %v3211
        %v3685 = vadd.f32 %v3667, %v3212
        %v3686 = vsel %vm2926, %v3670, 0.0
        %3687 = vadd.xlane.f32.xlu0 %v3686
        %v3688 = vpop.xlane.xlu0 %3687
        %v3689 = vsel %vm2926, %v3671, 0.0
        %3690 = vadd.xlane.f32.xlu0 %v3689
        %v3691 = vpop.xlane.xlu0 %3690
        %v3692 = vsel %vm2926, %v3672, 0.0
        %3693 = vadd.xlane.f32.xlu0 %v3692
        %v3694 = vpop.xlane.xlu0 %3693
        %v3695 = vsel %vm2926, %v3673, 0.0
        %3696 = vadd.xlane.f32.xlu0 %v3695
        %v3697 = vpop.xlane.xlu0 %3696
        %v3698 = vsel %vm2926, %v3674, 0.0
        %3699 = vadd.xlane.f32.xlu0 %v3698
        %v3700 = vpop.xlane.xlu0 %3699
        %v3701 = vsel %vm2926, %v3675, 0.0
        %3702 = vadd.xlane.f32.xlu0 %v3701
        %v3703 = vpop.xlane.xlu0 %3702
        %v3704 = vsel %vm2926, %v3676, 0.0
        %3705 = vadd.xlane.f32.xlu0 %v3704
        %v3706 = vpop.xlane.xlu0 %3705
        %v3707 = vsel %vm2926, %v3677, 0.0
        %3708 = vadd.xlane.f32.xlu0 %v3707
        %v3709 = vpop.xlane.xlu0 %3708
        %v3710 = vsel %vm2926, %v3678, 0.0
        %3711 = vadd.xlane.f32.xlu0 %v3710
        %v3712 = vpop.xlane.xlu0 %3711
        %v3713 = vsel %vm2926, %v3679, 0.0
        %3714 = vadd.xlane.f32.xlu0 %v3713
        %v3715 = vpop.xlane.xlu0 %3714
        %v3716 = vsel %vm2926, %v3680, 0.0
        %3717 = vadd.xlane.f32.xlu0 %v3716
        %v3718 = vpop.xlane.xlu0 %3717
        %v3719 = vsel %vm2926, %v3681, 0.0
        %3720 = vadd.xlane.f32.xlu0 %v3719
        %v3721 = vpop.xlane.xlu0 %3720
        %v3722 = vsel %vm2926, %v3682, 0.0
        %3723 = vadd.xlane.f32.xlu0 %v3722
        %v3724 = vpop.xlane.xlu0 %3723
        %v3725 = vsel %vm2926, %v3683, 0.0
        %3726 = vadd.xlane.f32.xlu0 %v3725
        %v3727 = vpop.xlane.xlu0 %3726
        %v3728 = vsel %vm2926, %v3684, 0.0
        %3729 = vadd.xlane.f32.xlu0 %v3728
        %v3730 = vpop.xlane.xlu0 %3729
        %v3731 = vsel %vm2926, %v3685, 0.0
        %3732 = vadd.xlane.f32.xlu0 %v3731
        %v3733 = vpop.xlane.xlu0 %3732
        %v3734 = vmul.f32 %v3688, 0.25
        %v3735 = vmul.f32 %v3691, 0.25
        %v3736 = vmul.f32 %v3694, 0.25
        %v3737 = vmul.f32 %v3697, 0.25
        %v3738 = vmul.f32 %v3700, 0.25
        %v3739 = vmul.f32 %v3703, 0.25
        %v3740 = vmul.f32 %v3706, 0.25
        %v3741 = vmul.f32 %v3709, 0.25
        %v3742 = vmul.f32 %v3712, 0.25
        %v3743 = vmul.f32 %v3715, 0.25
        %v3744 = vmul.f32 %v3718, 0.25
        %v3745 = vmul.f32 %v3721, 0.25
        %v3746 = vmul.f32 %v3724, 0.25
        %v3747 = vmul.f32 %v3727, 0.25
        %v3748 = vmul.f32 %v3730, 0.25
        %v3749 = vmul.f32 %v3733, 0.25
        %v3750 = vmul.f32 %v3670, %v3670
        %v3751 = vmul.f32 %v3671, %v3671
        %v3752 = vmul.f32 %v3672, %v3672
        %v3753 = vmul.f32 %v3673, %v3673
        %v3754 = vmul.f32 %v3674, %v3674
        %v3755 = vmul.f32 %v3675, %v3675
        %v3756 = vmul.f32 %v3676, %v3676
        %v3757 = vmul.f32 %v3677, %v3677
        %v3758 = vmul.f32 %v3678, %v3678
        %v3759 = vmul.f32 %v3679, %v3679
        %v3760 = vmul.f32 %v3680, %v3680
        %v3761 = vmul.f32 %v3681, %v3681
        %v3762 = vmul.f32 %v3682, %v3682
        %v3763 = vmul.f32 %v3683, %v3683
        %v3764 = vmul.f32 %v3684, %v3684
        %v3765 = vmul.f32 %v3685, %v3685
        %v3766 = vsel %vm2926, %v3750, 0.0
        %3767 = vadd.xlane.f32.xlu0 %v3766
        %v3768 = vpop.xlane.xlu0 %3767
        %v3769 = vsel %vm2926, %v3751, 0.0
        %3770 = vadd.xlane.f32.xlu0 %v3769
        %v3771 = vpop.xlane.xlu0 %3770
        %v3772 = vsel %vm2926, %v3752, 0.0
        %3773 = vadd.xlane.f32.xlu0 %v3772
        %v3774 = vpop.xlane.xlu0 %3773
        %v3775 = vsel %vm2926, %v3753, 0.0
        %3776 = vadd.xlane.f32.xlu0 %v3775
        %v3777 = vpop.xlane.xlu0 %3776
        %v3778 = vsel %vm2926, %v3754, 0.0
        %3779 = vadd.xlane.f32.xlu0 %v3778
        %v3780 = vpop.xlane.xlu0 %3779
        %v3781 = vsel %vm2926, %v3755, 0.0
        %3782 = vadd.xlane.f32.xlu0 %v3781
        %v3783 = vpop.xlane.xlu0 %3782
        %v3784 = vsel %vm2926, %v3756, 0.0
        %3785 = vadd.xlane.f32.xlu0 %v3784
        %v3786 = vpop.xlane.xlu0 %3785
        %v3787 = vsel %vm2926, %v3757, 0.0
        %3788 = vadd.xlane.f32.xlu0 %v3787
        %v3789 = vpop.xlane.xlu0 %3788
        %v3790 = vsel %vm2926, %v3758, 0.0
        %3791 = vadd.xlane.f32.xlu0 %v3790
        %v3792 = vpop.xlane.xlu0 %3791
        %v3793 = vsel %vm2926, %v3759, 0.0
        %3794 = vadd.xlane.f32.xlu0 %v3793
        %v3795 = vpop.xlane.xlu0 %3794
        %v3796 = vsel %vm2926, %v3760, 0.0
        %3797 = vadd.xlane.f32.xlu0 %v3796
        %v3798 = vpop.xlane.xlu0 %3797
        %v3799 = vsel %vm2926, %v3761, 0.0
        %3800 = vadd.xlane.f32.xlu0 %v3799
        %v3801 = vpop.xlane.xlu0 %3800
        %v3802 = vsel %vm2926, %v3762, 0.0
        %3803 = vadd.xlane.f32.xlu0 %v3802
        %v3804 = vpop.xlane.xlu0 %3803
        %v3805 = vsel %vm2926, %v3763, 0.0
        %3806 = vadd.xlane.f32.xlu0 %v3805
        %v3807 = vpop.xlane.xlu0 %3806
        %v3808 = vsel %vm2926, %v3764, 0.0
        %3809 = vadd.xlane.f32.xlu0 %v3808
        %v3810 = vpop.xlane.xlu0 %3809
        %v3811 = vsel %vm2926, %v3765, 0.0
        %3812 = vadd.xlane.f32.xlu0 %v3811
        %v3813 = vpop.xlane.xlu0 %3812
        %v3814 = vmul.f32 %v3768, 0.25
        %v3815 = vmul.f32 %v3771, 0.25
        %v3816 = vmul.f32 %v3774, 0.25
        %v3817 = vmul.f32 %v3777, 0.25
        %v3818 = vmul.f32 %v3780, 0.25
        %v3819 = vmul.f32 %v3783, 0.25
        %v3820 = vmul.f32 %v3786, 0.25
        %v3821 = vmul.f32 %v3789, 0.25
        %v3822 = vmul.f32 %v3792, 0.25
        %v3823 = vmul.f32 %v3795, 0.25
        %v3824 = vmul.f32 %v3798, 0.25
        %v3825 = vmul.f32 %v3801, 0.25
        %v3826 = vmul.f32 %v3804, 0.25
        %v3827 = vmul.f32 %v3807, 0.25
        %v3828 = vmul.f32 %v3810, 0.25
        %v3829 = vmul.f32 %v3813, 0.25
        %v3830 = vmul.f32 %v3734, %v3734
        %v3831 = vmul.f32 %v3735, %v3735
        %v3832 = vmul.f32 %v3736, %v3736
        %v3833 = vmul.f32 %v3737, %v3737
        %v3834 = vmul.f32 %v3738, %v3738
        %v3835 = vmul.f32 %v3739, %v3739
        %v3836 = vmul.f32 %v3740, %v3740
        %v3837 = vmul.f32 %v3741, %v3741
        %v3838 = vmul.f32 %v3742, %v3742
        %v3839 = vmul.f32 %v3743, %v3743
        %v3840 = vmul.f32 %v3744, %v3744
        %v3841 = vmul.f32 %v3745, %v3745
        %v3842 = vmul.f32 %v3746, %v3746
        %v3843 = vmul.f32 %v3747, %v3747
        %v3844 = vmul.f32 %v3748, %v3748
        %v3845 = vmul.f32 %v3749, %v3749
        %v3846 = vsub.f32 %v3814, %v3830
        %v3847 = vsub.f32 %v3815, %v3831
        %v3848 = vsub.f32 %v3816, %v3832
        %v3849 = vsub.f32 %v3817, %v3833
        %v3850 = vsub.f32 %v3818, %v3834
        %v3851 = vsub.f32 %v3819, %v3835
        %v3852 = vsub.f32 %v3820, %v3836
        %v3853 = vsub.f32 %v3821, %v3837
        %v3854 = vsub.f32 %v3822, %v3838
        %v3855 = vsub.f32 %v3823, %v3839
        %v3856 = vsub.f32 %v3824, %v3840
        %v3857 = vsub.f32 %v3825, %v3841
        %v3858 = vsub.f32 %v3826, %v3842
        %v3859 = vsub.f32 %v3827, %v3843
        %v3860 = vsub.f32 %v3828, %v3844
        %v3861 = vsub.f32 %v3829, %v3845
        %v3862 = vsub.f32 %v3670, %v3734
        %v3863 = vsub.f32 %v3671, %v3735
        %v3864 = vsub.f32 %v3672, %v3736
        %v3865 = vsub.f32 %v3673, %v3737
        %v3866 = vsub.f32 %v3674, %v3738
        %v3867 = vsub.f32 %v3675, %v3739
        %v3868 = vsub.f32 %v3676, %v3740
        %v3869 = vsub.f32 %v3677, %v3741
        %v3870 = vsub.f32 %v3678, %v3742
        %v3871 = vsub.f32 %v3679, %v3743
        %v3872 = vsub.f32 %v3680, %v3744
        %v3873 = vsub.f32 %v3681, %v3745
        %v3874 = vsub.f32 %v3682, %v3746
        %v3875 = vsub.f32 %v3683, %v3747
        %v3876 = vsub.f32 %v3684, %v3748
        %v3877 = vsub.f32 %v3685, %v3749
        %v3878 = vadd.f32 %v3846, 1e-05
        %v3879 = vadd.f32 %v3847, 1e-05
        %v3880 = vadd.f32 %v3848, 1e-05
        %v3881 = vadd.f32 %v3849, 1e-05
        %v3882 = vadd.f32 %v3850, 1e-05
        %v3883 = vadd.f32 %v3851, 1e-05
        %v3884 = vadd.f32 %v3852, 1e-05
        %v3885 = vadd.f32 %v3853, 1e-05
        %v3886 = vadd.f32 %v3854, 1e-05
        %v3887 = vadd.f32 %v3855, 1e-05
        %v3888 = vadd.f32 %v3856, 1e-05
        %v3889 = vadd.f32 %v3857, 1e-05
        %v3890 = vadd.f32 %v3858, 1e-05
        %v3891 = vadd.f32 %v3859, 1e-05
        %v3892 = vadd.f32 %v3860, 1e-05
        %v3893 = vadd.f32 %v3861, 1e-05
        %v3894 = vrsqrt.pop %v3878
        %v3895 = vrsqrt.pop %v3879
        %v3896 = vrsqrt.pop %v3880
        %v3897 = vrsqrt.pop %v3881
        %v3898 = vrsqrt.pop %v3882
        %v3899 = vrsqrt.pop %v3883
        %v3900 = vrsqrt.pop %v3884
        %v3901 = vrsqrt.pop %v3885
        %v3902 = vrsqrt.pop %v3886
        %v3903 = vrsqrt.pop %v3887
        %v3904 = vrsqrt.pop %v3888
        %v3905 = vrsqrt.pop %v3889
        %v3906 = vrsqrt.pop %v3890
        %v3907 = vrsqrt.pop %v3891
        %v3908 = vrsqrt.pop %v3892
        %v3909 = vrsqrt.pop %v3893
        %v3910 = vmul.f32 %v3862, %v3894
        %v3911 = vmul.f32 %v3863, %v3895
        %v3912 = vmul.f32 %v3864, %v3896
        %v3913 = vmul.f32 %v3865, %v3897
        %v3914 = vmul.f32 %v3866, %v3898
        %v3915 = vmul.f32 %v3867, %v3899
        %v3916 = vmul.f32 %v3868, %v3900
        %v3917 = vmul.f32 %v3869, %v3901
        %v3918 = vmul.f32 %v3870, %v3902
        %v3919 = vmul.f32 %v3871, %v3903
        %v3920 = vmul.f32 %v3872, %v3904
        %v3921 = vmul.f32 %v3873, %v3905
        %v3922 = vmul.f32 %v3874, %v3906
        %v3923 = vmul.f32 %v3875, %v3907
        %v3924 = vmul.f32 %v3876, %v3908
        %v3925 = vmul.f32 %v3877, %v3909
        %v3926 = vmul.f32 %v3910, %v3172
        %v3927 = vmul.f32 %v3911, %v3172
        %v3928 = vmul.f32 %v3912, %v3172
        %v3929 = vmul.f32 %v3913, %v3172
        %v3930 = vmul.f32 %v3914, %v3172
        %v3931 = vmul.f32 %v3915, %v3172
        %v3932 = vmul.f32 %v3916, %v3172
        %v3933 = vmul.f32 %v3917, %v3172
        %v3934 = vmul.f32 %v3918, %v3172
        %v3935 = vmul.f32 %v3919, %v3172
        %v3936 = vmul.f32 %v3920, %v3172
        %v3937 = vmul.f32 %v3921, %v3172
        %v3938 = vmul.f32 %v3922, %v3172
        %v3939 = vmul.f32 %v3923, %v3172
        %v3940 = vmul.f32 %v3924, %v3172
        %v3941 = vmul.f32 %v3925, %v3172
        %v3942 = vadd.f32 %v3926, %v3195
        %v3943 = vadd.f32 %v3927, %v3195
        %v3944 = vadd.f32 %v3928, %v3195
        %v3945 = vadd.f32 %v3929, %v3195
        %v3946 = vadd.f32 %v3930, %v3195
        %v3947 = vadd.f32 %v3931, %v3195
        %v3948 = vadd.f32 %v3932, %v3195
        %v3949 = vadd.f32 %v3933, %v3195
        %v3950 = vadd.f32 %v3934, %v3195
        %v3951 = vadd.f32 %v3935, %v3195
        %v3952 = vadd.f32 %v3936, %v3195
        %v3953 = vadd.f32 %v3937, %v3195
        %v3954 = vadd.f32 %v3938, %v3195
        %v3955 = vadd.f32 %v3939, %v3195
        %v3956 = vadd.f32 %v3940, %v3195
        %v3957 = vadd.f32 %v3941, %v3195
        %v3958 = vlaneseq
        %v3959 = vshrl.u32 %v3958, 7
        %v3960 = vadd.s32 %v3959, 8
        %v3961 = vadd.s32 %v3959, 16
        %v3962 = vadd.s32 %v3959, 24
        %v3963 = vadd.s32 %v3959, 32
        %v3964 = vadd.s32 %v3959, 40
        %v3965 = vadd.s32 %v3959, 48
        %v3966 = vadd.s32 %v3959, 56
        %v3967 = vadd.s32 %v3959, 64
        %v3968 = vadd.s32 %v3959, 72
        %v3969 = vadd.s32 %v3959, 80
        %v3970 = vadd.s32 %v3959, 88
        %v3971 = vadd.s32 %v3959, 96
        %v3972 = vadd.s32 %v3959, 104
        %v3973 = vadd.s32 %v3959, 112
        %v3974 = vadd.s32 %v3959, 120
        %v3975 = vlaneseq
        %v3976 = vand.u32 %v3975, 127
        %vm3977 = vcmp.eq.s32.totalorder %v3959, %v3976
        %vm3978 = vcmp.eq.s32.totalorder %v3960, %v3976
        %vm3979 = vcmp.eq.s32.totalorder %v3961, %v3976
        %vm3980 = vcmp.eq.s32.totalorder %v3962, %v3976
        %vm3981 = vcmp.eq.s32.totalorder %v3963, %v3976
        %vm3982 = vcmp.eq.s32.totalorder %v3964, %v3976
        %vm3983 = vcmp.eq.s32.totalorder %v3965, %v3976
        %vm3984 = vcmp.eq.s32.totalorder %v3966, %v3976
        %vm3985 = vcmp.eq.s32.totalorder %v3967, %v3976
        %vm3986 = vcmp.eq.s32.totalorder %v3968, %v3976
        %vm3987 = vcmp.eq.s32.totalorder %v3969, %v3976
        %vm3988 = vcmp.eq.s32.totalorder %v3970, %v3976
        %vm3989 = vcmp.eq.s32.totalorder %v3971, %v3976
        %vm3990 = vcmp.eq.s32.totalorder %v3972, %v3976
        %vm3991 = vcmp.eq.s32.totalorder %v3973, %v3976
        %vm3992 = vcmp.eq.s32.totalorder %v3974, %v3976
        %v3993 = vsel %vm3977, 1, 0
        %v3994 = vsel %vm3978, 1, 0
        %v3995 = vsel %vm3979, 1, 0
        %v3996 = vsel %vm3980, 1, 0
        %v3997 = vsel %vm3981, 1, 0
        %v3998 = vsel %vm3982, 1, 0
        %v3999 = vsel %vm3983, 1, 0
        %v4000 = vsel %vm3984, 1, 0
        %v4001 = vsel %vm3985, 1, 0
        %v4002 = vsel %vm3986, 1, 0
        %v4003 = vsel %vm3987, 1, 0
        %v4004 = vsel %vm3988, 1, 0
        %v4005 = vsel %vm3989, 1, 0
        %v4006 = vsel %vm3990, 1, 0
        %v4007 = vsel %vm3991, 1, 0
        %v4008 = vsel %vm3992, 1, 0
        %v4009 = vcvt.s32.f32 %v3993
        %v4010 = vcvt.s32.f32 %v3994
        %v4011 = vcvt.s32.f32 %v3995
        %v4012 = vcvt.s32.f32 %v3996
        %v4013 = vcvt.s32.f32 %v3997
        %v4014 = vcvt.s32.f32 %v3998
        %v4015 = vcvt.s32.f32 %v3999
        %v4016 = vcvt.s32.f32 %v4000
        %v4017 = vcvt.s32.f32 %v4001
        %v4018 = vcvt.s32.f32 %v4002
        %v4019 = vcvt.s32.f32 %v4003
        %v4020 = vcvt.s32.f32 %v4004
        %v4021 = vcvt.s32.f32 %v4005
        %v4022 = vcvt.s32.f32 %v4006
        %v4023 = vcvt.s32.f32 %v4007
        %v4024 = vcvt.s32.f32 %v4008
        %4025 = vxpose.xlu0.b32.start [1/16] %v3942, 128
        %4026 = vxpose.xlu0.b32.cont [2/16] %v3943, 128
        %4027 = vxpose.xlu0.b32.cont [3/16] %v3944, 128
        %4028 = vxpose.xlu0.b32.cont [4/16] %v3945, 128
        %4029 = vxpose.xlu0.b32.cont [5/16] %v3946, 128
        %4030 = vxpose.xlu0.b32.cont [6/16] %v3947, 128
        %4031 = vxpose.xlu0.b32.cont [7/16] %v3948, 128
        %4032 = vxpose.xlu0.b32.cont [8/16] %v3949, 128
        %4033 = vxpose.xlu0.b32.cont [9/16] %v3950, 128
        %4034 = vxpose.xlu0.b32.cont [10/16] %v3951, 128
        %4035 = vxpose.xlu0.b32.cont [11/16] %v3952, 128
        %4036 = vxpose.xlu0.b32.cont [12/16] %v3953, 128
        %4037 = vxpose.xlu0.b32.cont [13/16] %v3954, 128
        %4038 = vxpose.xlu0.b32.cont [14/16] %v3955, 128
        %4039 = vxpose.xlu0.b32.cont [15/16] %v3956, 128
        %4040 = vxpose.xlu0.b32.end [16/16] %v3957, 128
        %v4041 = vpop.trf.xlu0
        %v4042 = vpop.trf.xlu0
        %v4043 = vpop.trf.xlu0
        %v4044 = vpop.trf.xlu0
        %v4045 = vpop.trf.xlu0
        %v4046 = vpop.trf.xlu0
        %v4047 = vpop.trf.xlu0
        %v4048 = vpop.trf.xlu0
        %v4049 = vpop.trf.xlu0
        %v4050 = vpop.trf.xlu0
        %v4051 = vpop.trf.xlu0
        %v4052 = vpop.trf.xlu0
        %v4053 = vpop.trf.xlu0
        %v4054 = vpop.trf.xlu0
        %v4055 = vpop.trf.xlu0
        %v4056 = vpop.trf.xlu0
        %4057 = vmatprep.subr.mxu0 0.0
        %4058 = vmatpush1.msra.mxu0 %v4009
        %4059 = vmatprep.subr.mxu0 0.0
        %4060 = vmatpush1.msra.mxu0 %v4010
        %4061 = vmatprep.subr.mxu0 0.0
        %4062 = vmatpush1.msra.mxu0 %v4011
        %4063 = vmatprep.subr.mxu0 0.0
        %4064 = vmatpush1.msra.mxu0 %v4012
        %4065 = vmatprep.subr.mxu0 0.0
        %4066 = vmatpush1.msra.mxu0 %v4013
        %4067 = vmatprep.subr.mxu0 0.0
        %4068 = vmatpush1.msra.mxu0 %v4014
        %4069 = vmatprep.subr.mxu0 0.0
        %4070 = vmatpush1.msra.mxu0 %v4015
        %4071 = vmatprep.subr.mxu0 0.0
        %4072 = vmatpush1.msra.mxu0 %v4016
        %4073 = vmatprep.subr.mxu0 0.0
        %4074 = vmatpush1.msra.mxu0 %v4017
        %4075 = vmatprep.subr.mxu0 0.0
        %4076 = vmatpush1.msra.mxu0 %v4018
        %4077 = vmatprep.subr.mxu0 0.0
        %4078 = vmatpush1.msra.mxu0 %v4019
        %4079 = vmatprep.subr.mxu0 0.0
        %4080 = vmatpush1.msra.mxu0 %v4020
        %4081 = vmatprep.subr.mxu0 0.0
        %4082 = vmatpush1.msra.mxu0 %v4021
        %4083 = vmatprep.subr.mxu0 0.0
        %4084 = vmatpush1.msra.mxu0 %v4022
        %4085 = vmatprep.subr.mxu0 0.0
        %4086 = vmatpush1.msra.mxu0 %v4023
        %4087 = vmatprep.subr.mxu0 0.0
        %4088 = vmatpush1.msra.mxu0 %v4024
        %4089 = vmatprep.subr.mxu0 0.0
        %4090 = vmatpush1.msra.mxu0 0.0
        %4091 = vmatprep.subr.mxu0 0.0
        %4092 = vmatpush1.msra.mxu0 0.0
        %4093 = vmatprep.subr.mxu0 0.0
        %4094 = vmatpush1.msra.mxu0 0.0
        %4095 = vmatprep.subr.mxu0 0.0
        %4096 = vmatpush1.msra.mxu0 0.0
        %4097 = vmatprep.subr.mxu0 0.0
        %4098 = vmatpush1.msra.mxu0 0.0
        %4099 = vmatprep.subr.mxu0 0.0
        %4100 = vmatpush1.msra.mxu0 0.0
        %4101 = vmatprep.subr.mxu0 0.0
        %4102 = vmatpush1.msra.mxu0 0.0
        %4103 = vmatprep.subr.mxu0 0.0
        %4104 = vmatpush1.msra.mxu0 0.0
        %4105 = vmatprep.subr.mxu0 0.0
        %4106 = vmatpush1.msra.mxu0 0.0
        %4107 = vmatprep.subr.mxu0 0.0
        %4108 = vmatpush1.msra.mxu0 0.0
        %4109 = vmatprep.subr.mxu0 0.0
        %4110 = vmatpush1.msra.mxu0 0.0
        %4111 = vmatprep.subr.mxu0 0.0
        %4112 = vmatpush1.msra.mxu0 0.0
        %4113 = vmatprep.subr.mxu0 0.0
        %4114 = vmatpush1.msra.mxu0 0.0
        %4115 = vmatprep.subr.mxu0 0.0
        %4116 = vmatpush1.msra.mxu0 0.0
        %4117 = vmatprep.subr.mxu0 0.0
        %4118 = vmatpush1.msra.mxu0 0.0
        %4119 = vmatprep.subr.mxu0 0.0
        %4120 = vmatpush1.msra.mxu0 0.0
        %4121 = vmatprep.mubr.f32.mxu0 0.0
        %4122 = vmatmul.mubr.f32.gmra.mrb[0].mxu0 %v4041
        %v4123 = vpop.f32.mrb[0].mxu0
        %v4124 = vadd.f32 0.0, %v4123
        %v4125 = vpop.f32.mrb[0].mxu0
        %4126 = vdwg.mxu0
        %4127 = vst [vmem:[%s446] sm:$0xf] %v4124
        %s4128 = sand.u32 %s312, 1
        %s4129 = scalar_lea.sflag [#allocation7], %s4128
        %s4130 = sand.u32 %s312, 1
        %s4131 = smul.addr %s4130, 4
        %s4132 = scalar_lea.vmem [#allocation6], %s4131
        // Predicated region
        $region73: #{tpu_custom_call.1} parent=67 // pred_check
          %p4133 = pneg %p322
        $region74: #{tpu_custom_call.1} parent=67 // pred_check_branch
          %4135 = sbr.rel (%p4133) target = $region76
        $region75: #{tpu_custom_call.1} parent=67 // pred_region
          %s4137 = ssub.s32 64, 64
          %4138 = vsyncadd %s4129, %s4137
          %s4139 = smul.addr %s30, 2
          %s4140 = sadd.s32 %s31, %s4139
          %s4141 = smul.addr %s4140, 64
          %s4142 = scalar_lea.hbm %s12, %s4141
          %s4144 = sshll.u32 %s4132, 4
          %s4145 = int_to_ptr.vmem [resolvable:$true] %s4144
          %4147 = dma.vmem_to_hbm [thread:$0]  %s4145, 64, %s4142, %s4129
        $region76: #{tpu_custom_call.1} parent=67 // pred_fallthru
          _
      $region68: #{tpu_custom_call.1} parent=5 // pred_fallthru
        _
      %p4148 = scmp.le.s32.totalorder 2, %s21
      // Predicated region
      $region77: #{tpu_custom_call.1} parent=5 // pred_check
        %p4149 = pneg %p4148
      $region78: #{tpu_custom_call.1} parent=5 // pred_check_branch
        %4151 = sbr.rel (%p4149) target = $region80
      $region79: #{tpu_custom_call.1} parent=5 // pred_region
        %s4152 = ssub.s32 %s21, 2
        // Predicated region
        $region81: #{tpu_custom_call.1} parent=79 // pred_check
          %p4153 = pneg %p328
        $region82: #{tpu_custom_call.1} parent=79 // pred_check_branch
          %4155 = sbr.rel (%p4153) target = $region84
        $region83: #{tpu_custom_call.1} parent=79 // pred_region
          %s4156 = sand.u32 %s313, 1
          %s4157 = scalar_lea.sflag [#allocation7], %s4156
          %s4158 = sand.u32 %s313, 1
          %s4159 = smul.addr %s4158, 4
          %s4160 = scalar_lea.vmem [#allocation6], %s4159
          %4161 = dma.done %s4157, 64
        $region84: #{tpu_custom_call.1} parent=79 // pred_fallthru
          _
      $region80: #{tpu_custom_call.1} parent=5 // pred_fallthru
        _
    $region6: #{tpu_custom_call.1} parent=1 // loop_footer
      %s25 = sadd.s32 1, %s21
    $region7: #{tpu_custom_call.1} parent=1 // loop_footer_branch
      %20 = sbr.rel target = $region3
    $region8: #{tpu_custom_call.1} parent=1 // loop_exit
      _
    %4162 = vsyncpa [#allocation7], 1
    %s4163 = scalar_lea.sflag [#allocation7], 1
    %4164 = vsyncpa %s4163, 1

</llo_original>
